<compile_context>
chip_gen: v7x
topology: tpu7x:2x2x1
jax: 0.10.0
libtpu: 0.0.40
codegen_flags: <defaults>
</compile_context>

<pallas_src>
import jax
import jax.numpy as jnp
from jax.experimental import pallas as pl
from jax.experimental.pallas import tpu as pltpu

LANE = 128
ROW_ALIGN = 16                    # sublane alignment safe for bf16 (16) and f32 (8)
TM_MAX = 1024                     # max row tile; keeps conv2 corner buffers VMEM-safe on v7x
VMEM_LIMIT = 48 * 1024 * 1024     # > v5e/v6e scoped defaults, < v7x physical 64 MiB


def _round_up(x, m):
    return (x + m - 1) // m * m


def _cdiv(a, b):
    return (a + b - 1) // b


def _choose_tile(m):
    """Padding-aware row tile: tm <= TM_MAX, multiple of ROW_ALIGN, and >= 2
    grid steps whenever there are enough rows (dual-TC v7x sharding)."""
    m_min = _round_up(max(m, 1), ROW_ALIGN)
    steps = max(_cdiv(m_min, TM_MAX), 2 if m_min >= 2 * ROW_ALIGN else 1)
    tm = _round_up(_cdiv(m_min, steps), ROW_ALIGN)
    m_pad = tm * _cdiv(m_min, tm)
    return tm, m_pad


# ----------------------------- Pallas kernels ------------------------------ #

def _conv_relu_pool_kernel(p_ref, w_ref, b_ref, o_ref):
    """p_ref: (4, tm, K) bf16 pool-corner patches.
    o = relu(max_c(p[c] @ w) + b)   (== maxpool(relu(conv)); exact since
    bias-add and ReLU are monotone). f32 accumulate, bf16 store."""
    w = w_ref[...]

    def corner(c):
        return jnp.dot(p_ref[c], w, preferred_element_type=jnp.float32)

    acc = jnp.maximum(jnp.maximum(corner(0), corner(1)),
                      jnp.maximum(corner(2), corner(3)))
    o_ref[...] = jnp.maximum(acc + b_ref[...], 0.0).astype(o_ref.dtype)


def _fc_fused_kernel(x_ref, w1_ref, b1_ref, w2_ref, b2_ref, o_ref, h_ref):
    """Fused classifier: h = relu(x@w1+b1); o = h@w2+b2.
    bf16 matmul operands, f32 accumulation / bias / ReLU."""
    h = jnp.dot(x_ref[...], w1_ref[...], preferred_element_type=jnp.float32)
    h = jnp.maximum(h + b1_ref[...], 0.0)
    h_ref[...] = h
    o_ref[...] = (jnp.dot(h.astype(jnp.bfloat16), w2_ref[...],
                          preferred_element_type=jnp.float32) + b2_ref[...])


# ------------------------------ Kernel wrappers ----------------------------- #

def conv_relu_pool_matmul(p4, w_pad, b_pad):
    """Fused conv(im2col)+ReLU+MaxPool matmul.

    p4    : [4, M, K] bf16 stacked pool-corner patch matrices
    w_pad : [K, Np]   bf16 weights, Cout zero-padded to a multiple of 128
    b_pad : [1, Np]   f32 bias (zero-padded)
    returns [M, Np] bf16 (pooled, lane-dense)
    """
    _, M, K = p4.shape
    Np = w_pad.shape[1]
    tm, m_pad = _choose_tile(M)
    if m_pad != M:
        p4 = jnp.pad(p4, ((0, 0), (0, m_pad - M), (0, 0)))

    out = pl.pallas_call(
        _conv_relu_pool_kernel,
        out_shape=jax.ShapeDtypeStruct((m_pad, Np), jnp.bfloat16),
        grid=(m_pad // tm,),
        in_specs=[
            pl.BlockSpec((4, tm, K), lambda i: (0, i, 0)),
            pl.BlockSpec((K, Np), lambda i: (0, 0)),
            pl.BlockSpec((1, Np), lambda i: (0, 0)),
        ],
        out_specs=pl.BlockSpec((tm, Np), lambda i: (i, 0)),
        compiler_params=pltpu.CompilerParams(
            dimension_semantics=("parallel",),
            vmem_limit_bytes=VMEM_LIMIT,
        ),
    )(p4, w_pad, b_pad)
    return out[:M]


def fc_fused(x, w1p, b1p, w2p, b2p):
    """Fused fc1(ReLU)+fc2. x is bf16. Returns (logits_pad, hidden_pad), f32."""
    M, K = x.shape
    H = w1p.shape[1]
    N = w2p.shape[1]
    tm, m_pad = _choose_tile(M)
    if m_pad != M:
        x = jnp.pad(x, ((0, m_pad - M), (0, 0)))

    logits, h = pl.pallas_call(
        _fc_fused_kernel,
        out_shape=(
            jax.ShapeDtypeStruct((m_pad, N), jnp.float32),
            jax.ShapeDtypeStruct((m_pad, H), jnp.float32),
        ),
        grid=(m_pad // tm,),
        in_specs=[
            pl.BlockSpec((tm, K), lambda i: (i, 0)),
            pl.BlockSpec((K, H), lambda i: (0, 0)),
            pl.BlockSpec((1, H), lambda i: (0, 0)),
            pl.BlockSpec((H, N), lambda i: (0, 0)),
            pl.BlockSpec((1, N), lambda i: (0, 0)),
        ],
        out_specs=(
            pl.BlockSpec((tm, N), lambda i: (i, 0)),
            pl.BlockSpec((tm, H), lambda i: (i, 0)),
        ),
        compiler_params=pltpu.CompilerParams(
            dimension_semantics=("parallel",),
            vmem_limit_bytes=VMEM_LIMIT,
        ),
    )(x, w1p, b1p, w2p, b2p)
    return logits[:M], h[:M]


# ------------------------------ JAX-side glue ------------------------------ #

def _pool_corner_patches(x_nhwc, kh, kw, dy, dx, ph, pw):
    """im2col patches for conv output positions (2*i+dy, 2*j+dx) only."""
    cols = []
    for i in range(kh):
        for j in range(kw):
            cols.append(
                x_nhwc[:, dy + i: dy + i + 2 * ph: 2,
                       dx + j: dx + j + 2 * pw: 2, :]
            )
    patches = jnp.stack(cols, axis=3)               # [B, ph, pw, kh*kw, C]
    return patches.reshape(x_nhwc.shape[0] * ph * pw,
                           kh * kw * x_nhwc.shape[3])


def conv_relu_pool(x_nhwc, w_mat_pad, b_pad, kh, kw, cout):
    """nn.Conv2d(valid, stride 1) + ReLU + MaxPool2d(2), fused in one kernel."""
    B, H, W, _ = x_nhwc.shape
    ph, pw = (H - kh + 1) // 2, (W - kw + 1) // 2
    # TODO(synk): host-side im2col still inflates HBM reads ~kh*kw x; in-kernel
    # patch build is the next structural optimization.
    p4 = jnp.stack(
        [_pool_corner_patches(x_nhwc, kh, kw, dy, dx, ph, pw)
         for (dy, dx) in ((0, 0), (0, 1), (1, 0), (1, 1))],
        axis=0,
    ).astype(jnp.bfloat16)                           # [4, B*ph*pw, kh*kw*Cin]
    out = conv_relu_pool_matmul(p4, w_mat_pad, b_pad)   # [B*ph*pw, Np] bf16
    return out[:, :cout].reshape(B, ph, pw, cout)


def prepare_params(params):
    """One-time conversion of PyTorch-layout params into kernel-ready matrices."""
    def conv_w(w_oihw):
        cout, cin, kh, kw = w_oihw.shape
        w = jnp.transpose(w_oihw, (2, 3, 1, 0)).reshape(kh * kw * cin, cout)
        w = jnp.pad(w, ((0, 0), (0, _round_up(cout, LANE) - cout)))
        return w.astype(jnp.bfloat16)

    def pad_bias(b):
        n = b.shape[0]
        return jnp.pad(b, (0, _round_up(n, LANE) - n)).reshape(1, -1).astype(jnp.float32)

    # Fold PyTorch's NCHW flatten (c, h, w) into fc1's input dimension so the
    # NHWC pooled tensor can be flattened with a free reshape at runtime.
    fc1_w = params["fc1_w"].reshape(64, 32, 4, 4)                 # [out, c, h, w]
    fc1_w = jnp.transpose(fc1_w, (2, 3, 1, 0)).reshape(512, 64)   # input = (h, w, c)
    fc1_w = jnp.pad(fc1_w, ((0, 0), (0, 128 - 64))).astype(jnp.bfloat16)

    fc2_w = params["fc2_w"].T                                     # [64, 10]
    fc2_w = jnp.pad(fc2_w, ((0, 128 - 64), (0, 128 - 10))).astype(jnp.bfloat16)

    return {
        "w1": conv_w(params["w1"]), "b1": pad_bias(params["b1"]),
        "w2": conv_w(params["w2"]), "b2": pad_bias(params["b2"]),
        "fc1_w": fc1_w, "fc1_b": pad_bias(params["fc1_b"]),
        "fc2_w": fc2_w, "fc2_b": pad_bias(params["fc2_b"]),
    }


def badnet_mnist_forward(x_nchw, prep):
    """Forward of BadNetMNIST. Returns (logits, second_last_activation)."""
    x = jnp.transpose(x_nchw, (0, 2, 3, 1))                        # NCHW -> NHWC
    x = conv_relu_pool(x, prep["w1"], prep["b1"], 5, 5, 16)        # [B,12,12,16] bf16
    x = conv_relu_pool(x, prep["w2"], prep["b2"], 5, 5, 32)        # [B,4,4,32]   bf16
    B = x.shape[0]
    x = x.reshape(B, 4 * 4 * 32)      # NHWC flatten; permutation folded into fc1_w
    logits, h = fc_fused(x, prep["fc1_w"], prep["fc1_b"],
                         prep["fc2_w"], prep["fc2_b"])
    return logits[:, :10], h[:, :64]


def init_params(key):
    """Deterministic init mirroring PyTorch default U(-1/sqrt(fan_in), 1/sqrt(fan_in))."""
    ks = jax.random.split(key, 8)

    def init(k, shape, fan_in):
        bound = 1.0 / float(fan_in) ** 0.5
        return jax.random.uniform(k, shape, jnp.float32, -bound, bound)

    return {
        "w1": init(ks[0], (16, 1, 5, 5), 1 * 5 * 5),
        "b1": init(ks[1], (16,), 1 * 5 * 5),
        "w2": init(ks[2], (32, 16, 5, 5), 16 * 5 * 5),
        "b2": init(ks[3], (32,), 16 * 5 * 5),
        "fc1_w": init(ks[4], (64, 512), 512),
        "fc1_b": init(ks[5], (64,), 512),
        "fc2_w": init(ks[6], (10, 64), 64),
        "fc2_b": init(ks[7], (10,), 64),
    }


if __name__ == "__main__":
    key = jax.random.PRNGKey(0)
    k_param, k_x = jax.random.split(key)
    params = init_params(k_param)
    prep = prepare_params(params)
    # MNIST-shaped input is required by the 32*4*4 classifier: [B, 1, 28, 28]
    x = jax.random.normal(k_x, (2, 1, 28, 28), jnp.float32)

    fwd = jax.jit(badnet_mnist_forward)
    logits, hidden = fwd(x, prep)
    jax.block_until_ready(logits)
    jax.block_until_ready(hidden)

    assert logits.shape == (2, 10)
    assert hidden.shape == (2, 64)
    print("KERNEL_OK")
</pallas_src>

<mosaic_0001>
module attributes {stable_mosaic.version = 11 : i64} {
  func.func @_conv_relu_pool_kernel(%arg0: i32, %arg1: memref<4x144x25xbf16, #tpu.memory_space<vmem>>, %arg2: memref<25x128xbf16, #tpu.memory_space<vmem>>, %arg3: memref<1x128xf32, #tpu.memory_space<vmem>>, %arg4: memref<144x128xbf16, #tpu.memory_space<vmem>>) attributes {dimension_semantics = [#tpu.dimension_semantics<parallel>], iteration_bounds = array<i64: 2>, scalar_prefetch = 0 : i64, scratch_operands = 0 : i64, tpu.core_type = #tpu.core_type<tc>, window_params = [{transform_indices = @transform_0, window_bounds = array<i64: 4, 144, 25>}, {pipeline_mode = #tpu.pipeline_mode<synchronous>, transform_indices = @transform_1, window_bounds = array<i64: 25, 128>}, {pipeline_mode = #tpu.pipeline_mode<synchronous>, transform_indices = @transform_2, window_bounds = array<i64: 1, 128>}, {transform_indices = @transform_3, window_bounds = array<i64: 144, 128>}]} {
    %c0 = arith.constant 0 : index
    %c0_0 = arith.constant 0 : index
    %0 = vector.load %arg2[%c0, %c0_0] : memref<25x128xbf16, #tpu.memory_space<vmem>>, vector<25x128xbf16>
    %c0_1 = arith.constant 0 : index
    %c0_2 = arith.constant 0 : index
    %c0_3 = arith.constant 0 : index
    %1 = vector.load %arg1[%c0_1, %c0_2, %c0_3] : memref<4x144x25xbf16, #tpu.memory_space<vmem>>, vector<1x144x25xbf16>
    %2 = vector.shape_cast %1 : vector<1x144x25xbf16> to vector<144x25xbf16>
    %cst = arith.constant dense<0.000000e+00> : vector<144x128xf32>
    %3 = tpu.matmul %2, %0, %cst {dimension_numbers = #tpu.dot_dimension_numbers<[1], [0], [0], [1], [0, 0, 1, 1], [], []>} : vector<144x25xbf16>, vector<25x128xbf16>, vector<144x128xf32> -> vector<144x128xf32>
    %c1 = arith.constant 1 : index
    %c0_4 = arith.constant 0 : index
    %c0_5 = arith.constant 0 : index
    %4 = vector.load %arg1[%c1, %c0_4, %c0_5] : memref<4x144x25xbf16, #tpu.memory_space<vmem>>, vector<1x144x25xbf16>
    %5 = vector.shape_cast %4 : vector<1x144x25xbf16> to vector<144x25xbf16>
    %cst_6 = arith.constant dense<0.000000e+00> : vector<144x128xf32>
    %6 = tpu.matmul %5, %0, %cst_6 {dimension_numbers = #tpu.dot_dimension_numbers<[1], [0], [0], [1], [0, 0, 1, 1], [], []>} : vector<144x25xbf16>, vector<25x128xbf16>, vector<144x128xf32> -> vector<144x128xf32>
    %7 = arith.maximumf %3, %6 : vector<144x128xf32>
    %c2 = arith.constant 2 : index
    %c0_7 = arith.constant 0 : index
    %c0_8 = arith.constant 0 : index
    %8 = vector.load %arg1[%c2, %c0_7, %c0_8] : memref<4x144x25xbf16, #tpu.memory_space<vmem>>, vector<1x144x25xbf16>
    %9 = vector.shape_cast %8 : vector<1x144x25xbf16> to vector<144x25xbf16>
    %cst_9 = arith.constant dense<0.000000e+00> : vector<144x128xf32>
    %10 = tpu.matmul %9, %0, %cst_9 {dimension_numbers = #tpu.dot_dimension_numbers<[1], [0], [0], [1], [0, 0, 1, 1], [], []>} : vector<144x25xbf16>, vector<25x128xbf16>, vector<144x128xf32> -> vector<144x128xf32>
    %c3 = arith.constant 3 : index
    %c0_10 = arith.constant 0 : index
    %c0_11 = arith.constant 0 : index
    %11 = vector.load %arg1[%c3, %c0_10, %c0_11] : memref<4x144x25xbf16, #tpu.memory_space<vmem>>, vector<1x144x25xbf16>
    %12 = vector.shape_cast %11 : vector<1x144x25xbf16> to vector<144x25xbf16>
    %cst_12 = arith.constant dense<0.000000e+00> : vector<144x128xf32>
    %13 = tpu.matmul %12, %0, %cst_12 {dimension_numbers = #tpu.dot_dimension_numbers<[1], [0], [0], [1], [0, 0, 1, 1], [], []>} : vector<144x25xbf16>, vector<25x128xbf16>, vector<144x128xf32> -> vector<144x128xf32>
    %14 = arith.maximumf %10, %13 : vector<144x128xf32>
    %15 = arith.maximumf %7, %14 : vector<144x128xf32>
    %c0_13 = arith.constant 0 : index
    %c0_14 = arith.constant 0 : index
    %16 = vector.load %arg3[%c0_13, %c0_14] : memref<1x128xf32, #tpu.memory_space<vmem>>, vector<1x128xf32>
    %17 = vector.broadcast %16 : vector<1x128xf32> to vector<144x128xf32>
    %18 = arith.addf %15, %17 : vector<144x128xf32>
    %cst_15 = arith.constant 0.000000e+00 : f32
    %19 = vector.broadcast %cst_15 : f32 to vector<144x128xf32>
    %20 = arith.maximumf %18, %19 : vector<144x128xf32>
    %21 = arith.truncf %20 : vector<144x128xf32> to vector<144x128xbf16>
    %c0_16 = arith.constant 0 : index
    %c0_17 = arith.constant 0 : index
    %22 = vector.load %arg4[%c0_16, %c0_17] : memref<144x128xbf16, #tpu.memory_space<vmem>>, vector<144x128xbf16>
    tpu.vector_store %arg4[%c0_16, %c0_17], %21 {strides = array<i32>} : memref<144x128xbf16, #tpu.memory_space<vmem>>, vector<144x128xbf16>,
    return
  }
  func.func @transform_0(%arg0: i32) -> (i32, i32, i32) {
    %c0_i32 = arith.constant 0 : i32
    %c0_i32_0 = arith.constant 0 : i32
    %c0_i32_1 = arith.constant 0 : i32
    return %c0_i32, %arg0, %c0_i32_0 : i32, i32, i32
  }
  func.func @transform_1(%arg0: i32) -> (i32, i32) {
    %c0_i32 = arith.constant 0 : i32
    %c0_i32_0 = arith.constant 0 : i32
    %c0_i32_1 = arith.constant 0 : i32
    return %c0_i32, %c0_i32_0 : i32, i32
  }
  func.func @transform_2(%arg0: i32) -> (i32, i32) {
    %c0_i32 = arith.constant 0 : i32
    %c0_i32_0 = arith.constant 0 : i32
    %c0_i32_1 = arith.constant 0 : i32
    return %c0_i32, %c0_i32_0 : i32, i32
  }
  func.func @transform_3(%arg0: i32) -> (i32, i32) {
    %c0_i32 = arith.constant 0 : i32
    %c0_i32_0 = arith.constant 0 : i32
    return %arg0, %c0_i32 : i32, i32
  }
}

module attributes {stable_mosaic.version = 11 : i64} {
  func.func @_conv_relu_pool_kernel(%arg0: i32, %arg1: memref<4x16x400xbf16, #tpu.memory_space<vmem>>, %arg2: memref<400x128xbf16, #tpu.memory_space<vmem>>, %arg3: memref<1x128xf32, #tpu.memory_space<vmem>>, %arg4: memref<16x128xbf16, #tpu.memory_space<vmem>>) attributes {dimension_semantics = [#tpu.dimension_semantics<parallel>], iteration_bounds = array<i64: 2>, scalar_prefetch = 0 : i64, scratch_operands = 0 : i64, tpu.core_type = #tpu.core_type<tc>, window_params = [{transform_indices = @transform_0, window_bounds = array<i64: 4, 16, 400>}, {pipeline_mode = #tpu.pipeline_mode<synchronous>, transform_indices = @transform_1, window_bounds = array<i64: 400, 128>}, {pipeline_mode = #tpu.pipeline_mode<synchronous>, transform_indices = @transform_2, window_bounds = array<i64: 1, 128>}, {transform_indices = @transform_3, window_bounds = array<i64: 16, 128>}]} {
    %c0 = arith.constant 0 : index
    %c0_0 = arith.constant 0 : index
    %0 = vector.load %arg2[%c0, %c0_0] : memref<400x128xbf16, #tpu.memory_space<vmem>>, vector<400x128xbf16>
    %c0_1 = arith.constant 0 : index
    %c0_2 = arith.constant 0 : index
    %c0_3 = arith.constant 0 : index
    %1 = vector.load %arg1[%c0_1, %c0_2, %c0_3] : memref<4x16x400xbf16, #tpu.memory_space<vmem>>, vector<1x16x400xbf16>
    %2 = vector.shape_cast %1 : vector<1x16x400xbf16> to vector<16x400xbf16>
    %cst = arith.constant dense<0.000000e+00> : vector<16x128xf32>
    %3 = tpu.matmul %2, %0, %cst {dimension_numbers = #tpu.dot_dimension_numbers<[1], [0], [0], [1], [0, 0, 1, 1], [], []>} : vector<16x400xbf16>, vector<400x128xbf16>, vector<16x128xf32> -> vector<16x128xf32>
    %c1 = arith.constant 1 : index
    %c0_4 = arith.constant 0 : index
    %c0_5 = arith.constant 0 : index
    %4 = vector.load %arg1[%c1, %c0_4, %c0_5] : memref<4x16x400xbf16, #tpu.memory_space<vmem>>, vector<1x16x400xbf16>
    %5 = vector.shape_cast %4 : vector<1x16x400xbf16> to vector<16x400xbf16>
    %cst_6 = arith.constant dense<0.000000e+00> : vector<16x128xf32>
    %6 = tpu.matmul %5, %0, %cst_6 {dimension_numbers = #tpu.dot_dimension_numbers<[1], [0], [0], [1], [0, 0, 1, 1], [], []>} : vector<16x400xbf16>, vector<400x128xbf16>, vector<16x128xf32> -> vector<16x128xf32>
    %7 = arith.maximumf %3, %6 : vector<16x128xf32>
    %c2 = arith.constant 2 : index
    %c0_7 = arith.constant 0 : index
    %c0_8 = arith.constant 0 : index
    %8 = vector.load %arg1[%c2, %c0_7, %c0_8] : memref<4x16x400xbf16, #tpu.memory_space<vmem>>, vector<1x16x400xbf16>
    %9 = vector.shape_cast %8 : vector<1x16x400xbf16> to vector<16x400xbf16>
    %cst_9 = arith.constant dense<0.000000e+00> : vector<16x128xf32>
    %10 = tpu.matmul %9, %0, %cst_9 {dimension_numbers = #tpu.dot_dimension_numbers<[1], [0], [0], [1], [0, 0, 1, 1], [], []>} : vector<16x400xbf16>, vector<400x128xbf16>, vector<16x128xf32> -> vector<16x128xf32>
    %c3 = arith.constant 3 : index
    %c0_10 = arith.constant 0 : index
    %c0_11 = arith.constant 0 : index
    %11 = vector.load %arg1[%c3, %c0_10, %c0_11] : memref<4x16x400xbf16, #tpu.memory_space<vmem>>, vector<1x16x400xbf16>
    %12 = vector.shape_cast %11 : vector<1x16x400xbf16> to vector<16x400xbf16>
    %cst_12 = arith.constant dense<0.000000e+00> : vector<16x128xf32>
    %13 = tpu.matmul %12, %0, %cst_12 {dimension_numbers = #tpu.dot_dimension_numbers<[1], [0], [0], [1], [0, 0, 1, 1], [], []>} : vector<16x400xbf16>, vector<400x128xbf16>, vector<16x128xf32> -> vector<16x128xf32>
    %14 = arith.maximumf %10, %13 : vector<16x128xf32>
    %15 = arith.maximumf %7, %14 : vector<16x128xf32>
    %c0_13 = arith.constant 0 : index
    %c0_14 = arith.constant 0 : index
    %16 = vector.load %arg3[%c0_13, %c0_14] : memref<1x128xf32, #tpu.memory_space<vmem>>, vector<1x128xf32>
    %17 = vector.broadcast %16 : vector<1x128xf32> to vector<16x128xf32>
    %18 = arith.addf %15, %17 : vector<16x128xf32>
    %cst_15 = arith.constant 0.000000e+00 : f32
    %19 = vector.broadcast %cst_15 : f32 to vector<16x128xf32>
    %20 = arith.maximumf %18, %19 : vector<16x128xf32>
    %21 = arith.truncf %20 : vector<16x128xf32> to vector<16x128xbf16>
    %c0_16 = arith.constant 0 : index
    %c0_17 = arith.constant 0 : index
    %22 = vector.load %arg4[%c0_16, %c0_17] : memref<16x128xbf16, #tpu.memory_space<vmem>>, vector<16x128xbf16>
    tpu.vector_store %arg4[%c0_16, %c0_17], %21 {strides = array<i32>} : memref<16x128xbf16, #tpu.memory_space<vmem>>, vector<16x128xbf16>,
    return
  }
  func.func @transform_0(%arg0: i32) -> (i32, i32, i32) {
    %c0_i32 = arith.constant 0 : i32
    %c0_i32_0 = arith.constant 0 : i32
    %c0_i32_1 = arith.constant 0 : i32
    return %c0_i32, %arg0, %c0_i32_0 : i32, i32, i32
  }
  func.func @transform_1(%arg0: i32) -> (i32, i32) {
    %c0_i32 = arith.constant 0 : i32
    %c0_i32_0 = arith.constant 0 : i32
    %c0_i32_1 = arith.constant 0 : i32
    return %c0_i32, %c0_i32_0 : i32, i32
  }
  func.func @transform_2(%arg0: i32) -> (i32, i32) {
    %c0_i32 = arith.constant 0 : i32
    %c0_i32_0 = arith.constant 0 : i32
    %c0_i32_1 = arith.constant 0 : i32
    return %c0_i32, %c0_i32_0 : i32, i32
  }
  func.func @transform_3(%arg0: i32) -> (i32, i32) {
    %c0_i32 = arith.constant 0 : i32
    %c0_i32_0 = arith.constant 0 : i32
    return %arg0, %c0_i32 : i32, i32
  }
}

module attributes {stable_mosaic.version = 11 : i64} {
  func.func @_fc_fused_kernel(%arg0: i32, %arg1: memref<16x512xbf16, #tpu.memory_space<vmem>>, %arg2: memref<512x128xbf16, #tpu.memory_space<vmem>>, %arg3: memref<1x128xf32, #tpu.memory_space<vmem>>, %arg4: memref<128x128xbf16, #tpu.memory_space<vmem>>, %arg5: memref<1x128xf32, #tpu.memory_space<vmem>>, %arg6: memref<16x128xf32, #tpu.memory_space<vmem>>, %arg7: memref<16x128xf32, #tpu.memory_space<vmem>>) attributes {dimension_semantics = [#tpu.dimension_semantics<parallel>], iteration_bounds = array<i64: 1>, scalar_prefetch = 0 : i64, scratch_operands = 0 : i64, tpu.core_type = #tpu.core_type<tc>, window_params = [{transform_indices = @transform_0, window_bounds = array<i64: 16, 512>}, {pipeline_mode = #tpu.pipeline_mode<synchronous>, transform_indices = @transform_1, window_bounds = array<i64: 512, 128>}, {pipeline_mode = #tpu.pipeline_mode<synchronous>, transform_indices = @transform_2, window_bounds = array<i64: 1, 128>}, {pipeline_mode = #tpu.pipeline_mode<synchronous>, transform_indices = @transform_3, window_bounds = array<i64: 128, 128>}, {pipeline_mode = #tpu.pipeline_mode<synchronous>, transform_indices = @transform_4, window_bounds = array<i64: 1, 128>}, {transform_indices = @transform_5, window_bounds = array<i64: 16, 128>}, {transform_indices = @transform_6, window_bounds = array<i64: 16, 128>}]} {
    %c0 = arith.constant 0 : index
    %c0_0 = arith.constant 0 : index
    %0 = vector.load %arg1[%c0, %c0_0] : memref<16x512xbf16, #tpu.memory_space<vmem>>, vector<16x512xbf16>
    %c0_1 = arith.constant 0 : index
    %c0_2 = arith.constant 0 : index
    %1 = vector.load %arg2[%c0_1, %c0_2] : memref<512x128xbf16, #tpu.memory_space<vmem>>, vector<512x128xbf16>
    %cst = arith.constant dense<0.000000e+00> : vector<16x128xf32>
    %2 = tpu.matmul %0, %1, %cst {dimension_numbers = #tpu.dot_dimension_numbers<[1], [0], [0], [1], [0, 0, 1, 1], [], []>} : vector<16x512xbf16>, vector<512x128xbf16>, vector<16x128xf32> -> vector<16x128xf32>
    %c0_3 = arith.constant 0 : index
    %c0_4 = arith.constant 0 : index
    %3 = vector.load %arg3[%c0_3, %c0_4] : memref<1x128xf32, #tpu.memory_space<vmem>>, vector<1x128xf32>
    %4 = vector.broadcast %3 : vector<1x128xf32> to vector<16x128xf32>
    %5 = arith.addf %2, %4 : vector<16x128xf32>
    %cst_5 = arith.constant 0.000000e+00 : f32
    %6 = vector.broadcast %cst_5 : f32 to vector<16x128xf32>
    %7 = arith.maximumf %5, %6 : vector<16x128xf32>
    %c0_6 = arith.constant 0 : index
    %c0_7 = arith.constant 0 : index
    %8 = vector.load %arg7[%c0_6, %c0_7] : memref<16x128xf32, #tpu.memory_space<vmem>>, vector<16x128xf32>
    tpu.vector_store %arg7[%c0_6, %c0_7], %7 {strides = array<i32>} : memref<16x128xf32, #tpu.memory_space<vmem>>, vector<16x128xf32>,
    %9 = arith.truncf %7 : vector<16x128xf32> to vector<16x128xbf16>
    %c0_8 = arith.constant 0 : index
    %c0_9 = arith.constant 0 : index
    %10 = vector.load %arg4[%c0_8, %c0_9] : memref<128x128xbf16, #tpu.memory_space<vmem>>, vector<128x128xbf16>
    %cst_10 = arith.constant dense<0.000000e+00> : vector<16x128xf32>
    %11 = tpu.matmul %9, %10, %cst_10 {dimension_numbers = #tpu.dot_dimension_numbers<[1], [0], [0], [1], [0, 0, 1, 1], [], []>} : vector<16x128xbf16>, vector<128x128xbf16>, vector<16x128xf32> -> vector<16x128xf32>
    %c0_11 = arith.constant 0 : index
    %c0_12 = arith.constant 0 : index
    %12 = vector.load %arg5[%c0_11, %c0_12] : memref<1x128xf32, #tpu.memory_space<vmem>>, vector<1x128xf32>
    %13 = vector.broadcast %12 : vector<1x128xf32> to vector<16x128xf32>
    %14 = arith.addf %11, %13 : vector<16x128xf32>
    %c0_13 = arith.constant 0 : index
    %c0_14 = arith.constant 0 : index
    %15 = vector.load %arg6[%c0_13, %c0_14] : memref<16x128xf32, #tpu.memory_space<vmem>>, vector<16x128xf32>
    tpu.vector_store %arg6[%c0_13, %c0_14], %14 {strides = array<i32>} : memref<16x128xf32, #tpu.memory_space<vmem>>, vector<16x128xf32>,
    return
  }
  func.func @transform_0(%arg0: i32) -> (i32, i32) {
    %c0_i32 = arith.constant 0 : i32
    %c0_i32_0 = arith.constant 0 : i32
    return %arg0, %c0_i32 : i32, i32
  }
  func.func @transform_1(%arg0: i32) -> (i32, i32) {
    %c0_i32 = arith.constant 0 : i32
    %c0_i32_0 = arith.constant 0 : i32
    %c0_i32_1 = arith.constant 0 : i32
    return %c0_i32, %c0_i32_0 : i32, i32
  }
  func.func @transform_2(%arg0: i32) -> (i32, i32) {
    %c0_i32 = arith.constant 0 : i32
    %c0_i32_0 = arith.constant 0 : i32
    %c0_i32_1 = arith.constant 0 : i32
    return %c0_i32, %c0_i32_0 : i32, i32
  }
  func.func @transform_3(%arg0: i32) -> (i32, i32) {
    %c0_i32 = arith.constant 0 : i32
    %c0_i32_0 = arith.constant 0 : i32
    %c0_i32_1 = arith.constant 0 : i32
    return %c0_i32, %c0_i32_0 : i32, i32
  }
  func.func @transform_4(%arg0: i32) -> (i32, i32) {
    %c0_i32 = arith.constant 0 : i32
    %c0_i32_0 = arith.constant 0 : i32
    %c0_i32_1 = arith.constant 0 : i32
    return %c0_i32, %c0_i32_0 : i32, i32
  }
  func.func @transform_5(%arg0: i32) -> (i32, i32) {
    %c0_i32 = arith.constant 0 : i32
    %c0_i32_0 = arith.constant 0 : i32
    return %arg0, %c0_i32 : i32, i32
  }
  func.func @transform_6(%arg0: i32) -> (i32, i32) {
    %c0_i32 = arith.constant 0 : i32
    %c0_i32_0 = arith.constant 0 : i32
    return %arg0, %c0_i32 : i32, i32
  }
}

</mosaic_0001>

<llo_original>
// kernel: badnet_mnist_forward.3
$region0: #{badnet_mnist_forward.3}
  #allocation0 [shape = 'u32[]', space=smem, size = 0x4, offset = 0x4, fixed_abs, tag = 'smem constant byte address 0x4 - core index']
  #allocation1 [shape = 'u32[144,128]{1,0:T(1,128)}', space=vmem, size = 0x12000, scoped, tag = 'internal scratch']
  %s0 = inlined_call_operand.vmem [shape: bf16[4,288,25], index: 0, kind: input, shape index: {}]
  %s1 = inlined_call_operand.vmem [shape: bf16[25,128], index: 1, kind: input, shape index: {}]
  %s2 = inlined_call_operand.vmem [shape: f32[1,128], index: 2, kind: input, shape index: {}]
  %s3 = inlined_call_operand.vmem [shape: bf16[288,128], index: 3, kind: output, shape index: {}]
  %s4 = sld [smem:[#allocation0]]
  $region86: #{badnet_mnist_forward.3} parent=0
    _
  %s6 = ssub.s32 1, %s4
  %s7 = scalar_select 0, %s6, %s4
  $region1: #{badnet_mnist_forward.3} parent=0
    #allocation2 [shape = 'u8[294912]{0}', space=vmem, size = 0x48000, scoped, tag = 'input window, operand 0']
    loop: start=0, step=1, limit=4
    $region2: #{badnet_mnist_forward.3} parent=1 // loop_pre_header
      _
    $region3: #{badnet_mnist_forward.3} parent=1 // loop_header
      %s9 = sphi 0, %s13
      %p10 = scmp.ge.s32.totalorder %s9, 4
      %s19 = sphi 0, %s21
      %s22 = sphi 0, %s19
      %s23 = sphi 0, %s22
      %s39 = sphi 0, %s23
      %s43 = sphi 0, %s43
      %s45 = sphi 0, %s43
      %s46 = sphi 0, %s45
      %s60 = sphi 0, %s46
      %s64 = sphi 0, %s64
      %s66 = sphi 0, %s64
      %s67 = sphi 0, %s66
      %s81 = sphi 0, %s67
      %s87 = sphi 0, %s89
      %s90 = sphi 0, %s87
      %s91 = sphi 0, %s90
      %s107 = sphi 0, %s91
    $region4: #{badnet_mnist_forward.3} parent=1 // loop_header_branch
      %12 = sbr.rel (%p10) target = $region8
    $region5: #{badnet_mnist_forward.3} parent=1 // loop_body
      %s14 = ssub.s32 %s9, 1
      %s15 = ssub.s32 %s9, 2
      %s16 = sadd.s32 %s9, 1
      %s17 = ssub.s32 %s9, %s16
      %p18 = scmp.eq.s32.totalorder %s17, 0
      %s20 = sadd.s32 %s19, 1
      %s21 = scalar_select %p18, %s19, %s20
      %p24 = pneg %p18
      %p25 = scmp.eq.s32.totalorder %s9, 1
      %p26 = por %p24, %p25
      %p27 = scmp.ne.s32.totalorder %s19, %s22
      %p28 = scmp.eq.s32.totalorder %s9, 0
      %p29 = por %p27, %p28
      %p30 = scmp.ne.s32.totalorder %s19, %s22
      %p31 = scmp.eq.s32.totalorder %s14, 1
      %p32 = por %p30, %p31
      %p33 = scmp.ne.s32.totalorder %s22, %s23
      %p34 = scmp.eq.s32.totalorder %s14, 0
      %p35 = por %p33, %p34
      %p36 = scmp.ne.s32.totalorder %s22, %s23
      %p37 = scmp.eq.s32.totalorder %s15, 1
      %p38 = por %p36, %p37
      %p40 = scmp.ne.s32.totalorder %s23, %s39
      %p41 = scmp.eq.s32.totalorder %s15, 0
      %p42 = por %p40, %p41
      %s44 = sadd.s32 %s43, 1
      %p47 = scmp.eq.s32.totalorder %s9, 1
      %p48 = scmp.ne.s32.totalorder %s43, %s45
      %p49 = scmp.eq.s32.totalorder %s9, 0
      %p50 = por %p48, %p49
      %p51 = scmp.ne.s32.totalorder %s43, %s45
      %p52 = scmp.eq.s32.totalorder %s14, 1
      %p53 = por %p51, %p52
      %p54 = scmp.ne.s32.totalorder %s45, %s46
      %p55 = scmp.eq.s32.totalorder %s14, 0
      %p56 = por %p54, %p55
      %p57 = scmp.ne.s32.totalorder %s45, %s46
      %p58 = scmp.eq.s32.totalorder %s15, 1
      %p59 = por %p57, %p58
      %p61 = scmp.ne.s32.totalorder %s46, %s60
      %p62 = scmp.eq.s32.totalorder %s15, 0
      %p63 = por %p61, %p62
      %s65 = sadd.s32 %s64, 1
      %p68 = scmp.eq.s32.totalorder %s9, 1
      %p69 = scmp.ne.s32.totalorder %s64, %s66
      %p70 = scmp.eq.s32.totalorder %s9, 0
      %p71 = por %p69, %p70
      %p72 = scmp.ne.s32.totalorder %s64, %s66
      %p73 = scmp.eq.s32.totalorder %s14, 1
      %p74 = por %p72, %p73
      %p75 = scmp.ne.s32.totalorder %s66, %s67
      %p76 = scmp.eq.s32.totalorder %s14, 0
      %p77 = por %p75, %p76
      %p78 = scmp.ne.s32.totalorder %s66, %s67
      %p79 = scmp.eq.s32.totalorder %s15, 1
      %p80 = por %p78, %p79
      %p82 = scmp.ne.s32.totalorder %s67, %s81
      %p83 = scmp.eq.s32.totalorder %s15, 0
      %p84 = por %p82, %p83
      %s85 = ssub.s32 %s9, %s16
      %p86 = scmp.eq.s32.totalorder %s85, 0
      %s88 = sadd.s32 %s87, 1
      %s89 = scalar_select %p86, %s87, %s88
      %p92 = pneg %p86
      %p93 = scmp.eq.s32.totalorder %s9, 1
      %p94 = por %p92, %p93
      %p95 = scmp.ne.s32.totalorder %s87, %s90
      %p96 = scmp.eq.s32.totalorder %s9, 0
      %p97 = por %p95, %p96
      %p98 = scmp.ne.s32.totalorder %s87, %s90
      %p99 = scmp.eq.s32.totalorder %s14, 1
      %p100 = por %p98, %p99
      %p101 = scmp.ne.s32.totalorder %s90, %s91
      %p102 = scmp.eq.s32.totalorder %s14, 0
      %p103 = por %p101, %p102
      %p104 = scmp.ne.s32.totalorder %s90, %s91
      %p105 = scmp.eq.s32.totalorder %s15, 1
      %p106 = por %p104, %p105
      %p108 = scmp.ne.s32.totalorder %s91, %s107
      %p109 = scmp.eq.s32.totalorder %s15, 0
      %p110 = por %p108, %p109
      %p111 = scmp.le.s32.totalorder 1, %s9
      %p112 = scmp.lt.s32.totalorder %s9, 3
      %p113 = pnand %p111, %p112
      %p114 = pneg %p113
      // Predicated region
      $region9: #{badnet_mnist_forward.3} parent=5 // pred_check
        _
      $region10: #{badnet_mnist_forward.3} parent=5 // pred_check_branch
        %116 = sbr.rel (%p113) target = $region12
      $region11: #{badnet_mnist_forward.3} parent=5 // pred_region
        %s117 = ssub.s32 %s9, 1
        // Predicated region
        $region13: #{badnet_mnist_forward.3} parent=11 // pred_check
          %p118 = pneg %p56
        $region14: #{badnet_mnist_forward.3} parent=11 // pred_check_branch
          %120 = sbr.rel (%p118) target = $region16
        $region15: #{badnet_mnist_forward.3} parent=11 // pred_region
          _
        $region16: #{badnet_mnist_forward.3} parent=11 // pred_fallthru
          _
        // Predicated region
        $region17: #{badnet_mnist_forward.3} parent=11 // pred_check
          %p121 = pneg %p77
        $region18: #{badnet_mnist_forward.3} parent=11 // pred_check_branch
          %123 = sbr.rel (%p121) target = $region20
        $region19: #{badnet_mnist_forward.3} parent=11 // pred_region
          _
        $region20: #{badnet_mnist_forward.3} parent=11 // pred_fallthru
          _
      $region12: #{badnet_mnist_forward.3} parent=5 // pred_fallthru
        _
      %p124 = scmp.lt.s32.totalorder %s9, 2
      // Predicated region
      $region21: #{badnet_mnist_forward.3} parent=5 // pred_check
        %p125 = pneg %p124
      $region22: #{badnet_mnist_forward.3} parent=5 // pred_check_branch
        %127 = sbr.rel (%p125) target = $region24
      $region23: #{badnet_mnist_forward.3} parent=5 // pred_region
        // Predicated region
        $region25: #{badnet_mnist_forward.3} parent=23 // pred_check
          %p128 = pneg %p29
        $region26: #{badnet_mnist_forward.3} parent=23 // pred_check_branch
          %130 = sbr.rel (%p128) target = $region28
        $region27: #{badnet_mnist_forward.3} parent=23 // pred_region
          %s131 = sand.u32 %s19, 1
          %s132 = sand.u32 %s19, 1
          %s133 = smul.addr %s132, 288
          %s134 = scalar_lea.vmem [#allocation2], %s133
          %s135 = smul.u32 18, %s9
          %s136 = smul.addr %s135, 4
          %s137 = scalar_lea.vmem %s0, %s136
          // Predicated region
          $region29: #{badnet_mnist_forward.3} parent=27 // pred_check
            _
          $region30: #{badnet_mnist_forward.3} parent=27 // pred_check_branch
            %139 = sbr.rel (0) target = $region32
          $region31: #{badnet_mnist_forward.3} parent=27 // pred_region
            // Predicated region
            $region33: #{badnet_mnist_forward.3} parent=31 // pred_check
              _
            $region34: #{badnet_mnist_forward.3} parent=31 // pred_check_branch
              %141 = sbr.rel target = $region36
            $region35: #{badnet_mnist_forward.3} parent=31 // pred_region
              // Predicated region
              $region48: #{badnet_mnist_forward.3} parent=35 // pred_check
                _
              $region49: #{badnet_mnist_forward.3} parent=35 // pred_check_branch
                %298 = sbr.rel (0) target = $region51
              $region50: #{badnet_mnist_forward.3} parent=35 // pred_region
                loop: start=0, step=1, limit=1
                $region52: #{badnet_mnist_forward.3} parent=50 // loop_pre_header
                  _
                $region53: #{badnet_mnist_forward.3} parent=50 // loop_header
                  %s300 = sphi 0, %s304
                  %p301 = scmp.ge.s32.totalorder %s300, 1
                  %s305 = sphi %s137, %s137
                  %s306 = sphi %s134, %s134
                $region54: #{badnet_mnist_forward.3} parent=50 // loop_header_branch
                  %303 = sbr.rel (%p301) target = $region58
                $region55: #{badnet_mnist_forward.3} parent=50 // loop_body
                  _
                $region56: #{badnet_mnist_forward.3} parent=50 // loop_footer
                  %s304 = sadd.s32 1, %s300
                $region57: #{badnet_mnist_forward.3} parent=50 // loop_footer_branch
                  %299 = sbr.rel target = $region53
                $region58: #{badnet_mnist_forward.3} parent=50 // loop_exit
                  _
                loop: start=0, step=1, limit=1
                $region59: #{badnet_mnist_forward.3} parent=50 // loop_pre_header
                  _
                $region60: #{badnet_mnist_forward.3} parent=50 // loop_header
                  %s309 = sphi 0, %s313
                  %p310 = scmp.ge.s32.totalorder %s309, 1
                  %s314 = sphi %s137, %s137
                  %s315 = sphi %s134, %s134
                $region61: #{badnet_mnist_forward.3} parent=50 // loop_header_branch
                  %312 = sbr.rel (%p310) target = $region65
                $region62: #{badnet_mnist_forward.3} parent=50 // loop_body
                  %v316 = vld [vmem:[%s314] sm:$0xf]
                  %317 = vst [vmem:[%s315] sm:$0xf] %v316
                  %v318 = vld [vmem:[%s314 + $0x4] sm:$0xf]
                  %319 = vst [vmem:[%s315 + $0x4] sm:$0xf] %v318
                  %v320 = vld [vmem:[%s314 + $0x8] sm:$0xf]
                  %321 = vst [vmem:[%s315 + $0x8] sm:$0xf] %v320
                  %v322 = vld [vmem:[%s314 + $0xc] sm:$0xf]
                  %323 = vst [vmem:[%s315 + $0xc] sm:$0xf] %v322
                  %v324 = vld [vmem:[%s314 + $0x10] sm:$0xf]
                  %325 = vst [vmem:[%s315 + $0x10] sm:$0xf] %v324
                  %v326 = vld [vmem:[%s314 + $0x14] sm:$0xf]
                  %327 = vst [vmem:[%s315 + $0x14] sm:$0xf] %v326
                  %v328 = vld [vmem:[%s314 + $0x18] sm:$0xf]
                  %329 = vst [vmem:[%s315 + $0x18] sm:$0xf] %v328
                  %v330 = vld [vmem:[%s314 + $0x1c] sm:$0xf]
                  %331 = vst [vmem:[%s315 + $0x1c] sm:$0xf] %v330
                  %v332 = vld [vmem:[%s314 + $0x20] sm:$0xf]
                  %333 = vst [vmem:[%s315 + $0x20] sm:$0xf] %v332
                  %v334 = vld [vmem:[%s314 + $0x24] sm:$0xf]
                  %335 = vst [vmem:[%s315 + $0x24] sm:$0xf] %v334
                  %v336 = vld [vmem:[%s314 + $0x28] sm:$0xf]
                  %337 = vst [vmem:[%s315 + $0x28] sm:$0xf] %v336
                  %v338 = vld [vmem:[%s314 + $0x2c] sm:$0xf]
                  %339 = vst [vmem:[%s315 + $0x2c] sm:$0xf] %v338
                  %v340 = vld [vmem:[%s314 + $0x30] sm:$0xf]
                  %341 = vst [vmem:[%s315 + $0x30] sm:$0xf] %v340
                  %v342 = vld [vmem:[%s314 + $0x34] sm:$0xf]
                  %343 = vst [vmem:[%s315 + $0x34] sm:$0xf] %v342
                  %v344 = vld [vmem:[%s314 + $0x38] sm:$0xf]
                  %345 = vst [vmem:[%s315 + $0x38] sm:$0xf] %v344
                  %v346 = vld [vmem:[%s314 + $0x3c] sm:$0xf]
                  %347 = vst [vmem:[%s315 + $0x3c] sm:$0xf] %v346
                  %v348 = vld [vmem:[%s314 + $0x40] sm:$0xf]
                  %349 = vst [vmem:[%s315 + $0x40] sm:$0xf] %v348
                  %v350 = vld [vmem:[%s314 + $0x44] sm:$0xf]
                  %351 = vst [vmem:[%s315 + $0x44] sm:$0xf] %v350
                  %v352 = vld [vmem:[%s314 + $0x90] sm:$0xf]
                  %353 = vst [vmem:[%s315 + $0x48] sm:$0xf] %v352
                  %v354 = vld [vmem:[%s314 + $0x94] sm:$0xf]
                  %355 = vst [vmem:[%s315 + $0x4c] sm:$0xf] %v354
                  %v356 = vld [vmem:[%s314 + $0x98] sm:$0xf]
                  %357 = vst [vmem:[%s315 + $0x50] sm:$0xf] %v356
                  %v358 = vld [vmem:[%s314 + $0x9c] sm:$0xf]
                  %359 = vst [vmem:[%s315 + $0x54] sm:$0xf] %v358
                  %v360 = vld [vmem:[%s314 + $0xa0] sm:$0xf]
                  %361 = vst [vmem:[%s315 + $0x58] sm:$0xf] %v360
                  %v362 = vld [vmem:[%s314 + $0xa4] sm:$0xf]
                  %363 = vst [vmem:[%s315 + $0x5c] sm:$0xf] %v362
                  %v364 = vld [vmem:[%s314 + $0xa8] sm:$0xf]
                  %365 = vst [vmem:[%s315 + $0x60] sm:$0xf] %v364
                  %v366 = vld [vmem:[%s314 + $0xac] sm:$0xf]
                  %367 = vst [vmem:[%s315 + $0x64] sm:$0xf] %v366
                  %v368 = vld [vmem:[%s314 + $0xb0] sm:$0xf]
                  %369 = vst [vmem:[%s315 + $0x68] sm:$0xf] %v368
                  %v370 = vld [vmem:[%s314 + $0xb4] sm:$0xf]
                  %371 = vst [vmem:[%s315 + $0x6c] sm:$0xf] %v370
                  %v372 = vld [vmem:[%s314 + $0xb8] sm:$0xf]
                  %373 = vst [vmem:[%s315 + $0x70] sm:$0xf] %v372
                  %v374 = vld [vmem:[%s314 + $0xbc] sm:$0xf]
                  %375 = vst [vmem:[%s315 + $0x74] sm:$0xf] %v374
                  %v376 = vld [vmem:[%s314 + $0xc0] sm:$0xf]
                  %377 = vst [vmem:[%s315 + $0x78] sm:$0xf] %v376
                  %v378 = vld [vmem:[%s314 + $0xc4] sm:$0xf]
                  %379 = vst [vmem:[%s315 + $0x7c] sm:$0xf] %v378
                  %v380 = vld [vmem:[%s314 + $0xc8] sm:$0xf]
                  %381 = vst [vmem:[%s315 + $0x80] sm:$0xf] %v380
                  %v382 = vld [vmem:[%s314 + $0xcc] sm:$0xf]
                  %383 = vst [vmem:[%s315 + $0x84] sm:$0xf] %v382
                  %v384 = vld [vmem:[%s314 + $0xd0] sm:$0xf]
                  %385 = vst [vmem:[%s315 + $0x88] sm:$0xf] %v384
                  %v386 = vld [vmem:[%s314 + $0xd4] sm:$0xf]
                  %387 = vst [vmem:[%s315 + $0x8c] sm:$0xf] %v386
                  %v388 = vld [vmem:[%s314 + $0x120] sm:$0xf]
                  %389 = vst [vmem:[%s315 + $0x90] sm:$0xf] %v388
                  %v390 = vld [vmem:[%s314 + $0x124] sm:$0xf]
                  %391 = vst [vmem:[%s315 + $0x94] sm:$0xf] %v390
                  %v392 = vld [vmem:[%s314 + $0x128] sm:$0xf]
                  %393 = vst [vmem:[%s315 + $0x98] sm:$0xf] %v392
                  %v394 = vld [vmem:[%s314 + $0x12c] sm:$0xf]
                  %395 = vst [vmem:[%s315 + $0x9c] sm:$0xf] %v394
                  %v396 = vld [vmem:[%s314 + $0x130] sm:$0xf]
                  %397 = vst [vmem:[%s315 + $0xa0] sm:$0xf] %v396
                  %v398 = vld [vmem:[%s314 + $0x134] sm:$0xf]
                  %399 = vst [vmem:[%s315 + $0xa4] sm:$0xf] %v398
                  %v400 = vld [vmem:[%s314 + $0x138] sm:$0xf]
                  %401 = vst [vmem:[%s315 + $0xa8] sm:$0xf] %v400
                  %v402 = vld [vmem:[%s314 + $0x13c] sm:$0xf]
                  %403 = vst [vmem:[%s315 + $0xac] sm:$0xf] %v402
                  %v404 = vld [vmem:[%s314 + $0x140] sm:$0xf]
                  %405 = vst [vmem:[%s315 + $0xb0] sm:$0xf] %v404
                  %v406 = vld [vmem:[%s314 + $0x144] sm:$0xf]
                  %407 = vst [vmem:[%s315 + $0xb4] sm:$0xf] %v406
                  %v408 = vld [vmem:[%s314 + $0x148] sm:$0xf]
                  %409 = vst [vmem:[%s315 + $0xb8] sm:$0xf] %v408
                  %v410 = vld [vmem:[%s314 + $0x14c] sm:$0xf]
                  %411 = vst [vmem:[%s315 + $0xbc] sm:$0xf] %v410
                  %v412 = vld [vmem:[%s314 + $0x150] sm:$0xf]
                  %413 = vst [vmem:[%s315 + $0xc0] sm:$0xf] %v412
                  %v414 = vld [vmem:[%s314 + $0x154] sm:$0xf]
                  %415 = vst [vmem:[%s315 + $0xc4] sm:$0xf] %v414
                  %v416 = vld [vmem:[%s314 + $0x158] sm:$0xf]
                  %417 = vst [vmem:[%s315 + $0xc8] sm:$0xf] %v416
                  %v418 = vld [vmem:[%s314 + $0x15c] sm:$0xf]
                  %419 = vst [vmem:[%s315 + $0xcc] sm:$0xf] %v418
                  %v420 = vld [vmem:[%s314 + $0x160] sm:$0xf]
                  %421 = vst [vmem:[%s315 + $0xd0] sm:$0xf] %v420
                  %v422 = vld [vmem:[%s314 + $0x164] sm:$0xf]
                  %423 = vst [vmem:[%s315 + $0xd4] sm:$0xf] %v422
                  %v424 = vld [vmem:[%s314 + $0x1b0] sm:$0xf]
                  %425 = vst [vmem:[%s315 + $0xd8] sm:$0xf] %v424
                  %v426 = vld [vmem:[%s314 + $0x1b4] sm:$0xf]
                  %427 = vst [vmem:[%s315 + $0xdc] sm:$0xf] %v426
                  %v428 = vld [vmem:[%s314 + $0x1b8] sm:$0xf]
                  %429 = vst [vmem:[%s315 + $0xe0] sm:$0xf] %v428
                  %v430 = vld [vmem:[%s314 + $0x1bc] sm:$0xf]
                  %431 = vst [vmem:[%s315 + $0xe4] sm:$0xf] %v430
                  %v432 = vld [vmem:[%s314 + $0x1c0] sm:$0xf]
                  %433 = vst [vmem:[%s315 + $0xe8] sm:$0xf] %v432
                  %v434 = vld [vmem:[%s314 + $0x1c4] sm:$0xf]
                  %435 = vst [vmem:[%s315 + $0xec] sm:$0xf] %v434
                  %v436 = vld [vmem:[%s314 + $0x1c8] sm:$0xf]
                  %437 = vst [vmem:[%s315 + $0xf0] sm:$0xf] %v436
                  %v438 = vld [vmem:[%s314 + $0x1cc] sm:$0xf]
                  %439 = vst [vmem:[%s315 + $0xf4] sm:$0xf] %v438
                  %v440 = vld [vmem:[%s314 + $0x1d0] sm:$0xf]
                  %441 = vst [vmem:[%s315 + $0xf8] sm:$0xf] %v440
                  %v442 = vld [vmem:[%s314 + $0x1d4] sm:$0xf]
                  %443 = vst [vmem:[%s315 + $0xfc] sm:$0xf] %v442
                  %v444 = vld [vmem:[%s314 + $0x1d8] sm:$0xf]
                  %445 = vst [vmem:[%s315 + $0x100] sm:$0xf] %v444
                  %v446 = vld [vmem:[%s314 + $0x1dc] sm:$0xf]
                  %447 = vst [vmem:[%s315 + $0x104] sm:$0xf] %v446
                  %v448 = vld [vmem:[%s314 + $0x1e0] sm:$0xf]
                  %449 = vst [vmem:[%s315 + $0x108] sm:$0xf] %v448
                  %v450 = vld [vmem:[%s314 + $0x1e4] sm:$0xf]
                  %451 = vst [vmem:[%s315 + $0x10c] sm:$0xf] %v450
                  %v452 = vld [vmem:[%s314 + $0x1e8] sm:$0xf]
                  %453 = vst [vmem:[%s315 + $0x110] sm:$0xf] %v452
                  %v454 = vld [vmem:[%s314 + $0x1ec] sm:$0xf]
                  %455 = vst [vmem:[%s315 + $0x114] sm:$0xf] %v454
                  %v456 = vld [vmem:[%s314 + $0x1f0] sm:$0xf]
                  %457 = vst [vmem:[%s315 + $0x118] sm:$0xf] %v456
                  %v458 = vld [vmem:[%s314 + $0x1f4] sm:$0xf]
                  %459 = vst [vmem:[%s315 + $0x11c] sm:$0xf] %v458
                $region63: #{badnet_mnist_forward.3} parent=50 // loop_footer
                  %s313 = sadd.s32 1, %s309
                $region64: #{badnet_mnist_forward.3} parent=50 // loop_footer_branch
                  %308 = sbr.rel target = $region60
                $region65: #{badnet_mnist_forward.3} parent=50 // loop_exit
                  _
              $region51: #{badnet_mnist_forward.3} parent=35 // pred_fallthru
                _
            $region36: #{badnet_mnist_forward.3} parent=31 // pred_fallthru
              _
            // Predicated region
            $region37: #{badnet_mnist_forward.3} parent=31 // pred_check
              _
            $region38: #{badnet_mnist_forward.3} parent=31 // pred_check_branch
              %143 = sbr.rel (0) target = $region40
            $region39: #{badnet_mnist_forward.3} parent=31 // pred_region
              loop: start=0, step=1, limit=1
              $region41: #{badnet_mnist_forward.3} parent=39 // loop_pre_header
                _
              $region42: #{badnet_mnist_forward.3} parent=39 // loop_header
                %s146 = sphi 0, %s150
                %p147 = scmp.ge.s32.totalorder %s146, 1
                %s151 = sphi %s137, %s137
                %s152 = sphi %s134, %s134
              $region43: #{badnet_mnist_forward.3} parent=39 // loop_header_branch
                %149 = sbr.rel (%p147) target = $region47
              $region44: #{badnet_mnist_forward.3} parent=39 // loop_body
                %v153 = vld [vmem:[%s151] sm:$0xf]
                %154 = vst [vmem:[%s152] sm:$0xf] %v153
                %v155 = vld [vmem:[%s151 + $0x4] sm:$0xf]
                %156 = vst [vmem:[%s152 + $0x4] sm:$0xf] %v155
                %v157 = vld [vmem:[%s151 + $0x8] sm:$0xf]
                %158 = vst [vmem:[%s152 + $0x8] sm:$0xf] %v157
                %v159 = vld [vmem:[%s151 + $0xc] sm:$0xf]
                %160 = vst [vmem:[%s152 + $0xc] sm:$0xf] %v159
                %v161 = vld [vmem:[%s151 + $0x10] sm:$0xf]
                %162 = vst [vmem:[%s152 + $0x10] sm:$0xf] %v161
                %v163 = vld [vmem:[%s151 + $0x14] sm:$0xf]
                %164 = vst [vmem:[%s152 + $0x14] sm:$0xf] %v163
                %v165 = vld [vmem:[%s151 + $0x18] sm:$0xf]
                %166 = vst [vmem:[%s152 + $0x18] sm:$0xf] %v165
                %v167 = vld [vmem:[%s151 + $0x1c] sm:$0xf]
                %168 = vst [vmem:[%s152 + $0x1c] sm:$0xf] %v167
                %v169 = vld [vmem:[%s151 + $0x20] sm:$0xf]
                %170 = vst [vmem:[%s152 + $0x20] sm:$0xf] %v169
                %v171 = vld [vmem:[%s151 + $0x24] sm:$0xf]
                %172 = vst [vmem:[%s152 + $0x24] sm:$0xf] %v171
                %v173 = vld [vmem:[%s151 + $0x28] sm:$0xf]
                %174 = vst [vmem:[%s152 + $0x28] sm:$0xf] %v173
                %v175 = vld [vmem:[%s151 + $0x2c] sm:$0xf]
                %176 = vst [vmem:[%s152 + $0x2c] sm:$0xf] %v175
                %v177 = vld [vmem:[%s151 + $0x30] sm:$0xf]
                %178 = vst [vmem:[%s152 + $0x30] sm:$0xf] %v177
                %v179 = vld [vmem:[%s151 + $0x34] sm:$0xf]
                %180 = vst [vmem:[%s152 + $0x34] sm:$0xf] %v179
                %v181 = vld [vmem:[%s151 + $0x38] sm:$0xf]
                %182 = vst [vmem:[%s152 + $0x38] sm:$0xf] %v181
                %v183 = vld [vmem:[%s151 + $0x3c] sm:$0xf]
                %184 = vst [vmem:[%s152 + $0x3c] sm:$0xf] %v183
                %v185 = vld [vmem:[%s151 + $0x40] sm:$0xf]
                %186 = vst [vmem:[%s152 + $0x40] sm:$0xf] %v185
                %v187 = vld [vmem:[%s151 + $0x44] sm:$0xf]
                %188 = vst [vmem:[%s152 + $0x44] sm:$0xf] %v187
                %v189 = vld [vmem:[%s151 + $0x90] sm:$0xf]
                %190 = vst [vmem:[%s152 + $0x48] sm:$0xf] %v189
                %v191 = vld [vmem:[%s151 + $0x94] sm:$0xf]
                %192 = vst [vmem:[%s152 + $0x4c] sm:$0xf] %v191
                %v193 = vld [vmem:[%s151 + $0x98] sm:$0xf]
                %194 = vst [vmem:[%s152 + $0x50] sm:$0xf] %v193
                %v195 = vld [vmem:[%s151 + $0x9c] sm:$0xf]
                %196 = vst [vmem:[%s152 + $0x54] sm:$0xf] %v195
                %v197 = vld [vmem:[%s151 + $0xa0] sm:$0xf]
                %198 = vst [vmem:[%s152 + $0x58] sm:$0xf] %v197
                %v199 = vld [vmem:[%s151 + $0xa4] sm:$0xf]
                %200 = vst [vmem:[%s152 + $0x5c] sm:$0xf] %v199
                %v201 = vld [vmem:[%s151 + $0xa8] sm:$0xf]
                %202 = vst [vmem:[%s152 + $0x60] sm:$0xf] %v201
                %v203 = vld [vmem:[%s151 + $0xac] sm:$0xf]
                %204 = vst [vmem:[%s152 + $0x64] sm:$0xf] %v203
                %v205 = vld [vmem:[%s151 + $0xb0] sm:$0xf]
                %206 = vst [vmem:[%s152 + $0x68] sm:$0xf] %v205
                %v207 = vld [vmem:[%s151 + $0xb4] sm:$0xf]
                %208 = vst [vmem:[%s152 + $0x6c] sm:$0xf] %v207
                %v209 = vld [vmem:[%s151 + $0xb8] sm:$0xf]
                %210 = vst [vmem:[%s152 + $0x70] sm:$0xf] %v209
                %v211 = vld [vmem:[%s151 + $0xbc] sm:$0xf]
                %212 = vst [vmem:[%s152 + $0x74] sm:$0xf] %v211
                %v213 = vld [vmem:[%s151 + $0xc0] sm:$0xf]
                %214 = vst [vmem:[%s152 + $0x78] sm:$0xf] %v213
                %v215 = vld [vmem:[%s151 + $0xc4] sm:$0xf]
                %216 = vst [vmem:[%s152 + $0x7c] sm:$0xf] %v215
                %v217 = vld [vmem:[%s151 + $0xc8] sm:$0xf]
                %218 = vst [vmem:[%s152 + $0x80] sm:$0xf] %v217
                %v219 = vld [vmem:[%s151 + $0xcc] sm:$0xf]
                %220 = vst [vmem:[%s152 + $0x84] sm:$0xf] %v219
                %v221 = vld [vmem:[%s151 + $0xd0] sm:$0xf]
                %222 = vst [vmem:[%s152 + $0x88] sm:$0xf] %v221
                %v223 = vld [vmem:[%s151 + $0xd4] sm:$0xf]
                %224 = vst [vmem:[%s152 + $0x8c] sm:$0xf] %v223
                %v225 = vld [vmem:[%s151 + $0x120] sm:$0xf]
                %226 = vst [vmem:[%s152 + $0x90] sm:$0xf] %v225
                %v227 = vld [vmem:[%s151 + $0x124] sm:$0xf]
                %228 = vst [vmem:[%s152 + $0x94] sm:$0xf] %v227
                %v229 = vld [vmem:[%s151 + $0x128] sm:$0xf]
                %230 = vst [vmem:[%s152 + $0x98] sm:$0xf] %v229
                %v231 = vld [vmem:[%s151 + $0x12c] sm:$0xf]
                %232 = vst [vmem:[%s152 + $0x9c] sm:$0xf] %v231
                %v233 = vld [vmem:[%s151 + $0x130] sm:$0xf]
                %234 = vst [vmem:[%s152 + $0xa0] sm:$0xf] %v233
                %v235 = vld [vmem:[%s151 + $0x134] sm:$0xf]
                %236 = vst [vmem:[%s152 + $0xa4] sm:$0xf] %v235
                %v237 = vld [vmem:[%s151 + $0x138] sm:$0xf]
                %238 = vst [vmem:[%s152 + $0xa8] sm:$0xf] %v237
                %v239 = vld [vmem:[%s151 + $0x13c] sm:$0xf]
                %240 = vst [vmem:[%s152 + $0xac] sm:$0xf] %v239
                %v241 = vld [vmem:[%s151 + $0x140] sm:$0xf]
                %242 = vst [vmem:[%s152 + $0xb0] sm:$0xf] %v241
                %v243 = vld [vmem:[%s151 + $0x144] sm:$0xf]
                %244 = vst [vmem:[%s152 + $0xb4] sm:$0xf] %v243
                %v245 = vld [vmem:[%s151 + $0x148] sm:$0xf]
                %246 = vst [vmem:[%s152 + $0xb8] sm:$0xf] %v245
                %v247 = vld [vmem:[%s151 + $0x14c] sm:$0xf]
                %248 = vst [vmem:[%s152 + $0xbc] sm:$0xf] %v247
                %v249 = vld [vmem:[%s151 + $0x150] sm:$0xf]
                %250 = vst [vmem:[%s152 + $0xc0] sm:$0xf] %v249
                %v251 = vld [vmem:[%s151 + $0x154] sm:$0xf]
                %252 = vst [vmem:[%s152 + $0xc4] sm:$0xf] %v251
                %v253 = vld [vmem:[%s151 + $0x158] sm:$0xf]
                %254 = vst [vmem:[%s152 + $0xc8] sm:$0xf] %v253
                %v255 = vld [vmem:[%s151 + $0x15c] sm:$0xf]
                %256 = vst [vmem:[%s152 + $0xcc] sm:$0xf] %v255
                %v257 = vld [vmem:[%s151 + $0x160] sm:$0xf]
                %258 = vst [vmem:[%s152 + $0xd0] sm:$0xf] %v257
                %v259 = vld [vmem:[%s151 + $0x164] sm:$0xf]
                %260 = vst [vmem:[%s152 + $0xd4] sm:$0xf] %v259
                %v261 = vld [vmem:[%s151 + $0x1b0] sm:$0xf]
                %262 = vst [vmem:[%s152 + $0xd8] sm:$0xf] %v261
                %v263 = vld [vmem:[%s151 + $0x1b4] sm:$0xf]
                %264 = vst [vmem:[%s152 + $0xdc] sm:$0xf] %v263
                %v265 = vld [vmem:[%s151 + $0x1b8] sm:$0xf]
                %266 = vst [vmem:[%s152 + $0xe0] sm:$0xf] %v265
                %v267 = vld [vmem:[%s151 + $0x1bc] sm:$0xf]
                %268 = vst [vmem:[%s152 + $0xe4] sm:$0xf] %v267
                %v269 = vld [vmem:[%s151 + $0x1c0] sm:$0xf]
                %270 = vst [vmem:[%s152 + $0xe8] sm:$0xf] %v269
                %v271 = vld [vmem:[%s151 + $0x1c4] sm:$0xf]
                %272 = vst [vmem:[%s152 + $0xec] sm:$0xf] %v271
                %v273 = vld [vmem:[%s151 + $0x1c8] sm:$0xf]
                %274 = vst [vmem:[%s152 + $0xf0] sm:$0xf] %v273
                %v275 = vld [vmem:[%s151 + $0x1cc] sm:$0xf]
                %276 = vst [vmem:[%s152 + $0xf4] sm:$0xf] %v275
                %v277 = vld [vmem:[%s151 + $0x1d0] sm:$0xf]
                %278 = vst [vmem:[%s152 + $0xf8] sm:$0xf] %v277
                %v279 = vld [vmem:[%s151 + $0x1d4] sm:$0xf]
                %280 = vst [vmem:[%s152 + $0xfc] sm:$0xf] %v279
                %v281 = vld [vmem:[%s151 + $0x1d8] sm:$0xf]
                %282 = vst [vmem:[%s152 + $0x100] sm:$0xf] %v281
                %v283 = vld [vmem:[%s151 + $0x1dc] sm:$0xf]
                %284 = vst [vmem:[%s152 + $0x104] sm:$0xf] %v283
                %v285 = vld [vmem:[%s151 + $0x1e0] sm:$0xf]
                %286 = vst [vmem:[%s152 + $0x108] sm:$0xf] %v285
                %v287 = vld [vmem:[%s151 + $0x1e4] sm:$0xf]
                %288 = vst [vmem:[%s152 + $0x10c] sm:$0xf] %v287
                %v289 = vld [vmem:[%s151 + $0x1e8] sm:$0xf]
                %290 = vst [vmem:[%s152 + $0x110] sm:$0xf] %v289
                %v291 = vld [vmem:[%s151 + $0x1ec] sm:$0xf]
                %292 = vst [vmem:[%s152 + $0x114] sm:$0xf] %v291
                %v293 = vld [vmem:[%s151 + $0x1f0] sm:$0xf]
                %294 = vst [vmem:[%s152 + $0x118] sm:$0xf] %v293
                %v295 = vld [vmem:[%s151 + $0x1f4] sm:$0xf]
                %296 = vst [vmem:[%s152 + $0x11c] sm:$0xf] %v295
              $region45: #{badnet_mnist_forward.3} parent=39 // loop_footer
                %s150 = sadd.s32 1, %s146
              $region46: #{badnet_mnist_forward.3} parent=39 // loop_footer_branch
                %145 = sbr.rel target = $region42
              $region47: #{badnet_mnist_forward.3} parent=39 // loop_exit
                _
            $region40: #{badnet_mnist_forward.3} parent=31 // pred_fallthru
              _
          $region32: #{badnet_mnist_forward.3} parent=27 // pred_fallthru
            _
          %460 = vnop
        $region28: #{badnet_mnist_forward.3} parent=23 // pred_fallthru
          _
      $region24: #{badnet_mnist_forward.3} parent=5 // pred_fallthru
        _
      %p461 = scmp.le.s32.totalorder 1, %s9
      %p462 = scmp.lt.s32.totalorder %s9, 3
      %p463 = pnand %p461, %p462
      %p464 = pneg %p463
      // Predicated region
      $region66: #{badnet_mnist_forward.3} parent=5 // pred_check
        _
      $region67: #{badnet_mnist_forward.3} parent=5 // pred_check_branch
        %466 = sbr.rel (%p463) target = $region69
      $region68: #{badnet_mnist_forward.3} parent=5 // pred_region
        %s467 = ssub.s32 %s9, 1
        %s468 = sand.u32 %s22, 1
        %s469 = sand.u32 %s22, 1
        %s470 = smul.addr %s469, 288
        %s471 = scalar_lea.vmem [#allocation2], %s470
        // Predicated region
        $region70: #{badnet_mnist_forward.3} parent=68 // pred_check
          %p472 = pneg %p35
        $region71: #{badnet_mnist_forward.3} parent=68 // pred_check_branch
          %474 = sbr.rel (%p472) target = $region73
        $region72: #{badnet_mnist_forward.3} parent=68 // pred_region
          _
        $region73: #{badnet_mnist_forward.3} parent=68 // pred_fallthru
          _
        %s475 = sand.u32 %s22, 1
        %s476 = sand.u32 %s22, 1
        %s477 = smul.addr %s476, 288
        %s478 = scalar_lea.vmem [#allocation2], %s477
        %p479 = pneg %p35
        %p480 = pneg %p32
        %p481 = pneg %p56
        %p482 = pneg %p53
        %p483 = pneg %p77
        %p484 = pneg %p74
        %p485 = pneg %p103
        %p486 = pneg %p100
        %s487 = smul.u32 18, %s14
        %p488 = scmp.lt.s32.totalorder %s487, 35
        %s489 = scalar_select %p488, %s487, 35
        %s490 = smul.addr %s489, 4
        %s491 = scalar_lea.vmem %s3, %s490
        %s492 = smul.u32 18, %s14
        %s493 = smul.u32 18, %s14
        %p494 = scmp.lt.s32.totalorder %s493, 35
        %s495 = scalar_select %p494, %s493, 35
        %s496 = smul.addr %s495, 4
        %s497 = scalar_lea.vmem %s3, %s496
        %s498 = smul.u32 18, %s14
        %v500 = vld [vmem:[%s1] sm:$0xf]
        %v501 = vld [vmem:[%s1 + $0x4] sm:$0xf]
        %v502 = vld [vmem:[%s1 + $0x8] sm:$0xf]
        %v503 = vld [vmem:[%s1 + $0xc] sm:$0x1]
        %v504 = vld [vmem:[%s471] sm:$0xf]
        %v505 = vld [vmem:[%s471 + $0x4] sm:$0xf]
        %v506 = vld [vmem:[%s471 + $0x8] sm:$0xf]
        %v507 = vld [vmem:[%s471 + $0xc] sm:$0xf]
        %v508 = vld [vmem:[%s471 + $0x10] sm:$0xf]
        %v509 = vld [vmem:[%s471 + $0x14] sm:$0xf]
        %v510 = vld [vmem:[%s471 + $0x18] sm:$0xf]
        %v511 = vld [vmem:[%s471 + $0x1c] sm:$0xf]
        %v512 = vld [vmem:[%s471 + $0x20] sm:$0xf]
        %v513 = vld [vmem:[%s471 + $0x24] sm:$0xf]
        %v514 = vld [vmem:[%s471 + $0x28] sm:$0xf]
        %v515 = vld [vmem:[%s471 + $0x2c] sm:$0xf]
        %v516 = vld [vmem:[%s471 + $0x30] sm:$0xf]
        %v517 = vld [vmem:[%s471 + $0x34] sm:$0xf]
        %v518 = vld [vmem:[%s471 + $0x38] sm:$0xf]
        %v519 = vld [vmem:[%s471 + $0x3c] sm:$0xf]
        %v520 = vld [vmem:[%s471 + $0x40] sm:$0xf]
        %v521 = vld [vmem:[%s471 + $0x44] sm:$0xf]
        %v540 = vunpack.c.l.b16 %v504
        %v541 = vunpack.c.l.b16 %v505
        %v542 = vunpack.c.l.b16 %v506
        %v543 = vunpack.c.l.b16 %v507
        %v544 = vunpack.c.l.b16 %v508
        %v545 = vunpack.c.l.b16 %v509
        %v546 = vunpack.c.l.b16 %v510
        %v547 = vunpack.c.l.b16 %v511
        %v548 = vunpack.c.l.b16 %v512
        %v549 = vunpack.c.l.b16 %v513
        %v550 = vunpack.c.l.b16 %v514
        %v551 = vunpack.c.l.b16 %v515
        %v552 = vunpack.c.l.b16 %v516
        %v553 = vunpack.c.l.b16 %v517
        %v554 = vunpack.c.l.b16 %v518
        %v555 = vunpack.c.l.b16 %v519
        %v556 = vunpack.c.l.b16 %v520
        %v557 = vunpack.c.l.b16 %v521
        %v558 = vpack.c.b16 %v541, %v540
        %v559 = vpack.c.b16 %v543, %v542
        %v560 = vpack.c.b16 %v545, %v544
        %v561 = vpack.c.b16 %v547, %v546
        %v562 = vpack.c.b16 %v549, %v548
        %v563 = vpack.c.b16 %v551, %v550
        %v564 = vpack.c.b16 %v553, %v552
        %v565 = vpack.c.b16 %v555, %v554
        %v566 = vpack.c.b16 %v557, %v556
        %v571 = vunpack.c.l.b16 %v500
        %v572 = vunpack.c.l.b16 %v501
        %v573 = vunpack.c.l.b16 %v502
        %v574 = vunpack.c.l.b16 %v503
        %v575 = vpack.c.b16 %v572, %v571
        %v576 = vpack.c.b16 %v574, %v573
        %vm578 = vcmask 203776
        %v580 = vsel %vm578, %v558, 0
        %v583 = vsel %vm578, %v559, 0
        %v586 = vsel %vm578, %v560, 0
        %v589 = vsel %vm578, %v561, 0
        %v592 = vsel %vm578, %v562, 0
        %v595 = vsel %vm578, %v563, 0
        %v598 = vsel %vm578, %v564, 0
        %v601 = vsel %vm578, %v565, 0
        %v604 = vsel %vm578, %v566, 0
        %vm606 = vcmask 1043456
        %vm607 = vcmask 1044480
        %v608 = vsel %vm606, 4294967295, 65535
        %v609 = vsel %vm607, %v608, 0
        %v611 = vand.u32 %v576, %v609
        %613 = vmatprep.subr.bf16.mxu0 0
        %614 = vmatpush1.bf16.msra.mxu0 %v575
        %615 = vmatprep.subr.bf16.mxu0 0
        %616 = vmatpush1.bf16.msra.mxu0 %v611
        %617 = vmatprep.subr.bf16.mxu0 0
        %618 = vmatpush1.bf16.msra.mxu0 0
        %619 = vmatprep.subr.bf16.mxu0 0
        %620 = vmatpush1.bf16.msra.mxu0 0
        %621 = vmatprep.subr.bf16.mxu0 0
        %622 = vmatpush1.bf16.msra.mxu0 0
        %623 = vmatprep.subr.bf16.mxu0 0
        %624 = vmatpush1.bf16.msra.mxu0 0
        %625 = vmatprep.subr.bf16.mxu0 0
        %626 = vmatpush1.bf16.msra.mxu0 0
        %627 = vmatprep.subr.bf16.mxu0 0
        %628 = vmatpush1.bf16.msra.mxu0 0
        %629 = vmatprep.subr.bf16.mxu0 0
        %630 = vmatpush1.bf16.msra.mxu0 0
        %631 = vmatprep.subr.bf16.mxu0 0
        %632 = vmatpush1.bf16.msra.mxu0 0
        %633 = vmatprep.subr.bf16.mxu0 0
        %634 = vmatpush1.bf16.msra.mxu0 0
        %635 = vmatprep.subr.bf16.mxu0 0
        %636 = vmatpush1.bf16.msra.mxu0 0
        %637 = vmatprep.subr.bf16.mxu0 0
        %638 = vmatpush1.bf16.msra.mxu0 0
        %639 = vmatprep.subr.bf16.mxu0 0
        %640 = vmatpush1.bf16.msra.mxu0 0
        %641 = vmatprep.subr.bf16.mxu0 0
        %642 = vmatpush1.bf16.msra.mxu0 0
        %643 = vmatprep.subr.bf16.mxu0 0
        %644 = vmatpush1.bf16.msra.mxu0 0
        %645 = vmatprep.mubr.bf16.mxu0 0
        %646 = vmatmul.mubr.bf16.gmra.mrb[0].mxu0 %v580
        %v647 = vpop.f32.mrb[0].mxu0
        %v648 = vadd.f32 0.0, %v647
        %v649 = vpop.f32.mrb[0].mxu0
        %v650 = vpop.f32.mrb[0].mxu0
        %v651 = vadd.f32 0.0, %v650
        %v652 = vpop.f32.mrb[0].mxu0
        %653 = vmatprep.mubr.bf16.mxu0 0
        %654 = vmatmul.mubr.bf16.gmra.mrb[0].mxu0 %v583
        %v655 = vpop.f32.mrb[0].mxu0
        %v656 = vadd.f32 0.0, %v655
        %v657 = vpop.f32.mrb[0].mxu0
        %v658 = vpop.f32.mrb[0].mxu0
        %v659 = vadd.f32 0.0, %v658
        %v660 = vpop.f32.mrb[0].mxu0
        %661 = vmatprep.mubr.bf16.mxu0 0
        %662 = vmatmul.mubr.bf16.gmra.mrb[0].mxu0 %v586
        %v663 = vpop.f32.mrb[0].mxu0
        %v664 = vadd.f32 0.0, %v663
        %v665 = vpop.f32.mrb[0].mxu0
        %v666 = vpop.f32.mrb[0].mxu0
        %v667 = vadd.f32 0.0, %v666
        %v668 = vpop.f32.mrb[0].mxu0
        %669 = vmatprep.mubr.bf16.mxu0 0
        %670 = vmatmul.mubr.bf16.gmra.mrb[0].mxu0 %v589
        %v671 = vpop.f32.mrb[0].mxu0
        %v672 = vadd.f32 0.0, %v671
        %v673 = vpop.f32.mrb[0].mxu0
        %v674 = vpop.f32.mrb[0].mxu0
        %v675 = vadd.f32 0.0, %v674
        %v676 = vpop.f32.mrb[0].mxu0
        %677 = vmatprep.mubr.bf16.mxu0 0
        %678 = vmatmul.mubr.bf16.gmra.mrb[0].mxu0 %v592
        %v679 = vpop.f32.mrb[0].mxu0
        %v680 = vadd.f32 0.0, %v679
        %v681 = vpop.f32.mrb[0].mxu0
        %v682 = vpop.f32.mrb[0].mxu0
        %v683 = vadd.f32 0.0, %v682
        %v684 = vpop.f32.mrb[0].mxu0
        %685 = vmatprep.mubr.bf16.mxu0 0
        %686 = vmatmul.mubr.bf16.gmra.mrb[0].mxu0 %v595
        %v687 = vpop.f32.mrb[0].mxu0
        %v688 = vadd.f32 0.0, %v687
        %v689 = vpop.f32.mrb[0].mxu0
        %v690 = vpop.f32.mrb[0].mxu0
        %v691 = vadd.f32 0.0, %v690
        %v692 = vpop.f32.mrb[0].mxu0
        %693 = vmatprep.mubr.bf16.mxu0 0
        %694 = vmatmul.mubr.bf16.gmra.mrb[0].mxu0 %v598
        %v695 = vpop.f32.mrb[0].mxu0
        %v696 = vadd.f32 0.0, %v695
        %v697 = vpop.f32.mrb[0].mxu0
        %v698 = vpop.f32.mrb[0].mxu0
        %v699 = vadd.f32 0.0, %v698
        %v700 = vpop.f32.mrb[0].mxu0
        %701 = vmatprep.mubr.bf16.mxu0 0
        %702 = vmatmul.mubr.bf16.gmra.mrb[0].mxu0 %v601
        %v703 = vpop.f32.mrb[0].mxu0
        %v704 = vadd.f32 0.0, %v703
        %v705 = vpop.f32.mrb[0].mxu0
        %v706 = vpop.f32.mrb[0].mxu0
        %v707 = vadd.f32 0.0, %v706
        %v708 = vpop.f32.mrb[0].mxu0
        %709 = vmatprep.mubr.bf16.mxu0 0
        %710 = vmatmul.mubr.bf16.gmra.mrb[0].mxu0 %v604
        %v711 = vpop.f32.mrb[0].mxu0
        %v712 = vadd.f32 0.0, %v711
        %v713 = vpop.f32.mrb[0].mxu0
        %v714 = vpop.f32.mrb[0].mxu0
        %v715 = vadd.f32 0.0, %v714
        %v716 = vpop.f32.mrb[0].mxu0
        %717 = vdwg.mxu0
        %s718 = scalar_lea.vmem %s471, 72 [#allocation2]
        %v719 = vld [vmem:[%s718] sm:$0xf]
        %v720 = vld [vmem:[%s718 + $0x4] sm:$0xf]
        %v721 = vld [vmem:[%s718 + $0x8] sm:$0xf]
        %v722 = vld [vmem:[%s718 + $0xc] sm:$0xf]
        %v723 = vld [vmem:[%s718 + $0x10] sm:$0xf]
        %v724 = vld [vmem:[%s718 + $0x14] sm:$0xf]
        %v725 = vld [vmem:[%s718 + $0x18] sm:$0xf]
        %v726 = vld [vmem:[%s718 + $0x1c] sm:$0xf]
        %v727 = vld [vmem:[%s718 + $0x20] sm:$0xf]
        %v728 = vld [vmem:[%s718 + $0x24] sm:$0xf]
        %v729 = vld [vmem:[%s718 + $0x28] sm:$0xf]
        %v730 = vld [vmem:[%s718 + $0x2c] sm:$0xf]
        %v731 = vld [vmem:[%s718 + $0x30] sm:$0xf]
        %v732 = vld [vmem:[%s718 + $0x34] sm:$0xf]
        %v733 = vld [vmem:[%s718 + $0x38] sm:$0xf]
        %v734 = vld [vmem:[%s718 + $0x3c] sm:$0xf]
        %v735 = vld [vmem:[%s718 + $0x40] sm:$0xf]
        %v736 = vld [vmem:[%s718 + $0x44] sm:$0xf]
        %v755 = vunpack.c.l.b16 %v719
        %v756 = vunpack.c.l.b16 %v720
        %v757 = vunpack.c.l.b16 %v721
        %v758 = vunpack.c.l.b16 %v722
        %v759 = vunpack.c.l.b16 %v723
        %v760 = vunpack.c.l.b16 %v724
        %v761 = vunpack.c.l.b16 %v725
        %v762 = vunpack.c.l.b16 %v726
        %v763 = vunpack.c.l.b16 %v727
        %v764 = vunpack.c.l.b16 %v728
        %v765 = vunpack.c.l.b16 %v729
        %v766 = vunpack.c.l.b16 %v730
        %v767 = vunpack.c.l.b16 %v731
        %v768 = vunpack.c.l.b16 %v732
        %v769 = vunpack.c.l.b16 %v733
        %v770 = vunpack.c.l.b16 %v734
        %v771 = vunpack.c.l.b16 %v735
        %v772 = vunpack.c.l.b16 %v736
        %v773 = vpack.c.b16 %v756, %v755
        %v774 = vpack.c.b16 %v758, %v757
        %v775 = vpack.c.b16 %v760, %v759
        %v776 = vpack.c.b16 %v762, %v761
        %v777 = vpack.c.b16 %v764, %v763
        %v778 = vpack.c.b16 %v766, %v765
        %v779 = vpack.c.b16 %v768, %v767
        %v780 = vpack.c.b16 %v770, %v769
        %v781 = vpack.c.b16 %v772, %v771
        %v783 = vsel %vm578, %v773, 0
        %v786 = vsel %vm578, %v774, 0
        %v789 = vsel %vm578, %v775, 0
        %v792 = vsel %vm578, %v776, 0
        %v795 = vsel %vm578, %v777, 0
        %v798 = vsel %vm578, %v778, 0
        %v801 = vsel %vm578, %v779, 0
        %v804 = vsel %vm578, %v780, 0
        %v807 = vsel %vm578, %v781, 0
        %809 = vmatprep.subr.bf16.mxu0 0
        %810 = vmatpush1.bf16.msra.mxu0 %v575
        %811 = vmatprep.subr.bf16.mxu0 0
        %812 = vmatpush1.bf16.msra.mxu0 %v611
        %813 = vmatprep.subr.bf16.mxu0 0
        %814 = vmatpush1.bf16.msra.mxu0 0
        %815 = vmatprep.subr.bf16.mxu0 0
        %816 = vmatpush1.bf16.msra.mxu0 0
        %817 = vmatprep.subr.bf16.mxu0 0
        %818 = vmatpush1.bf16.msra.mxu0 0
        %819 = vmatprep.subr.bf16.mxu0 0
        %820 = vmatpush1.bf16.msra.mxu0 0
        %821 = vmatprep.subr.bf16.mxu0 0
        %822 = vmatpush1.bf16.msra.mxu0 0
        %823 = vmatprep.subr.bf16.mxu0 0
        %824 = vmatpush1.bf16.msra.mxu0 0
        %825 = vmatprep.subr.bf16.mxu0 0
        %826 = vmatpush1.bf16.msra.mxu0 0
        %827 = vmatprep.subr.bf16.mxu0 0
        %828 = vmatpush1.bf16.msra.mxu0 0
        %829 = vmatprep.subr.bf16.mxu0 0
        %830 = vmatpush1.bf16.msra.mxu0 0
        %831 = vmatprep.subr.bf16.mxu0 0
        %832 = vmatpush1.bf16.msra.mxu0 0
        %833 = vmatprep.subr.bf16.mxu0 0
        %834 = vmatpush1.bf16.msra.mxu0 0
        %835 = vmatprep.subr.bf16.mxu0 0
        %836 = vmatpush1.bf16.msra.mxu0 0
        %837 = vmatprep.subr.bf16.mxu0 0
        %838 = vmatpush1.bf16.msra.mxu0 0
        %839 = vmatprep.subr.bf16.mxu0 0
        %840 = vmatpush1.bf16.msra.mxu0 0
        %841 = vmatprep.mubr.bf16.mxu0 0
        %842 = vmatmul.mubr.bf16.gmra.mrb[0].mxu0 %v783
        %v843 = vpop.f32.mrb[0].mxu0
        %v844 = vadd.f32 0.0, %v843
        %v845 = vpop.f32.mrb[0].mxu0
        %v846 = vpop.f32.mrb[0].mxu0
        %v847 = vadd.f32 0.0, %v846
        %v848 = vpop.f32.mrb[0].mxu0
        %849 = vmatprep.mubr.bf16.mxu0 0
        %850 = vmatmul.mubr.bf16.gmra.mrb[0].mxu0 %v786
        %v851 = vpop.f32.mrb[0].mxu0
        %v852 = vadd.f32 0.0, %v851
        %v853 = vpop.f32.mrb[0].mxu0
        %v854 = vpop.f32.mrb[0].mxu0
        %v855 = vadd.f32 0.0, %v854
        %v856 = vpop.f32.mrb[0].mxu0
        %857 = vmatprep.mubr.bf16.mxu0 0
        %858 = vmatmul.mubr.bf16.gmra.mrb[0].mxu0 %v789
        %v859 = vpop.f32.mrb[0].mxu0
        %v860 = vadd.f32 0.0, %v859
        %v861 = vpop.f32.mrb[0].mxu0
        %v862 = vpop.f32.mrb[0].mxu0
        %v863 = vadd.f32 0.0, %v862
        %v864 = vpop.f32.mrb[0].mxu0
        %865 = vmatprep.mubr.bf16.mxu0 0
        %866 = vmatmul.mubr.bf16.gmra.mrb[0].mxu0 %v792
        %v867 = vpop.f32.mrb[0].mxu0
        %v868 = vadd.f32 0.0, %v867
        %v869 = vpop.f32.mrb[0].mxu0
        %v870 = vpop.f32.mrb[0].mxu0
        %v871 = vadd.f32 0.0, %v870
        %v872 = vpop.f32.mrb[0].mxu0
        %873 = vmatprep.mubr.bf16.mxu0 0
        %874 = vmatmul.mubr.bf16.gmra.mrb[0].mxu0 %v795
        %v875 = vpop.f32.mrb[0].mxu0
        %v876 = vadd.f32 0.0, %v875
        %v877 = vpop.f32.mrb[0].mxu0
        %v878 = vpop.f32.mrb[0].mxu0
        %v879 = vadd.f32 0.0, %v878
        %v880 = vpop.f32.mrb[0].mxu0
        %881 = vmatprep.mubr.bf16.mxu0 0
        %882 = vmatmul.mubr.bf16.gmra.mrb[0].mxu0 %v798
        %v883 = vpop.f32.mrb[0].mxu0
        %v884 = vadd.f32 0.0, %v883
        %v885 = vpop.f32.mrb[0].mxu0
        %v886 = vpop.f32.mrb[0].mxu0
        %v887 = vadd.f32 0.0, %v886
        %v888 = vpop.f32.mrb[0].mxu0
        %889 = vmatprep.mubr.bf16.mxu0 0
        %890 = vmatmul.mubr.bf16.gmra.mrb[0].mxu0 %v801
        %v891 = vpop.f32.mrb[0].mxu0
        %v892 = vadd.f32 0.0, %v891
        %v893 = vpop.f32.mrb[0].mxu0
        %v894 = vpop.f32.mrb[0].mxu0
        %v895 = vadd.f32 0.0, %v894
        %v896 = vpop.f32.mrb[0].mxu0
        %897 = vmatprep.mubr.bf16.mxu0 0
        %898 = vmatmul.mubr.bf16.gmra.mrb[0].mxu0 %v804
        %v899 = vpop.f32.mrb[0].mxu0
        %v900 = vadd.f32 0.0, %v899
        %v901 = vpop.f32.mrb[0].mxu0
        %v902 = vpop.f32.mrb[0].mxu0
        %v903 = vadd.f32 0.0, %v902
        %v904 = vpop.f32.mrb[0].mxu0
        %905 = vmatprep.mubr.bf16.mxu0 0
        %906 = vmatmul.mubr.bf16.gmra.mrb[0].mxu0 %v807
        %v907 = vpop.f32.mrb[0].mxu0
        %v908 = vadd.f32 0.0, %v907
        %v909 = vpop.f32.mrb[0].mxu0
        %v910 = vpop.f32.mrb[0].mxu0
        %v911 = vadd.f32 0.0, %v910
        %v912 = vpop.f32.mrb[0].mxu0
        %913 = vdwg.mxu0
        %v914 = vmax.f32 %v648, %v844
        %v915 = vmax.f32 %v651, %v847
        %v916 = vmax.f32 %v656, %v852
        %v917 = vmax.f32 %v659, %v855
        %v918 = vmax.f32 %v664, %v860
        %v919 = vmax.f32 %v667, %v863
        %v920 = vmax.f32 %v672, %v868
        %v921 = vmax.f32 %v675, %v871
        %v922 = vmax.f32 %v680, %v876
        %v923 = vmax.f32 %v683, %v879
        %v924 = vmax.f32 %v688, %v884
        %v925 = vmax.f32 %v691, %v887
        %v926 = vmax.f32 %v696, %v892
        %v927 = vmax.f32 %v699, %v895
        %v928 = vmax.f32 %v704, %v900
        %v929 = vmax.f32 %v707, %v903
        %v930 = vmax.f32 %v712, %v908
        %v931 = vmax.f32 %v715, %v911
        %s932 = scalar_lea.vmem %s471, 144 [#allocation2]
        %v933 = vld [vmem:[%s932] sm:$0xf]
        %v934 = vld [vmem:[%s932 + $0x4] sm:$0xf]
        %v935 = vld [vmem:[%s932 + $0x8] sm:$0xf]
        %v936 = vld [vmem:[%s932 + $0xc] sm:$0xf]
        %v937 = vld [vmem:[%s932 + $0x10] sm:$0xf]
        %v938 = vld [vmem:[%s932 + $0x14] sm:$0xf]
        %v939 = vld [vmem:[%s932 + $0x18] sm:$0xf]
        %v940 = vld [vmem:[%s932 + $0x1c] sm:$0xf]
        %v941 = vld [vmem:[%s932 + $0x20] sm:$0xf]
        %v942 = vld [vmem:[%s932 + $0x24] sm:$0xf]
        %v943 = vld [vmem:[%s932 + $0x28] sm:$0xf]
        %v944 = vld [vmem:[%s932 + $0x2c] sm:$0xf]
        %v945 = vld [vmem:[%s932 + $0x30] sm:$0xf]
        %v946 = vld [vmem:[%s932 + $0x34] sm:$0xf]
        %v947 = vld [vmem:[%s932 + $0x38] sm:$0xf]
        %v948 = vld [vmem:[%s932 + $0x3c] sm:$0xf]
        %v949 = vld [vmem:[%s932 + $0x40] sm:$0xf]
        %v950 = vld [vmem:[%s932 + $0x44] sm:$0xf]
        %v969 = vunpack.c.l.b16 %v933
        %v970 = vunpack.c.l.b16 %v934
        %v971 = vunpack.c.l.b16 %v935
        %v972 = vunpack.c.l.b16 %v936
        %v973 = vunpack.c.l.b16 %v937
        %v974 = vunpack.c.l.b16 %v938
        %v975 = vunpack.c.l.b16 %v939
        %v976 = vunpack.c.l.b16 %v940
        %v977 = vunpack.c.l.b16 %v941
        %v978 = vunpack.c.l.b16 %v942
        %v979 = vunpack.c.l.b16 %v943
        %v980 = vunpack.c.l.b16 %v944
        %v981 = vunpack.c.l.b16 %v945
        %v982 = vunpack.c.l.b16 %v946
        %v983 = vunpack.c.l.b16 %v947
        %v984 = vunpack.c.l.b16 %v948
        %v985 = vunpack.c.l.b16 %v949
        %v986 = vunpack.c.l.b16 %v950
        %v987 = vpack.c.b16 %v970, %v969
        %v988 = vpack.c.b16 %v972, %v971
        %v989 = vpack.c.b16 %v974, %v973
        %v990 = vpack.c.b16 %v976, %v975
        %v991 = vpack.c.b16 %v978, %v977
        %v992 = vpack.c.b16 %v980, %v979
        %v993 = vpack.c.b16 %v982, %v981
        %v994 = vpack.c.b16 %v984, %v983
        %v995 = vpack.c.b16 %v986, %v985
        %v997 = vsel %vm578, %v987, 0
        %v1000 = vsel %vm578, %v988, 0
        %v1003 = vsel %vm578, %v989, 0
        %v1006 = vsel %vm578, %v990, 0
        %v1009 = vsel %vm578, %v991, 0
        %v1012 = vsel %vm578, %v992, 0
        %v1015 = vsel %vm578, %v993, 0
        %v1018 = vsel %vm578, %v994, 0
        %v1021 = vsel %vm578, %v995, 0
        %1023 = vmatprep.subr.bf16.mxu0 0
        %1024 = vmatpush1.bf16.msra.mxu0 %v575
        %1025 = vmatprep.subr.bf16.mxu0 0
        %1026 = vmatpush1.bf16.msra.mxu0 %v611
        %1027 = vmatprep.subr.bf16.mxu0 0
        %1028 = vmatpush1.bf16.msra.mxu0 0
        %1029 = vmatprep.subr.bf16.mxu0 0
        %1030 = vmatpush1.bf16.msra.mxu0 0
        %1031 = vmatprep.subr.bf16.mxu0 0
        %1032 = vmatpush1.bf16.msra.mxu0 0
        %1033 = vmatprep.subr.bf16.mxu0 0
        %1034 = vmatpush1.bf16.msra.mxu0 0
        %1035 = vmatprep.subr.bf16.mxu0 0
        %1036 = vmatpush1.bf16.msra.mxu0 0
        %1037 = vmatprep.subr.bf16.mxu0 0
        %1038 = vmatpush1.bf16.msra.mxu0 0
        %1039 = vmatprep.subr.bf16.mxu0 0
        %1040 = vmatpush1.bf16.msra.mxu0 0
        %1041 = vmatprep.subr.bf16.mxu0 0
        %1042 = vmatpush1.bf16.msra.mxu0 0
        %1043 = vmatprep.subr.bf16.mxu0 0
        %1044 = vmatpush1.bf16.msra.mxu0 0
        %1045 = vmatprep.subr.bf16.mxu0 0
        %1046 = vmatpush1.bf16.msra.mxu0 0
        %1047 = vmatprep.subr.bf16.mxu0 0
        %1048 = vmatpush1.bf16.msra.mxu0 0
        %1049 = vmatprep.subr.bf16.mxu0 0
        %1050 = vmatpush1.bf16.msra.mxu0 0
        %1051 = vmatprep.subr.bf16.mxu0 0
        %1052 = vmatpush1.bf16.msra.mxu0 0
        %1053 = vmatprep.subr.bf16.mxu0 0
        %1054 = vmatpush1.bf16.msra.mxu0 0
        %1055 = vmatprep.mubr.bf16.mxu0 0
        %1056 = vmatmul.mubr.bf16.gmra.mrb[0].mxu0 %v997
        %v1057 = vpop.f32.mrb[0].mxu0
        %v1058 = vadd.f32 0.0, %v1057
        %v1059 = vpop.f32.mrb[0].mxu0
        %v1060 = vpop.f32.mrb[0].mxu0
        %v1061 = vadd.f32 0.0, %v1060
        %v1062 = vpop.f32.mrb[0].mxu0
        %1063 = vmatprep.mubr.bf16.mxu0 0
        %1064 = vmatmul.mubr.bf16.gmra.mrb[0].mxu0 %v1000
        %v1065 = vpop.f32.mrb[0].mxu0
        %v1066 = vadd.f32 0.0, %v1065
        %v1067 = vpop.f32.mrb[0].mxu0
        %v1068 = vpop.f32.mrb[0].mxu0
        %v1069 = vadd.f32 0.0, %v1068
        %v1070 = vpop.f32.mrb[0].mxu0
        %1071 = vmatprep.mubr.bf16.mxu0 0
        %1072 = vmatmul.mubr.bf16.gmra.mrb[0].mxu0 %v1003
        %v1073 = vpop.f32.mrb[0].mxu0
        %v1074 = vadd.f32 0.0, %v1073
        %v1075 = vpop.f32.mrb[0].mxu0
        %v1076 = vpop.f32.mrb[0].mxu0
        %v1077 = vadd.f32 0.0, %v1076
        %v1078 = vpop.f32.mrb[0].mxu0
        %1079 = vmatprep.mubr.bf16.mxu0 0
        %1080 = vmatmul.mubr.bf16.gmra.mrb[0].mxu0 %v1006
        %v1081 = vpop.f32.mrb[0].mxu0
        %v1082 = vadd.f32 0.0, %v1081
        %v1083 = vpop.f32.mrb[0].mxu0
        %v1084 = vpop.f32.mrb[0].mxu0
        %v1085 = vadd.f32 0.0, %v1084
        %v1086 = vpop.f32.mrb[0].mxu0
        %1087 = vmatprep.mubr.bf16.mxu0 0
        %1088 = vmatmul.mubr.bf16.gmra.mrb[0].mxu0 %v1009
        %v1089 = vpop.f32.mrb[0].mxu0
        %v1090 = vadd.f32 0.0, %v1089
        %v1091 = vpop.f32.mrb[0].mxu0
        %v1092 = vpop.f32.mrb[0].mxu0
        %v1093 = vadd.f32 0.0, %v1092
        %v1094 = vpop.f32.mrb[0].mxu0
        %1095 = vmatprep.mubr.bf16.mxu0 0
        %1096 = vmatmul.mubr.bf16.gmra.mrb[0].mxu0 %v1012
        %v1097 = vpop.f32.mrb[0].mxu0
        %v1098 = vadd.f32 0.0, %v1097
        %v1099 = vpop.f32.mrb[0].mxu0
        %v1100 = vpop.f32.mrb[0].mxu0
        %v1101 = vadd.f32 0.0, %v1100
        %v1102 = vpop.f32.mrb[0].mxu0
        %1103 = vmatprep.mubr.bf16.mxu0 0
        %1104 = vmatmul.mubr.bf16.gmra.mrb[0].mxu0 %v1015
        %v1105 = vpop.f32.mrb[0].mxu0
        %v1106 = vadd.f32 0.0, %v1105
        %v1107 = vpop.f32.mrb[0].mxu0
        %v1108 = vpop.f32.mrb[0].mxu0
        %v1109 = vadd.f32 0.0, %v1108
        %v1110 = vpop.f32.mrb[0].mxu0
        %1111 = vmatprep.mubr.bf16.mxu0 0
        %1112 = vmatmul.mubr.bf16.gmra.mrb[0].mxu0 %v1018
        %v1113 = vpop.f32.mrb[0].mxu0
        %v1114 = vadd.f32 0.0, %v1113
        %v1115 = vpop.f32.mrb[0].mxu0
        %v1116 = vpop.f32.mrb[0].mxu0
        %v1117 = vadd.f32 0.0, %v1116
        %v1118 = vpop.f32.mrb[0].mxu0
        %1119 = vmatprep.mubr.bf16.mxu0 0
        %1120 = vmatmul.mubr.bf16.gmra.mrb[0].mxu0 %v1021
        %v1121 = vpop.f32.mrb[0].mxu0
        %v1122 = vadd.f32 0.0, %v1121
        %v1123 = vpop.f32.mrb[0].mxu0
        %v1124 = vpop.f32.mrb[0].mxu0
        %v1125 = vadd.f32 0.0, %v1124
        %v1126 = vpop.f32.mrb[0].mxu0
        %1127 = vdwg.mxu0
        %s1128 = scalar_lea.vmem %s471, 216 [#allocation2]
        %v1129 = vld [vmem:[%s1128] sm:$0xf]
        %v1130 = vld [vmem:[%s1128 + $0x4] sm:$0xf]
        %v1131 = vld [vmem:[%s1128 + $0x8] sm:$0xf]
        %v1132 = vld [vmem:[%s1128 + $0xc] sm:$0xf]
        %v1133 = vld [vmem:[%s1128 + $0x10] sm:$0xf]
        %v1134 = vld [vmem:[%s1128 + $0x14] sm:$0xf]
        %v1135 = vld [vmem:[%s1128 + $0x18] sm:$0xf]
        %v1136 = vld [vmem:[%s1128 + $0x1c] sm:$0xf]
        %v1137 = vld [vmem:[%s1128 + $0x20] sm:$0xf]
        %v1138 = vld [vmem:[%s1128 + $0x24] sm:$0xf]
        %v1139 = vld [vmem:[%s1128 + $0x28] sm:$0xf]
        %v1140 = vld [vmem:[%s1128 + $0x2c] sm:$0xf]
        %v1141 = vld [vmem:[%s1128 + $0x30] sm:$0xf]
        %v1142 = vld [vmem:[%s1128 + $0x34] sm:$0xf]
        %v1143 = vld [vmem:[%s1128 + $0x38] sm:$0xf]
        %v1144 = vld [vmem:[%s1128 + $0x3c] sm:$0xf]
        %v1145 = vld [vmem:[%s1128 + $0x40] sm:$0xf]
        %v1146 = vld [vmem:[%s1128 + $0x44] sm:$0xf]
        %v1165 = vunpack.c.l.b16 %v1129
        %v1166 = vunpack.c.l.b16 %v1130
        %v1167 = vunpack.c.l.b16 %v1131
        %v1168 = vunpack.c.l.b16 %v1132
        %v1169 = vunpack.c.l.b16 %v1133
        %v1170 = vunpack.c.l.b16 %v1134
        %v1171 = vunpack.c.l.b16 %v1135
        %v1172 = vunpack.c.l.b16 %v1136
        %v1173 = vunpack.c.l.b16 %v1137
        %v1174 = vunpack.c.l.b16 %v1138
        %v1175 = vunpack.c.l.b16 %v1139
        %v1176 = vunpack.c.l.b16 %v1140
        %v1177 = vunpack.c.l.b16 %v1141
        %v1178 = vunpack.c.l.b16 %v1142
        %v1179 = vunpack.c.l.b16 %v1143
        %v1180 = vunpack.c.l.b16 %v1144
        %v1181 = vunpack.c.l.b16 %v1145
        %v1182 = vunpack.c.l.b16 %v1146
        %v1183 = vpack.c.b16 %v1166, %v1165
        %v1184 = vpack.c.b16 %v1168, %v1167
        %v1185 = vpack.c.b16 %v1170, %v1169
        %v1186 = vpack.c.b16 %v1172, %v1171
        %v1187 = vpack.c.b16 %v1174, %v1173
        %v1188 = vpack.c.b16 %v1176, %v1175
        %v1189 = vpack.c.b16 %v1178, %v1177
        %v1190 = vpack.c.b16 %v1180, %v1179
        %v1191 = vpack.c.b16 %v1182, %v1181
        %v1193 = vsel %vm578, %v1183, 0
        %v1196 = vsel %vm578, %v1184, 0
        %v1199 = vsel %vm578, %v1185, 0
        %v1202 = vsel %vm578, %v1186, 0
        %v1205 = vsel %vm578, %v1187, 0
        %v1208 = vsel %vm578, %v1188, 0
        %v1211 = vsel %vm578, %v1189, 0
        %v1214 = vsel %vm578, %v1190, 0
        %v1217 = vsel %vm578, %v1191, 0
        %1219 = vmatprep.subr.bf16.mxu0 0
        %1220 = vmatpush1.bf16.msra.mxu0 %v575
        %1221 = vmatprep.subr.bf16.mxu0 0
        %1222 = vmatpush1.bf16.msra.mxu0 %v611
        %1223 = vmatprep.subr.bf16.mxu0 0
        %1224 = vmatpush1.bf16.msra.mxu0 0
        %1225 = vmatprep.subr.bf16.mxu0 0
        %1226 = vmatpush1.bf16.msra.mxu0 0
        %1227 = vmatprep.subr.bf16.mxu0 0
        %1228 = vmatpush1.bf16.msra.mxu0 0
        %1229 = vmatprep.subr.bf16.mxu0 0
        %1230 = vmatpush1.bf16.msra.mxu0 0
        %1231 = vmatprep.subr.bf16.mxu0 0
        %1232 = vmatpush1.bf16.msra.mxu0 0
        %1233 = vmatprep.subr.bf16.mxu0 0
        %1234 = vmatpush1.bf16.msra.mxu0 0
        %1235 = vmatprep.subr.bf16.mxu0 0
        %1236 = vmatpush1.bf16.msra.mxu0 0
        %1237 = vmatprep.subr.bf16.mxu0 0
        %1238 = vmatpush1.bf16.msra.mxu0 0
        %1239 = vmatprep.subr.bf16.mxu0 0
        %1240 = vmatpush1.bf16.msra.mxu0 0
        %1241 = vmatprep.subr.bf16.mxu0 0
        %1242 = vmatpush1.bf16.msra.mxu0 0
        %1243 = vmatprep.subr.bf16.mxu0 0
        %1244 = vmatpush1.bf16.msra.mxu0 0
        %1245 = vmatprep.subr.bf16.mxu0 0
        %1246 = vmatpush1.bf16.msra.mxu0 0
        %1247 = vmatprep.subr.bf16.mxu0 0
        %1248 = vmatpush1.bf16.msra.mxu0 0
        %1249 = vmatprep.subr.bf16.mxu0 0
        %1250 = vmatpush1.bf16.msra.mxu0 0
        %1251 = vmatprep.mubr.bf16.mxu0 0
        %1252 = vmatmul.mubr.bf16.gmra.mrb[0].mxu0 %v1193
        %v1253 = vpop.f32.mrb[0].mxu0
        %v1254 = vadd.f32 0.0, %v1253
        %v1255 = vpop.f32.mrb[0].mxu0
        %v1256 = vpop.f32.mrb[0].mxu0
        %v1257 = vadd.f32 0.0, %v1256
        %v1258 = vpop.f32.mrb[0].mxu0
        %1259 = vmatprep.mubr.bf16.mxu0 0
        %1260 = vmatmul.mubr.bf16.gmra.mrb[0].mxu0 %v1196
        %v1261 = vpop.f32.mrb[0].mxu0
        %v1262 = vadd.f32 0.0, %v1261
        %v1263 = vpop.f32.mrb[0].mxu0
        %v1264 = vpop.f32.mrb[0].mxu0
        %v1265 = vadd.f32 0.0, %v1264
        %v1266 = vpop.f32.mrb[0].mxu0
        %1267 = vmatprep.mubr.bf16.mxu0 0
        %1268 = vmatmul.mubr.bf16.gmra.mrb[0].mxu0 %v1199
        %v1269 = vpop.f32.mrb[0].mxu0
        %v1270 = vadd.f32 0.0, %v1269
        %v1271 = vpop.f32.mrb[0].mxu0
        %v1272 = vpop.f32.mrb[0].mxu0
        %v1273 = vadd.f32 0.0, %v1272
        %v1274 = vpop.f32.mrb[0].mxu0
        %1275 = vmatprep.mubr.bf16.mxu0 0
        %1276 = vmatmul.mubr.bf16.gmra.mrb[0].mxu0 %v1202
        %v1277 = vpop.f32.mrb[0].mxu0
        %v1278 = vadd.f32 0.0, %v1277
        %v1279 = vpop.f32.mrb[0].mxu0
        %v1280 = vpop.f32.mrb[0].mxu0
        %v1281 = vadd.f32 0.0, %v1280
        %v1282 = vpop.f32.mrb[0].mxu0
        %1283 = vmatprep.mubr.bf16.mxu0 0
        %1284 = vmatmul.mubr.bf16.gmra.mrb[0].mxu0 %v1205
        %v1285 = vpop.f32.mrb[0].mxu0
        %v1286 = vadd.f32 0.0, %v1285
        %v1287 = vpop.f32.mrb[0].mxu0
        %v1288 = vpop.f32.mrb[0].mxu0
        %v1289 = vadd.f32 0.0, %v1288
        %v1290 = vpop.f32.mrb[0].mxu0
        %1291 = vmatprep.mubr.bf16.mxu0 0
        %1292 = vmatmul.mubr.bf16.gmra.mrb[0].mxu0 %v1208
        %v1293 = vpop.f32.mrb[0].mxu0
        %v1294 = vadd.f32 0.0, %v1293
        %v1295 = vpop.f32.mrb[0].mxu0
        %v1296 = vpop.f32.mrb[0].mxu0
        %v1297 = vadd.f32 0.0, %v1296
        %v1298 = vpop.f32.mrb[0].mxu0
        %1299 = vmatprep.mubr.bf16.mxu0 0
        %1300 = vmatmul.mubr.bf16.gmra.mrb[0].mxu0 %v1211
        %v1301 = vpop.f32.mrb[0].mxu0
        %v1302 = vadd.f32 0.0, %v1301
        %v1303 = vpop.f32.mrb[0].mxu0
        %v1304 = vpop.f32.mrb[0].mxu0
        %v1305 = vadd.f32 0.0, %v1304
        %v1306 = vpop.f32.mrb[0].mxu0
        %1307 = vmatprep.mubr.bf16.mxu0 0
        %1308 = vmatmul.mubr.bf16.gmra.mrb[0].mxu0 %v1214
        %v1309 = vpop.f32.mrb[0].mxu0
        %v1310 = vadd.f32 0.0, %v1309
        %v1311 = vpop.f32.mrb[0].mxu0
        %v1312 = vpop.f32.mrb[0].mxu0
        %v1313 = vadd.f32 0.0, %v1312
        %v1314 = vpop.f32.mrb[0].mxu0
        %1315 = vmatprep.mubr.bf16.mxu0 0
        %1316 = vmatmul.mubr.bf16.gmra.mrb[0].mxu0 %v1217
        %v1317 = vpop.f32.mrb[0].mxu0
        %v1318 = vadd.f32 0.0, %v1317
        %v1319 = vpop.f32.mrb[0].mxu0
        %v1320 = vpop.f32.mrb[0].mxu0
        %v1321 = vadd.f32 0.0, %v1320
        %v1322 = vpop.f32.mrb[0].mxu0
        %1323 = vdwg.mxu0
        %v1324 = vmax.f32 %v1058, %v1254
        %v1325 = vmax.f32 %v1061, %v1257
        %v1326 = vmax.f32 %v1066, %v1262
        %v1327 = vmax.f32 %v1069, %v1265
        %v1328 = vmax.f32 %v1074, %v1270
        %v1329 = vmax.f32 %v1077, %v1273
        %v1330 = vmax.f32 %v1082, %v1278
        %v1331 = vmax.f32 %v1085, %v1281
        %v1332 = vmax.f32 %v1090, %v1286
        %v1333 = vmax.f32 %v1093, %v1289
        %v1334 = vmax.f32 %v1098, %v1294
        %v1335 = vmax.f32 %v1101, %v1297
        %v1336 = vmax.f32 %v1106, %v1302
        %v1337 = vmax.f32 %v1109, %v1305
        %v1338 = vmax.f32 %v1114, %v1310
        %v1339 = vmax.f32 %v1117, %v1313
        %v1340 = vmax.f32 %v1122, %v1318
        %v1341 = vmax.f32 %v1125, %v1321
        %v1342 = vmax.f32 %v914, %v1324
        %v1343 = vmax.f32 %v915, %v1325
        %v1344 = vmax.f32 %v916, %v1326
        %v1345 = vmax.f32 %v917, %v1327
        %v1346 = vmax.f32 %v918, %v1328
        %v1347 = vmax.f32 %v919, %v1329
        %v1348 = vmax.f32 %v920, %v1330
        %v1349 = vmax.f32 %v921, %v1331
        %v1350 = vmax.f32 %v922, %v1332
        %v1351 = vmax.f32 %v923, %v1333
        %v1352 = vmax.f32 %v924, %v1334
        %v1353 = vmax.f32 %v925, %v1335
        %v1354 = vmax.f32 %v926, %v1336
        %v1355 = vmax.f32 %v927, %v1337
        %v1356 = vmax.f32 %v928, %v1338
        %v1357 = vmax.f32 %v929, %v1339
        %v1358 = vmax.f32 %v930, %v1340
        %v1359 = vmax.f32 %v931, %v1341
        %v1360 = vld [vmem:[%s2] sm:$0x1]
        %v1362 = vlaneseq
        %v1363 = vshrl.u32 %v1362, 7
        %v1364 = vsub.s32 0, %v1363
        %v1365 = vrot.slane %v1360, %v1364
        %v1367 = vadd.f32 %v1342, %v1365
        %v1368 = vadd.f32 %v1343, %v1365
        %v1369 = vadd.f32 %v1344, %v1365
        %v1370 = vadd.f32 %v1345, %v1365
        %v1371 = vadd.f32 %v1346, %v1365
        %v1372 = vadd.f32 %v1347, %v1365
        %v1373 = vadd.f32 %v1348, %v1365
        %v1374 = vadd.f32 %v1349, %v1365
        %v1375 = vadd.f32 %v1350, %v1365
        %v1376 = vadd.f32 %v1351, %v1365
        %v1377 = vadd.f32 %v1352, %v1365
        %v1378 = vadd.f32 %v1353, %v1365
        %v1379 = vadd.f32 %v1354, %v1365
        %v1380 = vadd.f32 %v1355, %v1365
        %v1381 = vadd.f32 %v1356, %v1365
        %v1382 = vadd.f32 %v1357, %v1365
        %v1383 = vadd.f32 %v1358, %v1365
        %v1384 = vadd.f32 %v1359, %v1365
        %v1385 = vmax.f32 %v1367, 0.0
        %v1386 = vmax.f32 %v1368, 0.0
        %v1387 = vmax.f32 %v1369, 0.0
        %v1388 = vmax.f32 %v1370, 0.0
        %v1389 = vmax.f32 %v1371, 0.0
        %v1390 = vmax.f32 %v1372, 0.0
        %v1391 = vmax.f32 %v1373, 0.0
        %v1392 = vmax.f32 %v1374, 0.0
        %v1393 = vmax.f32 %v1375, 0.0
        %v1394 = vmax.f32 %v1376, 0.0
        %v1395 = vmax.f32 %v1377, 0.0
        %v1396 = vmax.f32 %v1378, 0.0
        %v1397 = vmax.f32 %v1379, 0.0
        %v1398 = vmax.f32 %v1380, 0.0
        %v1399 = vmax.f32 %v1381, 0.0
        %v1400 = vmax.f32 %v1382, 0.0
        %v1401 = vmax.f32 %v1383, 0.0
        %v1402 = vmax.f32 %v1384, 0.0
        %v1403 = vpack.c.bf16 %v1386, %v1385
        %v1404 = vpack.c.bf16 %v1388, %v1387
        %v1405 = vpack.c.bf16 %v1390, %v1389
        %v1406 = vpack.c.bf16 %v1392, %v1391
        %v1407 = vpack.c.bf16 %v1394, %v1393
        %v1408 = vpack.c.bf16 %v1396, %v1395
        %v1409 = vpack.c.bf16 %v1398, %v1397
        %v1410 = vpack.c.bf16 %v1400, %v1399
        %v1411 = vpack.c.bf16 %v1402, %v1401
        %v1421 = vunpack.c.l.b16 %v1403
        %v1422 = vunpack.c.h.b16 %v1403
        %v1423 = vunpack.c.l.b16 %v1404
        %v1424 = vunpack.c.h.b16 %v1404
        %v1425 = vunpack.c.l.b16 %v1405
        %v1426 = vunpack.c.h.b16 %v1405
        %v1427 = vunpack.c.l.b16 %v1406
        %v1428 = vunpack.c.h.b16 %v1406
        %v1429 = vunpack.c.l.b16 %v1407
        %v1430 = vunpack.c.h.b16 %v1407
        %v1431 = vunpack.c.l.b16 %v1408
        %v1432 = vunpack.c.h.b16 %v1408
        %v1433 = vunpack.c.l.b16 %v1409
        %v1434 = vunpack.c.h.b16 %v1409
        %v1435 = vunpack.c.l.b16 %v1410
        %v1436 = vunpack.c.h.b16 %v1410
        %v1437 = vunpack.c.l.b16 %v1411
        %v1438 = vunpack.c.h.b16 %v1411
        %v1439 = vpack.c.b16 %v1421, %v1421
        %v1440 = vpack.c.b16 %v1422, %v1422
        %v1441 = vpack.c.b16 %v1423, %v1423
        %v1442 = vpack.c.b16 %v1424, %v1424
        %v1443 = vpack.c.b16 %v1425, %v1425
        %v1444 = vpack.c.b16 %v1426, %v1426
        %v1445 = vpack.c.b16 %v1427, %v1427
        %v1446 = vpack.c.b16 %v1428, %v1428
        %v1447 = vpack.c.b16 %v1429, %v1429
        %v1448 = vpack.c.b16 %v1430, %v1430
        %v1449 = vpack.c.b16 %v1431, %v1431
        %v1450 = vpack.c.b16 %v1432, %v1432
        %v1451 = vpack.c.b16 %v1433, %v1433
        %v1452 = vpack.c.b16 %v1434, %v1434
        %v1453 = vpack.c.b16 %v1435, %v1435
        %v1454 = vpack.c.b16 %v1436, %v1436
        %v1455 = vpack.c.b16 %v1437, %v1437
        %v1456 = vpack.c.b16 %v1438, %v1438
        %1475 = vst [vmem:[%s497] sm:$0xf] %v1439
        %1476 = vst [vmem:[%s497 + $0x4] sm:$0xf] %v1440
        %1477 = vst [vmem:[%s497 + $0x8] sm:$0xf] %v1441
        %1478 = vst [vmem:[%s497 + $0xc] sm:$0xf] %v1442
        %1479 = vst [vmem:[%s497 + $0x10] sm:$0xf] %v1443
        %1480 = vst [vmem:[%s497 + $0x14] sm:$0xf] %v1444
        %1481 = vst [vmem:[%s497 + $0x18] sm:$0xf] %v1445
        %1482 = vst [vmem:[%s497 + $0x1c] sm:$0xf] %v1446
        %1483 = vst [vmem:[%s497 + $0x20] sm:$0xf] %v1447
        %1484 = vst [vmem:[%s497 + $0x24] sm:$0xf] %v1448
        %1485 = vst [vmem:[%s497 + $0x28] sm:$0xf] %v1449
        %1486 = vst [vmem:[%s497 + $0x2c] sm:$0xf] %v1450
        %1487 = vst [vmem:[%s497 + $0x30] sm:$0xf] %v1451
        %1488 = vst [vmem:[%s497 + $0x34] sm:$0xf] %v1452
        %1489 = vst [vmem:[%s497 + $0x38] sm:$0xf] %v1453
        %1490 = vst [vmem:[%s497 + $0x3c] sm:$0xf] %v1454
        %1491 = vst [vmem:[%s497 + $0x40] sm:$0xf] %v1455
        %1492 = vst [vmem:[%s497 + $0x44] sm:$0xf] %v1456
        %s1493 = smul.u32 18, %s14
        %p1494 = scmp.lt.s32.totalorder %s1493, 35
        %s1495 = scalar_select %p1494, %s1493, 35
        %s1496 = smul.addr %s1495, 4
        %s1497 = scalar_lea.vmem %s3, %s1496
        // Predicated region
        $region74: #{badnet_mnist_forward.3} parent=68 // pred_check
          %p1498 = pneg %p100
        $region75: #{badnet_mnist_forward.3} parent=68 // pred_check_branch
          %1500 = sbr.rel (%p1498) target = $region77
        $region76: #{badnet_mnist_forward.3} parent=68 // pred_region
          %s1501 = smul.u32 18, %s14
        $region77: #{badnet_mnist_forward.3} parent=68 // pred_fallthru
          _
      $region69: #{badnet_mnist_forward.3} parent=5 // pred_fallthru
        _
      %p1502 = scmp.le.s32.totalorder 2, %s9
      // Predicated region
      $region78: #{badnet_mnist_forward.3} parent=5 // pred_check
        %p1503 = pneg %p1502
      $region79: #{badnet_mnist_forward.3} parent=5 // pred_check_branch
        %1505 = sbr.rel (%p1503) target = $region81
      $region80: #{badnet_mnist_forward.3} parent=5 // pred_region
        %s1506 = ssub.s32 %s9, 2
        // Predicated region
        $region82: #{badnet_mnist_forward.3} parent=80 // pred_check
          %p1507 = pneg %p106
        $region83: #{badnet_mnist_forward.3} parent=80 // pred_check_branch
          %1509 = sbr.rel (%p1507) target = $region85
        $region84: #{badnet_mnist_forward.3} parent=80 // pred_region
          %s1510 = smul.u32 18, %s15
          %p1511 = scmp.lt.s32.totalorder %s1510, 35
          %s1512 = scalar_select %p1511, %s1510, 35
          %s1513 = smul.addr %s1512, 4
          %s1514 = scalar_lea.vmem %s3, %s1513
        $region85: #{badnet_mnist_forward.3} parent=80 // pred_fallthru
          _
      $region81: #{badnet_mnist_forward.3} parent=5 // pred_fallthru
        _
    $region6: #{badnet_mnist_forward.3} parent=1 // loop_footer
      %s13 = sadd.s32 1, %s9
    $region7: #{badnet_mnist_forward.3} parent=1 // loop_footer_branch
      %8 = sbr.rel target = $region3
    $region8: #{badnet_mnist_forward.3} parent=1 // loop_exit
      _

// kernel: badnet_mnist_forward.5
$region0: #{badnet_mnist_forward.5}
  #allocation0 [shape = 'u32[]', space=smem, size = 0x4, offset = 0x4, fixed_abs, tag = 'smem constant byte address 0x4 - core index']
  #allocation1 [shape = 'u32[144,128]{1,0:T(1,128)}', space=vmem, size = 0x12000, scoped, tag = 'internal scratch']
  %s0 = inlined_call_operand.vmem [shape: bf16[16,512], index: 0, kind: input, shape index: {}]
  %s1 = inlined_call_operand.vmem [shape: bf16[512,128], index: 1, kind: input, shape index: {}]
  %s2 = inlined_call_operand.vmem [shape: f32[1,128], index: 2, kind: input, shape index: {}]
  %s3 = inlined_call_operand.vmem [shape: bf16[128,128], index: 3, kind: input, shape index: {}]
  %s4 = inlined_call_operand.vmem [shape: f32[1,128], index: 4, kind: input, shape index: {}]
  %s5 = inlined_call_operand.vmem [shape: f32[16,128], index: 5, kind: output, shape index: {0}]
  %s6 = inlined_call_operand.vmem [shape: f32[16,128], index: 6, kind: output, shape index: {1}]
  %7 = xla_tuple %s5, %s6
  %s8 = sld [smem:[#allocation0]]
  $region38: #{badnet_mnist_forward.5} parent=0
    _
  %s10 = ssub.s32 1, %s8
  %s11 = scalar_select 0, %s10, %s8
  // Predicated region
  $region2: #{badnet_mnist_forward.5} parent=0 // pred_check
    _
  $region3: #{badnet_mnist_forward.5} parent=0 // pred_check_branch
    %13 = sbr.rel (0) target = $region5
  $region4: #{badnet_mnist_forward.5} parent=0 // pred_region
    _
  $region5: #{badnet_mnist_forward.5} parent=0 // pred_fallthru
    _
  // Predicated region
  $region6: #{badnet_mnist_forward.5} parent=0 // pred_check
    _
  $region7: #{badnet_mnist_forward.5} parent=0 // pred_check_branch
    %15 = sbr.rel (0) target = $region9
  $region8: #{badnet_mnist_forward.5} parent=0 // pred_region
    _
  $region9: #{badnet_mnist_forward.5} parent=0 // pred_fallthru
    _
  // Predicated region
  $region10: #{badnet_mnist_forward.5} parent=0 // pred_check
    _
  $region11: #{badnet_mnist_forward.5} parent=0 // pred_check_branch
    %17 = sbr.rel (0) target = $region13
  $region12: #{badnet_mnist_forward.5} parent=0 // pred_region
    _
  $region13: #{badnet_mnist_forward.5} parent=0 // pred_fallthru
    _
  // Predicated region
  $region14: #{badnet_mnist_forward.5} parent=0 // pred_check
    _
  $region15: #{badnet_mnist_forward.5} parent=0 // pred_check_branch
    %19 = sbr.rel (0) target = $region17
  $region16: #{badnet_mnist_forward.5} parent=0 // pred_region
    _
  $region17: #{badnet_mnist_forward.5} parent=0 // pred_fallthru
    _
  // Predicated region
  $region18: #{badnet_mnist_forward.5} parent=0 // pred_check
    _
  $region19: #{badnet_mnist_forward.5} parent=0 // pred_check_branch
    %21 = sbr.rel (0) target = $region21
  $region20: #{badnet_mnist_forward.5} parent=0 // pred_region
    _
  $region21: #{badnet_mnist_forward.5} parent=0 // pred_fallthru
    _
  %v23 = vld [vmem:[%s0] sm:$0xff]
  %v24 = vld [vmem:[%s0 + $0x8] sm:$0xff]
  %v25 = vld [vmem:[%s0 + $0x10] sm:$0xff]
  %v26 = vld [vmem:[%s0 + $0x18] sm:$0xff]
  %v27 = vld [vmem:[%s1] sm:$0xf]
  %v28 = vld [vmem:[%s1 + $0x4] sm:$0xf]
  %v29 = vld [vmem:[%s1 + $0x8] sm:$0xf]
  %v30 = vld [vmem:[%s1 + $0xc] sm:$0xf]
  %v31 = vld [vmem:[%s1 + $0x10] sm:$0xf]
  %v32 = vld [vmem:[%s1 + $0x14] sm:$0xf]
  %v33 = vld [vmem:[%s1 + $0x18] sm:$0xf]
  %v34 = vld [vmem:[%s1 + $0x1c] sm:$0xf]
  %v35 = vld [vmem:[%s1 + $0x20] sm:$0xf]
  %v36 = vld [vmem:[%s1 + $0x24] sm:$0xf]
  %v37 = vld [vmem:[%s1 + $0x28] sm:$0xf]
  %v38 = vld [vmem:[%s1 + $0x2c] sm:$0xf]
  %v39 = vld [vmem:[%s1 + $0x30] sm:$0xf]
  %v40 = vld [vmem:[%s1 + $0x34] sm:$0xf]
  %v41 = vld [vmem:[%s1 + $0x38] sm:$0xf]
  %v42 = vld [vmem:[%s1 + $0x3c] sm:$0xf]
  %v43 = vld [vmem:[%s1 + $0x40] sm:$0xf]
  %v44 = vld [vmem:[%s1 + $0x44] sm:$0xf]
  %v45 = vld [vmem:[%s1 + $0x48] sm:$0xf]
  %v46 = vld [vmem:[%s1 + $0x4c] sm:$0xf]
  %v47 = vld [vmem:[%s1 + $0x50] sm:$0xf]
  %v48 = vld [vmem:[%s1 + $0x54] sm:$0xf]
  %v49 = vld [vmem:[%s1 + $0x58] sm:$0xf]
  %v50 = vld [vmem:[%s1 + $0x5c] sm:$0xf]
  %v51 = vld [vmem:[%s1 + $0x60] sm:$0xf]
  %v52 = vld [vmem:[%s1 + $0x64] sm:$0xf]
  %v53 = vld [vmem:[%s1 + $0x68] sm:$0xf]
  %v54 = vld [vmem:[%s1 + $0x6c] sm:$0xf]
  %v55 = vld [vmem:[%s1 + $0x70] sm:$0xf]
  %v56 = vld [vmem:[%s1 + $0x74] sm:$0xf]
  %v57 = vld [vmem:[%s1 + $0x78] sm:$0xf]
  %v58 = vld [vmem:[%s1 + $0x7c] sm:$0xf]
  %v59 = vld [vmem:[%s1 + $0x80] sm:$0xf]
  %v60 = vld [vmem:[%s1 + $0x84] sm:$0xf]
  %v61 = vld [vmem:[%s1 + $0x88] sm:$0xf]
  %v62 = vld [vmem:[%s1 + $0x8c] sm:$0xf]
  %v63 = vld [vmem:[%s1 + $0x90] sm:$0xf]
  %v64 = vld [vmem:[%s1 + $0x94] sm:$0xf]
  %v65 = vld [vmem:[%s1 + $0x98] sm:$0xf]
  %v66 = vld [vmem:[%s1 + $0x9c] sm:$0xf]
  %v67 = vld [vmem:[%s1 + $0xa0] sm:$0xf]
  %v68 = vld [vmem:[%s1 + $0xa4] sm:$0xf]
  %v69 = vld [vmem:[%s1 + $0xa8] sm:$0xf]
  %v70 = vld [vmem:[%s1 + $0xac] sm:$0xf]
  %v71 = vld [vmem:[%s1 + $0xb0] sm:$0xf]
  %v72 = vld [vmem:[%s1 + $0xb4] sm:$0xf]
  %v73 = vld [vmem:[%s1 + $0xb8] sm:$0xf]
  %v74 = vld [vmem:[%s1 + $0xbc] sm:$0xf]
  %v75 = vld [vmem:[%s1 + $0xc0] sm:$0xf]
  %v76 = vld [vmem:[%s1 + $0xc4] sm:$0xf]
  %v77 = vld [vmem:[%s1 + $0xc8] sm:$0xf]
  %v78 = vld [vmem:[%s1 + $0xcc] sm:$0xf]
  %v79 = vld [vmem:[%s1 + $0xd0] sm:$0xf]
  %v80 = vld [vmem:[%s1 + $0xd4] sm:$0xf]
  %v81 = vld [vmem:[%s1 + $0xd8] sm:$0xf]
  %v82 = vld [vmem:[%s1 + $0xdc] sm:$0xf]
  %v83 = vld [vmem:[%s1 + $0xe0] sm:$0xf]
  %v84 = vld [vmem:[%s1 + $0xe4] sm:$0xf]
  %v85 = vld [vmem:[%s1 + $0xe8] sm:$0xf]
  %v86 = vld [vmem:[%s1 + $0xec] sm:$0xf]
  %v87 = vld [vmem:[%s1 + $0xf0] sm:$0xf]
  %v88 = vld [vmem:[%s1 + $0xf4] sm:$0xf]
  %v89 = vld [vmem:[%s1 + $0xf8] sm:$0xf]
  %v90 = vld [vmem:[%s1 + $0xfc] sm:$0xf]
  %v91 = vld [vmem:[%s2] sm:$0x1]
  %v93 = vlaneseq
  %v94 = vshrl.u32 %v93, 7
  %v95 = vsub.s32 0, %v94
  %v96 = vrot.slane %v91, %v95
  %v102 = vunpack.c.l.b16 %v23
  %v103 = vunpack.c.h.b16 %v23
  %v104 = vunpack.c.l.b16 %v24
  %v105 = vunpack.c.h.b16 %v24
  %v106 = vunpack.c.l.b16 %v25
  %v107 = vunpack.c.h.b16 %v25
  %v108 = vunpack.c.l.b16 %v26
  %v109 = vunpack.c.h.b16 %v26
  %v110 = vpack.c.b16 %v106, %v102
  %v111 = vpack.c.b16 %v107, %v103
  %v112 = vpack.c.b16 %v108, %v104
  %v113 = vpack.c.b16 %v109, %v105
  %v182 = vunpack.c.l.b16 %v27
  %v183 = vunpack.c.l.b16 %v28
  %v184 = vunpack.c.l.b16 %v29
  %v185 = vunpack.c.l.b16 %v30
  %v186 = vunpack.c.l.b16 %v31
  %v187 = vunpack.c.l.b16 %v32
  %v188 = vunpack.c.l.b16 %v33
  %v189 = vunpack.c.l.b16 %v34
  %v190 = vunpack.c.l.b16 %v35
  %v191 = vunpack.c.l.b16 %v36
  %v192 = vunpack.c.l.b16 %v37
  %v193 = vunpack.c.l.b16 %v38
  %v194 = vunpack.c.l.b16 %v39
  %v195 = vunpack.c.l.b16 %v40
  %v196 = vunpack.c.l.b16 %v41
  %v197 = vunpack.c.l.b16 %v42
  %v198 = vunpack.c.l.b16 %v43
  %v199 = vunpack.c.l.b16 %v44
  %v200 = vunpack.c.l.b16 %v45
  %v201 = vunpack.c.l.b16 %v46
  %v202 = vunpack.c.l.b16 %v47
  %v203 = vunpack.c.l.b16 %v48
  %v204 = vunpack.c.l.b16 %v49
  %v205 = vunpack.c.l.b16 %v50
  %v206 = vunpack.c.l.b16 %v51
  %v207 = vunpack.c.l.b16 %v52
  %v208 = vunpack.c.l.b16 %v53
  %v209 = vunpack.c.l.b16 %v54
  %v210 = vunpack.c.l.b16 %v55
  %v211 = vunpack.c.l.b16 %v56
  %v212 = vunpack.c.l.b16 %v57
  %v213 = vunpack.c.l.b16 %v58
  %v214 = vunpack.c.l.b16 %v59
  %v215 = vunpack.c.l.b16 %v60
  %v216 = vunpack.c.l.b16 %v61
  %v217 = vunpack.c.l.b16 %v62
  %v218 = vunpack.c.l.b16 %v63
  %v219 = vunpack.c.l.b16 %v64
  %v220 = vunpack.c.l.b16 %v65
  %v221 = vunpack.c.l.b16 %v66
  %v222 = vunpack.c.l.b16 %v67
  %v223 = vunpack.c.l.b16 %v68
  %v224 = vunpack.c.l.b16 %v69
  %v225 = vunpack.c.l.b16 %v70
  %v226 = vunpack.c.l.b16 %v71
  %v227 = vunpack.c.l.b16 %v72
  %v228 = vunpack.c.l.b16 %v73
  %v229 = vunpack.c.l.b16 %v74
  %v230 = vunpack.c.l.b16 %v75
  %v231 = vunpack.c.l.b16 %v76
  %v232 = vunpack.c.l.b16 %v77
  %v233 = vunpack.c.l.b16 %v78
  %v234 = vunpack.c.l.b16 %v79
  %v235 = vunpack.c.l.b16 %v80
  %v236 = vunpack.c.l.b16 %v81
  %v237 = vunpack.c.l.b16 %v82
  %v238 = vunpack.c.l.b16 %v83
  %v239 = vunpack.c.l.b16 %v84
  %v240 = vunpack.c.l.b16 %v85
  %v241 = vunpack.c.l.b16 %v86
  %v242 = vunpack.c.l.b16 %v87
  %v243 = vunpack.c.l.b16 %v88
  %v244 = vunpack.c.l.b16 %v89
  %v245 = vunpack.c.l.b16 %v90
  %v246 = vpack.c.b16 %v183, %v182
  %v247 = vpack.c.b16 %v185, %v184
  %v248 = vpack.c.b16 %v187, %v186
  %v249 = vpack.c.b16 %v189, %v188
  %v250 = vpack.c.b16 %v191, %v190
  %v251 = vpack.c.b16 %v193, %v192
  %v252 = vpack.c.b16 %v195, %v194
  %v253 = vpack.c.b16 %v197, %v196
  %v254 = vpack.c.b16 %v199, %v198
  %v255 = vpack.c.b16 %v201, %v200
  %v256 = vpack.c.b16 %v203, %v202
  %v257 = vpack.c.b16 %v205, %v204
  %v258 = vpack.c.b16 %v207, %v206
  %v259 = vpack.c.b16 %v209, %v208
  %v260 = vpack.c.b16 %v211, %v210
  %v261 = vpack.c.b16 %v213, %v212
  %v262 = vpack.c.b16 %v215, %v214
  %v263 = vpack.c.b16 %v217, %v216
  %v264 = vpack.c.b16 %v219, %v218
  %v265 = vpack.c.b16 %v221, %v220
  %v266 = vpack.c.b16 %v223, %v222
  %v267 = vpack.c.b16 %v225, %v224
  %v268 = vpack.c.b16 %v227, %v226
  %v269 = vpack.c.b16 %v229, %v228
  %v270 = vpack.c.b16 %v231, %v230
  %v271 = vpack.c.b16 %v233, %v232
  %v272 = vpack.c.b16 %v235, %v234
  %v273 = vpack.c.b16 %v237, %v236
  %v274 = vpack.c.b16 %v239, %v238
  %v275 = vpack.c.b16 %v241, %v240
  %v276 = vpack.c.b16 %v243, %v242
  %v277 = vpack.c.b16 %v245, %v244
  %310 = vmatprep.subr.bf16.mxu0 0
  %311 = vmatpush1.bf16.msra.mxu0 %v246
  %312 = vmatprep.subr.bf16.mxu0 0
  %313 = vmatpush1.bf16.msra.mxu0 %v247
  %314 = vmatprep.subr.bf16.mxu0 0
  %315 = vmatpush1.bf16.msra.mxu0 %v248
  %316 = vmatprep.subr.bf16.mxu0 0
  %317 = vmatpush1.bf16.msra.mxu0 %v249
  %318 = vmatprep.subr.bf16.mxu0 0
  %319 = vmatpush1.bf16.msra.mxu0 %v250
  %320 = vmatprep.subr.bf16.mxu0 0
  %321 = vmatpush1.bf16.msra.mxu0 %v251
  %322 = vmatprep.subr.bf16.mxu0 0
  %323 = vmatpush1.bf16.msra.mxu0 %v252
  %324 = vmatprep.subr.bf16.mxu0 0
  %325 = vmatpush1.bf16.msra.mxu0 %v253
  %326 = vmatprep.subr.bf16.mxu0 0
  %327 = vmatpush1.bf16.msra.mxu0 %v254
  %328 = vmatprep.subr.bf16.mxu0 0
  %329 = vmatpush1.bf16.msra.mxu0 %v255
  %330 = vmatprep.subr.bf16.mxu0 0
  %331 = vmatpush1.bf16.msra.mxu0 %v256
  %332 = vmatprep.subr.bf16.mxu0 0
  %333 = vmatpush1.bf16.msra.mxu0 %v257
  %334 = vmatprep.subr.bf16.mxu0 0
  %335 = vmatpush1.bf16.msra.mxu0 %v258
  %336 = vmatprep.subr.bf16.mxu0 0
  %337 = vmatpush1.bf16.msra.mxu0 %v259
  %338 = vmatprep.subr.bf16.mxu0 0
  %339 = vmatpush1.bf16.msra.mxu0 %v260
  %340 = vmatprep.subr.bf16.mxu0 0
  %341 = vmatpush1.bf16.msra.mxu0 %v261
  %342 = vmatprep.mubr.bf16.mxu0 %v111
  %343 = vmatmul.mubr.bf16.gmra.mrb[0].mxu0 %v110
  %v344 = vpop.f32.mrb[0].mxu0
  %v345 = vadd.f32 %v96, %v344
  %v346 = vpop.f32.mrb[0].mxu0
  %v347 = vpop.f32.mrb[0].mxu0
  %v348 = vadd.f32 %v96, %v347
  %v349 = vpop.f32.mrb[0].mxu0
  %350 = vdwg.mxu0
  %351 = vmatprep.subr.bf16.mxu0 0
  %352 = vmatpush1.bf16.msra.mxu0 %v262
  %353 = vmatprep.subr.bf16.mxu0 0
  %354 = vmatpush1.bf16.msra.mxu0 %v263
  %355 = vmatprep.subr.bf16.mxu0 0
  %356 = vmatpush1.bf16.msra.mxu0 %v264
  %357 = vmatprep.subr.bf16.mxu0 0
  %358 = vmatpush1.bf16.msra.mxu0 %v265
  %359 = vmatprep.subr.bf16.mxu0 0
  %360 = vmatpush1.bf16.msra.mxu0 %v266
  %361 = vmatprep.subr.bf16.mxu0 0
  %362 = vmatpush1.bf16.msra.mxu0 %v267
  %363 = vmatprep.subr.bf16.mxu0 0
  %364 = vmatpush1.bf16.msra.mxu0 %v268
  %365 = vmatprep.subr.bf16.mxu0 0
  %366 = vmatpush1.bf16.msra.mxu0 %v269
  %367 = vmatprep.subr.bf16.mxu0 0
  %368 = vmatpush1.bf16.msra.mxu0 %v270
  %369 = vmatprep.subr.bf16.mxu0 0
  %370 = vmatpush1.bf16.msra.mxu0 %v271
  %371 = vmatprep.subr.bf16.mxu0 0
  %372 = vmatpush1.bf16.msra.mxu0 %v272
  %373 = vmatprep.subr.bf16.mxu0 0
  %374 = vmatpush1.bf16.msra.mxu0 %v273
  %375 = vmatprep.subr.bf16.mxu0 0
  %376 = vmatpush1.bf16.msra.mxu0 %v274
  %377 = vmatprep.subr.bf16.mxu0 0
  %378 = vmatpush1.bf16.msra.mxu0 %v275
  %379 = vmatprep.subr.bf16.mxu0 0
  %380 = vmatpush1.bf16.msra.mxu0 %v276
  %381 = vmatprep.subr.bf16.mxu0 0
  %382 = vmatpush1.bf16.msra.mxu0 %v277
  %383 = vmatprep.mubr.bf16.mxu0 %v113
  %384 = vmatmul.mubr.bf16.gmra.mrb[0].mxu0 %v112
  %v385 = vpop.f32.mrb[0].mxu0
  %v386 = vadd.f32 %v345, %v385
  %v387 = vpop.f32.mrb[0].mxu0
  %v388 = vpop.f32.mrb[0].mxu0
  %v389 = vadd.f32 %v348, %v388
  %v390 = vpop.f32.mrb[0].mxu0
  %391 = vdwg.mxu0
  %v392 = vmax.f32 %v386, 0.0
  %v393 = vmax.f32 %v389, 0.0
  %394 = vst [vmem:[%s6] sm:$0xff] %v392
  %395 = vst [vmem:[%s6 + $0x8] sm:$0xff] %v393
  %v396 = vpack.c.bf16 %v393, %v392
  %v397 = vld [vmem:[%s3] sm:$0xf]
  %v398 = vld [vmem:[%s3 + $0x4] sm:$0xf]
  %v399 = vld [vmem:[%s3 + $0x8] sm:$0xf]
  %v400 = vld [vmem:[%s3 + $0xc] sm:$0xf]
  %v401 = vld [vmem:[%s3 + $0x10] sm:$0xf]
  %v402 = vld [vmem:[%s3 + $0x14] sm:$0xf]
  %v403 = vld [vmem:[%s3 + $0x18] sm:$0xf]
  %v404 = vld [vmem:[%s3 + $0x1c] sm:$0xf]
  %v405 = vld [vmem:[%s3 + $0x20] sm:$0xf]
  %v406 = vld [vmem:[%s3 + $0x24] sm:$0xf]
  %v407 = vld [vmem:[%s3 + $0x28] sm:$0xf]
  %v408 = vld [vmem:[%s3 + $0x2c] sm:$0xf]
  %v409 = vld [vmem:[%s3 + $0x30] sm:$0xf]
  %v410 = vld [vmem:[%s3 + $0x34] sm:$0xf]
  %v411 = vld [vmem:[%s3 + $0x38] sm:$0xf]
  %v412 = vld [vmem:[%s3 + $0x3c] sm:$0xf]
  %v413 = vld [vmem:[%s4] sm:$0x1]
  %v415 = vlaneseq
  %v416 = vshrl.u32 %v415, 7
  %v417 = vsub.s32 0, %v416
  %v418 = vrot.slane %v413, %v417
  %v436 = vunpack.c.l.b16 %v397
  %v437 = vunpack.c.l.b16 %v398
  %v438 = vunpack.c.l.b16 %v399
  %v439 = vunpack.c.l.b16 %v400
  %v440 = vunpack.c.l.b16 %v401
  %v441 = vunpack.c.l.b16 %v402
  %v442 = vunpack.c.l.b16 %v403
  %v443 = vunpack.c.l.b16 %v404
  %v444 = vunpack.c.l.b16 %v405
  %v445 = vunpack.c.l.b16 %v406
  %v446 = vunpack.c.l.b16 %v407
  %v447 = vunpack.c.l.b16 %v408
  %v448 = vunpack.c.l.b16 %v409
  %v449 = vunpack.c.l.b16 %v410
  %v450 = vunpack.c.l.b16 %v411
  %v451 = vunpack.c.l.b16 %v412
  %v452 = vpack.c.b16 %v437, %v436
  %v453 = vpack.c.b16 %v439, %v438
  %v454 = vpack.c.b16 %v441, %v440
  %v455 = vpack.c.b16 %v443, %v442
  %v456 = vpack.c.b16 %v445, %v444
  %v457 = vpack.c.b16 %v447, %v446
  %v458 = vpack.c.b16 %v449, %v448
  %v459 = vpack.c.b16 %v451, %v450
  %468 = vmatprep.subr.bf16.mxu0 0
  %469 = vmatpush1.bf16.msra.mxu0 %v452
  %470 = vmatprep.subr.bf16.mxu0 0
  %471 = vmatpush1.bf16.msra.mxu0 %v453
  %472 = vmatprep.subr.bf16.mxu0 0
  %473 = vmatpush1.bf16.msra.mxu0 %v454
  %474 = vmatprep.subr.bf16.mxu0 0
  %475 = vmatpush1.bf16.msra.mxu0 %v455
  %476 = vmatprep.subr.bf16.mxu0 0
  %477 = vmatpush1.bf16.msra.mxu0 %v456
  %478 = vmatprep.subr.bf16.mxu0 0
  %479 = vmatpush1.bf16.msra.mxu0 %v457
  %480 = vmatprep.subr.bf16.mxu0 0
  %481 = vmatpush1.bf16.msra.mxu0 %v458
  %482 = vmatprep.subr.bf16.mxu0 0
  %483 = vmatpush1.bf16.msra.mxu0 %v459
  %484 = vmatprep.subr.bf16.mxu0 0
  %485 = vmatpush1.bf16.msra.mxu0 0
  %486 = vmatprep.subr.bf16.mxu0 0
  %487 = vmatpush1.bf16.msra.mxu0 0
  %488 = vmatprep.subr.bf16.mxu0 0
  %489 = vmatpush1.bf16.msra.mxu0 0
  %490 = vmatprep.subr.bf16.mxu0 0
  %491 = vmatpush1.bf16.msra.mxu0 0
  %492 = vmatprep.subr.bf16.mxu0 0
  %493 = vmatpush1.bf16.msra.mxu0 0
  %494 = vmatprep.subr.bf16.mxu0 0
  %495 = vmatpush1.bf16.msra.mxu0 0
  %496 = vmatprep.subr.bf16.mxu0 0
  %497 = vmatpush1.bf16.msra.mxu0 0
  %498 = vmatprep.subr.bf16.mxu0 0
  %499 = vmatpush1.bf16.msra.mxu0 0
  %500 = vmatprep.mubr.bf16.mxu0 0
  %501 = vmatmul.mubr.bf16.gmra.mrb[0].mxu0 %v396
  %v502 = vpop.f32.mrb[0].mxu0
  %v503 = vadd.f32 %v418, %v502
  %v504 = vpop.f32.mrb[0].mxu0
  %v505 = vpop.f32.mrb[0].mxu0
  %v506 = vadd.f32 %v418, %v505
  %v507 = vpop.f32.mrb[0].mxu0
  %508 = vdwg.mxu0
  %509 = vst [vmem:[%s5] sm:$0xff] %v503
  %510 = vst [vmem:[%s5 + $0x8] sm:$0xff] %v506
  // Predicated region
  $region22: #{badnet_mnist_forward.5} parent=0 // pred_check
    _
  $region23: #{badnet_mnist_forward.5} parent=0 // pred_check_branch
    %512 = sbr.rel (0) target = $region25
  $region24: #{badnet_mnist_forward.5} parent=0 // pred_region
    _
  $region25: #{badnet_mnist_forward.5} parent=0 // pred_fallthru
    _
  // Predicated region
  $region26: #{badnet_mnist_forward.5} parent=0 // pred_check
    _
  $region27: #{badnet_mnist_forward.5} parent=0 // pred_check_branch
    %514 = sbr.rel (0) target = $region29
  $region28: #{badnet_mnist_forward.5} parent=0 // pred_region
    _
  $region29: #{badnet_mnist_forward.5} parent=0 // pred_fallthru
    _
  // Predicated region
  $region30: #{badnet_mnist_forward.5} parent=0 // pred_check
    _
  $region31: #{badnet_mnist_forward.5} parent=0 // pred_check_branch
    %516 = sbr.rel (0) target = $region33
  $region32: #{badnet_mnist_forward.5} parent=0 // pred_region
    _
  $region33: #{badnet_mnist_forward.5} parent=0 // pred_fallthru
    _
  // Predicated region
  $region34: #{badnet_mnist_forward.5} parent=0 // pred_check
    _
  $region35: #{badnet_mnist_forward.5} parent=0 // pred_check_branch
    %518 = sbr.rel (0) target = $region37
  $region36: #{badnet_mnist_forward.5} parent=0 // pred_region
    _
  $region37: #{badnet_mnist_forward.5} parent=0 // pred_fallthru
    _

// kernel: badnet_mnist_forward.4
$region0: #{badnet_mnist_forward.4}
  #allocation0 [shape = 'u32[]', space=smem, size = 0x4, offset = 0x4, fixed_abs, tag = 'smem constant byte address 0x4 - core index']
  #allocation1 [shape = 'u32[144,128]{1,0:T(1,128)}', space=vmem, size = 0x12000, scoped, tag = 'internal scratch']
  %s0 = inlined_call_operand.vmem [shape: bf16[4,32,400], index: 0, kind: input, shape index: {}]
  %s1 = inlined_call_operand.vmem [shape: bf16[400,128], index: 1, kind: input, shape index: {}]
  %s2 = inlined_call_operand.vmem [shape: f32[1,128], index: 2, kind: input, shape index: {}]
  %s3 = inlined_call_operand.vmem [shape: bf16[32,128], index: 3, kind: output, shape index: {}]
  %s4 = sld [smem:[#allocation0]]
  $region68: #{badnet_mnist_forward.4} parent=0
    _
  %s6 = ssub.s32 1, %s4
  %s7 = scalar_select 0, %s6, %s4
  $region1: #{badnet_mnist_forward.4} parent=0
    #allocation2 [shape = 'u8[131072]{0}', space=vmem, size = 0x20000, scoped, tag = 'input window, operand 0']
    loop: start=0, step=1, limit=4
    $region2: #{badnet_mnist_forward.4} parent=1 // loop_pre_header
      _
    $region3: #{badnet_mnist_forward.4} parent=1 // loop_header
      %s9 = sphi 0, %s13
      %p10 = scmp.ge.s32.totalorder %s9, 4
      %s19 = sphi 0, %s21
      %s22 = sphi 0, %s19
      %s23 = sphi 0, %s22
      %s39 = sphi 0, %s23
      %s43 = sphi 0, %s43
      %s45 = sphi 0, %s43
      %s46 = sphi 0, %s45
      %s60 = sphi 0, %s46
      %s64 = sphi 0, %s64
      %s66 = sphi 0, %s64
      %s67 = sphi 0, %s66
      %s81 = sphi 0, %s67
      %s87 = sphi 0, %s89
      %s90 = sphi 0, %s87
      %s91 = sphi 0, %s90
      %s107 = sphi 0, %s91
    $region4: #{badnet_mnist_forward.4} parent=1 // loop_header_branch
      %12 = sbr.rel (%p10) target = $region8
    $region5: #{badnet_mnist_forward.4} parent=1 // loop_body
      %s14 = ssub.s32 %s9, 1
      %s15 = ssub.s32 %s9, 2
      %s16 = sadd.s32 %s9, 1
      %s17 = ssub.s32 %s9, %s16
      %p18 = scmp.eq.s32.totalorder %s17, 0
      %s20 = sadd.s32 %s19, 1
      %s21 = scalar_select %p18, %s19, %s20
      %p24 = pneg %p18
      %p25 = scmp.eq.s32.totalorder %s9, 1
      %p26 = por %p24, %p25
      %p27 = scmp.ne.s32.totalorder %s19, %s22
      %p28 = scmp.eq.s32.totalorder %s9, 0
      %p29 = por %p27, %p28
      %p30 = scmp.ne.s32.totalorder %s19, %s22
      %p31 = scmp.eq.s32.totalorder %s14, 1
      %p32 = por %p30, %p31
      %p33 = scmp.ne.s32.totalorder %s22, %s23
      %p34 = scmp.eq.s32.totalorder %s14, 0
      %p35 = por %p33, %p34
      %p36 = scmp.ne.s32.totalorder %s22, %s23
      %p37 = scmp.eq.s32.totalorder %s15, 1
      %p38 = por %p36, %p37
      %p40 = scmp.ne.s32.totalorder %s23, %s39
      %p41 = scmp.eq.s32.totalorder %s15, 0
      %p42 = por %p40, %p41
      %s44 = sadd.s32 %s43, 1
      %p47 = scmp.eq.s32.totalorder %s9, 1
      %p48 = scmp.ne.s32.totalorder %s43, %s45
      %p49 = scmp.eq.s32.totalorder %s9, 0
      %p50 = por %p48, %p49
      %p51 = scmp.ne.s32.totalorder %s43, %s45
      %p52 = scmp.eq.s32.totalorder %s14, 1
      %p53 = por %p51, %p52
      %p54 = scmp.ne.s32.totalorder %s45, %s46
      %p55 = scmp.eq.s32.totalorder %s14, 0
      %p56 = por %p54, %p55
      %p57 = scmp.ne.s32.totalorder %s45, %s46
      %p58 = scmp.eq.s32.totalorder %s15, 1
      %p59 = por %p57, %p58
      %p61 = scmp.ne.s32.totalorder %s46, %s60
      %p62 = scmp.eq.s32.totalorder %s15, 0
      %p63 = por %p61, %p62
      %s65 = sadd.s32 %s64, 1
      %p68 = scmp.eq.s32.totalorder %s9, 1
      %p69 = scmp.ne.s32.totalorder %s64, %s66
      %p70 = scmp.eq.s32.totalorder %s9, 0
      %p71 = por %p69, %p70
      %p72 = scmp.ne.s32.totalorder %s64, %s66
      %p73 = scmp.eq.s32.totalorder %s14, 1
      %p74 = por %p72, %p73
      %p75 = scmp.ne.s32.totalorder %s66, %s67
      %p76 = scmp.eq.s32.totalorder %s14, 0
      %p77 = por %p75, %p76
      %p78 = scmp.ne.s32.totalorder %s66, %s67
      %p79 = scmp.eq.s32.totalorder %s15, 1
      %p80 = por %p78, %p79
      %p82 = scmp.ne.s32.totalorder %s67, %s81
      %p83 = scmp.eq.s32.totalorder %s15, 0
      %p84 = por %p82, %p83
      %s85 = ssub.s32 %s9, %s16
      %p86 = scmp.eq.s32.totalorder %s85, 0
      %s88 = sadd.s32 %s87, 1
      %s89 = scalar_select %p86, %s87, %s88
      %p92 = pneg %p86
      %p93 = scmp.eq.s32.totalorder %s9, 1
      %p94 = por %p92, %p93
      %p95 = scmp.ne.s32.totalorder %s87, %s90
      %p96 = scmp.eq.s32.totalorder %s9, 0
      %p97 = por %p95, %p96
      %p98 = scmp.ne.s32.totalorder %s87, %s90
      %p99 = scmp.eq.s32.totalorder %s14, 1
      %p100 = por %p98, %p99
      %p101 = scmp.ne.s32.totalorder %s90, %s91
      %p102 = scmp.eq.s32.totalorder %s14, 0
      %p103 = por %p101, %p102
      %p104 = scmp.ne.s32.totalorder %s90, %s91
      %p105 = scmp.eq.s32.totalorder %s15, 1
      %p106 = por %p104, %p105
      %p108 = scmp.ne.s32.totalorder %s91, %s107
      %p109 = scmp.eq.s32.totalorder %s15, 0
      %p110 = por %p108, %p109
      %p111 = scmp.le.s32.totalorder 1, %s9
      %p112 = scmp.lt.s32.totalorder %s9, 3
      %p113 = pnand %p111, %p112
      %p114 = pneg %p113
      // Predicated region
      $region9: #{badnet_mnist_forward.4} parent=5 // pred_check
        _
      $region10: #{badnet_mnist_forward.4} parent=5 // pred_check_branch
        %116 = sbr.rel (%p113) target = $region12
      $region11: #{badnet_mnist_forward.4} parent=5 // pred_region
        %s117 = ssub.s32 %s9, 1
        // Predicated region
        $region13: #{badnet_mnist_forward.4} parent=11 // pred_check
          %p118 = pneg %p56
        $region14: #{badnet_mnist_forward.4} parent=11 // pred_check_branch
          %120 = sbr.rel (%p118) target = $region16
        $region15: #{badnet_mnist_forward.4} parent=11 // pred_region
          _
        $region16: #{badnet_mnist_forward.4} parent=11 // pred_fallthru
          _
        // Predicated region
        $region17: #{badnet_mnist_forward.4} parent=11 // pred_check
          %p121 = pneg %p77
        $region18: #{badnet_mnist_forward.4} parent=11 // pred_check_branch
          %123 = sbr.rel (%p121) target = $region20
        $region19: #{badnet_mnist_forward.4} parent=11 // pred_region
          _
        $region20: #{badnet_mnist_forward.4} parent=11 // pred_fallthru
          _
      $region12: #{badnet_mnist_forward.4} parent=5 // pred_fallthru
        _
      %p124 = scmp.lt.s32.totalorder %s9, 2
      // Predicated region
      $region21: #{badnet_mnist_forward.4} parent=5 // pred_check
        %p125 = pneg %p124
      $region22: #{badnet_mnist_forward.4} parent=5 // pred_check_branch
        %127 = sbr.rel (%p125) target = $region24
      $region23: #{badnet_mnist_forward.4} parent=5 // pred_region
        // Predicated region
        $region25: #{badnet_mnist_forward.4} parent=23 // pred_check
          %p128 = pneg %p29
        $region26: #{badnet_mnist_forward.4} parent=23 // pred_check_branch
          %130 = sbr.rel (%p128) target = $region28
        $region27: #{badnet_mnist_forward.4} parent=23 // pred_region
          %s131 = sand.u32 %s19, 1
          %s132 = sand.u32 %s19, 1
          %s133 = smul.addr %s132, 128
          %s134 = scalar_lea.vmem [#allocation2], %s133
          %s135 = smul.u32 2, %s9
          %s136 = smul.addr %s135, 4
          %s137 = smul.addr %s136, 4
          %s138 = scalar_lea.vmem %s0, %s137
          // Predicated region
          $region29: #{badnet_mnist_forward.4} parent=27 // pred_check
            _
          $region30: #{badnet_mnist_forward.4} parent=27 // pred_check_branch
            %140 = sbr.rel (0) target = $region32
          $region31: #{badnet_mnist_forward.4} parent=27 // pred_region
            // Predicated region
            $region33: #{badnet_mnist_forward.4} parent=31 // pred_check
              _
            $region34: #{badnet_mnist_forward.4} parent=31 // pred_check_branch
              %142 = sbr.rel (0) target = $region36
            $region35: #{badnet_mnist_forward.4} parent=31 // pred_region
              loop: start=0, step=1, limit=1
              $region37: #{badnet_mnist_forward.4} parent=35 // loop_pre_header
                _
              $region38: #{badnet_mnist_forward.4} parent=35 // loop_header
                %s144 = sphi 0, %s148
                %p145 = scmp.ge.s32.totalorder %s144, 1
                %s149 = sphi %s138, %s138
                %s150 = sphi %s134, %s134
              $region39: #{badnet_mnist_forward.4} parent=35 // loop_header_branch
                %147 = sbr.rel (%p145) target = $region43
              $region40: #{badnet_mnist_forward.4} parent=35 // loop_body
                %v151 = vld [vmem:[%s149] sm:$0xff]
                %152 = vst [vmem:[%s150] sm:$0xff] %v151
                %v153 = vld [vmem:[%s149 + $0x8] sm:$0xff]
                %154 = vst [vmem:[%s150 + $0x8] sm:$0xff] %v153
                %v155 = vld [vmem:[%s149 + $0x10] sm:$0xff]
                %156 = vst [vmem:[%s150 + $0x10] sm:$0xff] %v155
                %v157 = vld [vmem:[%s149 + $0x18] sm:$0xff]
                %158 = vst [vmem:[%s150 + $0x18] sm:$0xff] %v157
                %v159 = vld [vmem:[%s149 + $0x40] sm:$0xff]
                %160 = vst [vmem:[%s150 + $0x20] sm:$0xff] %v159
                %v161 = vld [vmem:[%s149 + $0x48] sm:$0xff]
                %162 = vst [vmem:[%s150 + $0x28] sm:$0xff] %v161
                %v163 = vld [vmem:[%s149 + $0x50] sm:$0xff]
                %164 = vst [vmem:[%s150 + $0x30] sm:$0xff] %v163
                %v165 = vld [vmem:[%s149 + $0x58] sm:$0xff]
                %166 = vst [vmem:[%s150 + $0x38] sm:$0xff] %v165
                %v167 = vld [vmem:[%s149 + $0x80] sm:$0xff]
                %168 = vst [vmem:[%s150 + $0x40] sm:$0xff] %v167
                %v169 = vld [vmem:[%s149 + $0x88] sm:$0xff]
                %170 = vst [vmem:[%s150 + $0x48] sm:$0xff] %v169
                %v171 = vld [vmem:[%s149 + $0x90] sm:$0xff]
                %172 = vst [vmem:[%s150 + $0x50] sm:$0xff] %v171
                %v173 = vld [vmem:[%s149 + $0x98] sm:$0xff]
                %174 = vst [vmem:[%s150 + $0x58] sm:$0xff] %v173
                %v175 = vld [vmem:[%s149 + $0xc0] sm:$0xff]
                %176 = vst [vmem:[%s150 + $0x60] sm:$0xff] %v175
                %v177 = vld [vmem:[%s149 + $0xc8] sm:$0xff]
                %178 = vst [vmem:[%s150 + $0x68] sm:$0xff] %v177
                %v179 = vld [vmem:[%s149 + $0xd0] sm:$0xff]
                %180 = vst [vmem:[%s150 + $0x70] sm:$0xff] %v179
                %v181 = vld [vmem:[%s149 + $0xd8] sm:$0xff]
                %182 = vst [vmem:[%s150 + $0x78] sm:$0xff] %v181
              $region41: #{badnet_mnist_forward.4} parent=35 // loop_footer
                %s148 = sadd.s32 1, %s144
              $region42: #{badnet_mnist_forward.4} parent=35 // loop_footer_branch
                %143 = sbr.rel target = $region38
              $region43: #{badnet_mnist_forward.4} parent=35 // loop_exit
                _
            $region36: #{badnet_mnist_forward.4} parent=31 // pred_fallthru
              _
            // Predicated region
            $region44: #{badnet_mnist_forward.4} parent=31 // pred_check
              _
            $region45: #{badnet_mnist_forward.4} parent=31 // pred_check_branch
              %184 = sbr.rel target = $region47
            $region46: #{badnet_mnist_forward.4} parent=31 // pred_region
              _
            $region47: #{badnet_mnist_forward.4} parent=31 // pred_fallthru
              _
          $region32: #{badnet_mnist_forward.4} parent=27 // pred_fallthru
            _
          %185 = vnop
        $region28: #{badnet_mnist_forward.4} parent=23 // pred_fallthru
          _
      $region24: #{badnet_mnist_forward.4} parent=5 // pred_fallthru
        _
      %p186 = scmp.le.s32.totalorder 1, %s9
      %p187 = scmp.lt.s32.totalorder %s9, 3
      %p188 = pnand %p186, %p187
      %p189 = pneg %p188
      // Predicated region
      $region48: #{badnet_mnist_forward.4} parent=5 // pred_check
        _
      $region49: #{badnet_mnist_forward.4} parent=5 // pred_check_branch
        %191 = sbr.rel (%p188) target = $region51
      $region50: #{badnet_mnist_forward.4} parent=5 // pred_region
        %s192 = ssub.s32 %s9, 1
        %s193 = sand.u32 %s22, 1
        %s194 = sand.u32 %s22, 1
        %s195 = smul.addr %s194, 128
        %s196 = scalar_lea.vmem [#allocation2], %s195
        // Predicated region
        $region52: #{badnet_mnist_forward.4} parent=50 // pred_check
          %p197 = pneg %p35
        $region53: #{badnet_mnist_forward.4} parent=50 // pred_check_branch
          %199 = sbr.rel (%p197) target = $region55
        $region54: #{badnet_mnist_forward.4} parent=50 // pred_region
          _
        $region55: #{badnet_mnist_forward.4} parent=50 // pred_fallthru
          _
        %s200 = sand.u32 %s22, 1
        %s201 = sand.u32 %s22, 1
        %s202 = smul.addr %s201, 128
        %s203 = scalar_lea.vmem [#allocation2], %s202
        %p204 = pneg %p35
        %p205 = pneg %p32
        %p206 = pneg %p56
        %p207 = pneg %p53
        %p208 = pneg %p77
        %p209 = pneg %p74
        %p210 = pneg %p103
        %p211 = pneg %p100
        %s212 = smul.u32 2, %s14
        %p213 = scmp.lt.s32.totalorder %s212, 3
        %s214 = scalar_select %p213, %s212, 3
        %s215 = smul.addr %s214, 4
        %s216 = scalar_lea.vmem %s3, %s215
        %s217 = smul.u32 2, %s14
        %s218 = smul.u32 2, %s14
        %p219 = scmp.lt.s32.totalorder %s218, 3
        %s220 = scalar_select %p219, %s218, 3
        %s221 = smul.addr %s220, 4
        %s222 = scalar_lea.vmem %s3, %s221
        %s223 = smul.u32 2, %s14
        %v225 = vld [vmem:[%s1] sm:$0xf]
        %v226 = vld [vmem:[%s1 + $0x4] sm:$0xf]
        %v227 = vld [vmem:[%s1 + $0x8] sm:$0xf]
        %v228 = vld [vmem:[%s1 + $0xc] sm:$0xf]
        %v229 = vld [vmem:[%s1 + $0x10] sm:$0xf]
        %v230 = vld [vmem:[%s1 + $0x14] sm:$0xf]
        %v231 = vld [vmem:[%s1 + $0x18] sm:$0xf]
        %v232 = vld [vmem:[%s1 + $0x1c] sm:$0xf]
        %v233 = vld [vmem:[%s1 + $0x20] sm:$0xf]
        %v234 = vld [vmem:[%s1 + $0x24] sm:$0xf]
        %v235 = vld [vmem:[%s1 + $0x28] sm:$0xf]
        %v236 = vld [vmem:[%s1 + $0x2c] sm:$0xf]
        %v237 = vld [vmem:[%s1 + $0x30] sm:$0xf]
        %v238 = vld [vmem:[%s1 + $0x34] sm:$0xf]
        %v239 = vld [vmem:[%s1 + $0x38] sm:$0xf]
        %v240 = vld [vmem:[%s1 + $0x3c] sm:$0xf]
        %v241 = vld [vmem:[%s1 + $0x40] sm:$0xf]
        %v242 = vld [vmem:[%s1 + $0x44] sm:$0xf]
        %v243 = vld [vmem:[%s1 + $0x48] sm:$0xf]
        %v244 = vld [vmem:[%s1 + $0x4c] sm:$0xf]
        %v245 = vld [vmem:[%s1 + $0x50] sm:$0xf]
        %v246 = vld [vmem:[%s1 + $0x54] sm:$0xf]
        %v247 = vld [vmem:[%s1 + $0x58] sm:$0xf]
        %v248 = vld [vmem:[%s1 + $0x5c] sm:$0xf]
        %v249 = vld [vmem:[%s1 + $0x60] sm:$0xf]
        %v250 = vld [vmem:[%s1 + $0x64] sm:$0xf]
        %v251 = vld [vmem:[%s1 + $0x68] sm:$0xf]
        %v252 = vld [vmem:[%s1 + $0x6c] sm:$0xf]
        %v253 = vld [vmem:[%s1 + $0x70] sm:$0xf]
        %v254 = vld [vmem:[%s1 + $0x74] sm:$0xf]
        %v255 = vld [vmem:[%s1 + $0x78] sm:$0xf]
        %v256 = vld [vmem:[%s1 + $0x7c] sm:$0xf]
        %v257 = vld [vmem:[%s1 + $0x80] sm:$0xf]
        %v258 = vld [vmem:[%s1 + $0x84] sm:$0xf]
        %v259 = vld [vmem:[%s1 + $0x88] sm:$0xf]
        %v260 = vld [vmem:[%s1 + $0x8c] sm:$0xf]
        %v261 = vld [vmem:[%s1 + $0x90] sm:$0xf]
        %v262 = vld [vmem:[%s1 + $0x94] sm:$0xf]
        %v263 = vld [vmem:[%s1 + $0x98] sm:$0xf]
        %v264 = vld [vmem:[%s1 + $0x9c] sm:$0xf]
        %v265 = vld [vmem:[%s1 + $0xa0] sm:$0xf]
        %v266 = vld [vmem:[%s1 + $0xa4] sm:$0xf]
        %v267 = vld [vmem:[%s1 + $0xa8] sm:$0xf]
        %v268 = vld [vmem:[%s1 + $0xac] sm:$0xf]
        %v269 = vld [vmem:[%s1 + $0xb0] sm:$0xf]
        %v270 = vld [vmem:[%s1 + $0xb4] sm:$0xf]
        %v271 = vld [vmem:[%s1 + $0xb8] sm:$0xf]
        %v272 = vld [vmem:[%s1 + $0xbc] sm:$0xf]
        %v273 = vld [vmem:[%s1 + $0xc0] sm:$0xf]
        %v274 = vld [vmem:[%s1 + $0xc4] sm:$0xf]
        %v275 = vld [vmem:[%s196] sm:$0xff]
        %v276 = vld [vmem:[%s196 + $0x8] sm:$0xff]
        %v277 = vld [vmem:[%s196 + $0x10] sm:$0xff]
        %v278 = vld [vmem:[%s196 + $0x18] sm:$0xff]
        %v283 = vunpack.c.l.b16 %v275
        %v284 = vunpack.c.h.b16 %v275
        %v285 = vunpack.c.l.b16 %v276
        %v286 = vunpack.c.h.b16 %v276
        %v287 = vunpack.c.l.b16 %v277
        %v288 = vunpack.c.h.b16 %v277
        %v289 = vunpack.c.l.b16 %v278
        %v290 = vunpack.c.h.b16 %v278
        %v291 = vpack.c.b16 %v287, %v283
        %v292 = vpack.c.b16 %v288, %v284
        %v293 = vpack.c.b16 %v289, %v285
        %v294 = vpack.c.b16 %v290, %v286
        %v348 = vunpack.c.l.b16 %v225
        %v349 = vunpack.c.l.b16 %v226
        %v350 = vunpack.c.l.b16 %v227
        %v351 = vunpack.c.l.b16 %v228
        %v352 = vunpack.c.l.b16 %v229
        %v353 = vunpack.c.l.b16 %v230
        %v354 = vunpack.c.l.b16 %v231
        %v355 = vunpack.c.l.b16 %v232
        %v356 = vunpack.c.l.b16 %v233
        %v357 = vunpack.c.l.b16 %v234
        %v358 = vunpack.c.l.b16 %v235
        %v359 = vunpack.c.l.b16 %v236
        %v360 = vunpack.c.l.b16 %v237
        %v361 = vunpack.c.l.b16 %v238
        %v362 = vunpack.c.l.b16 %v239
        %v363 = vunpack.c.l.b16 %v240
        %v364 = vunpack.c.l.b16 %v241
        %v365 = vunpack.c.l.b16 %v242
        %v366 = vunpack.c.l.b16 %v243
        %v367 = vunpack.c.l.b16 %v244
        %v368 = vunpack.c.l.b16 %v245
        %v369 = vunpack.c.l.b16 %v246
        %v370 = vunpack.c.l.b16 %v247
        %v371 = vunpack.c.l.b16 %v248
        %v372 = vunpack.c.l.b16 %v249
        %v373 = vunpack.c.l.b16 %v250
        %v374 = vunpack.c.l.b16 %v251
        %v375 = vunpack.c.l.b16 %v252
        %v376 = vunpack.c.l.b16 %v253
        %v377 = vunpack.c.l.b16 %v254
        %v378 = vunpack.c.l.b16 %v255
        %v379 = vunpack.c.l.b16 %v256
        %v380 = vunpack.c.l.b16 %v257
        %v381 = vunpack.c.l.b16 %v258
        %v382 = vunpack.c.l.b16 %v259
        %v383 = vunpack.c.l.b16 %v260
        %v384 = vunpack.c.l.b16 %v261
        %v385 = vunpack.c.l.b16 %v262
        %v386 = vunpack.c.l.b16 %v263
        %v387 = vunpack.c.l.b16 %v264
        %v388 = vunpack.c.l.b16 %v265
        %v389 = vunpack.c.l.b16 %v266
        %v390 = vunpack.c.l.b16 %v267
        %v391 = vunpack.c.l.b16 %v268
        %v392 = vunpack.c.l.b16 %v269
        %v393 = vunpack.c.l.b16 %v270
        %v394 = vunpack.c.l.b16 %v271
        %v395 = vunpack.c.l.b16 %v272
        %v396 = vunpack.c.l.b16 %v273
        %v397 = vunpack.c.l.b16 %v274
        %v398 = vpack.c.b16 %v349, %v348
        %v399 = vpack.c.b16 %v351, %v350
        %v400 = vpack.c.b16 %v353, %v352
        %v401 = vpack.c.b16 %v355, %v354
        %v402 = vpack.c.b16 %v357, %v356
        %v403 = vpack.c.b16 %v359, %v358
        %v404 = vpack.c.b16 %v361, %v360
        %v405 = vpack.c.b16 %v363, %v362
        %v406 = vpack.c.b16 %v365, %v364
        %v407 = vpack.c.b16 %v367, %v366
        %v408 = vpack.c.b16 %v369, %v368
        %v409 = vpack.c.b16 %v371, %v370
        %v410 = vpack.c.b16 %v373, %v372
        %v411 = vpack.c.b16 %v375, %v374
        %v412 = vpack.c.b16 %v377, %v376
        %v413 = vpack.c.b16 %v379, %v378
        %v414 = vpack.c.b16 %v381, %v380
        %v415 = vpack.c.b16 %v383, %v382
        %v416 = vpack.c.b16 %v385, %v384
        %v417 = vpack.c.b16 %v387, %v386
        %v418 = vpack.c.b16 %v389, %v388
        %v419 = vpack.c.b16 %v391, %v390
        %v420 = vpack.c.b16 %v393, %v392
        %v421 = vpack.c.b16 %v395, %v394
        %v422 = vpack.c.b16 %v397, %v396
        %vm448 = vcmask 130048
        %v450 = vsel %vm448, %v294, 0
        %452 = vmatprep.subr.bf16.mxu0 0
        %453 = vmatpush1.bf16.msra.mxu0 %v398
        %454 = vmatprep.subr.bf16.mxu0 0
        %455 = vmatpush1.bf16.msra.mxu0 %v399
        %456 = vmatprep.subr.bf16.mxu0 0
        %457 = vmatpush1.bf16.msra.mxu0 %v400
        %458 = vmatprep.subr.bf16.mxu0 0
        %459 = vmatpush1.bf16.msra.mxu0 %v401
        %460 = vmatprep.subr.bf16.mxu0 0
        %461 = vmatpush1.bf16.msra.mxu0 %v402
        %462 = vmatprep.subr.bf16.mxu0 0
        %463 = vmatpush1.bf16.msra.mxu0 %v403
        %464 = vmatprep.subr.bf16.mxu0 0
        %465 = vmatpush1.bf16.msra.mxu0 %v404
        %466 = vmatprep.subr.bf16.mxu0 0
        %467 = vmatpush1.bf16.msra.mxu0 %v405
        %468 = vmatprep.subr.bf16.mxu0 0
        %469 = vmatpush1.bf16.msra.mxu0 %v406
        %470 = vmatprep.subr.bf16.mxu0 0
        %471 = vmatpush1.bf16.msra.mxu0 %v407
        %472 = vmatprep.subr.bf16.mxu0 0
        %473 = vmatpush1.bf16.msra.mxu0 %v408
        %474 = vmatprep.subr.bf16.mxu0 0
        %475 = vmatpush1.bf16.msra.mxu0 %v409
        %476 = vmatprep.subr.bf16.mxu0 0
        %477 = vmatpush1.bf16.msra.mxu0 %v410
        %478 = vmatprep.subr.bf16.mxu0 0
        %479 = vmatpush1.bf16.msra.mxu0 %v411
        %480 = vmatprep.subr.bf16.mxu0 0
        %481 = vmatpush1.bf16.msra.mxu0 %v412
        %482 = vmatprep.subr.bf16.mxu0 0
        %483 = vmatpush1.bf16.msra.mxu0 %v413
        %484 = vmatprep.mubr.bf16.mxu0 %v292
        %485 = vmatmul.mubr.bf16.gmra.mrb[0].mxu0 %v291
        %v486 = vpop.f32.mrb[0].mxu0
        %v487 = vadd.f32 0.0, %v486
        %v488 = vpop.f32.mrb[0].mxu0
        %v489 = vpop.f32.mrb[0].mxu0
        %v490 = vadd.f32 0.0, %v489
        %v491 = vpop.f32.mrb[0].mxu0
        %492 = vdwg.mxu0
        %493 = vmatprep.subr.bf16.mxu0 0
        %494 = vmatpush1.bf16.msra.mxu0 %v414
        %495 = vmatprep.subr.bf16.mxu0 0
        %496 = vmatpush1.bf16.msra.mxu0 %v415
        %497 = vmatprep.subr.bf16.mxu0 0
        %498 = vmatpush1.bf16.msra.mxu0 %v416
        %499 = vmatprep.subr.bf16.mxu0 0
        %500 = vmatpush1.bf16.msra.mxu0 %v417
        %501 = vmatprep.subr.bf16.mxu0 0
        %502 = vmatpush1.bf16.msra.mxu0 %v418
        %503 = vmatprep.subr.bf16.mxu0 0
        %504 = vmatpush1.bf16.msra.mxu0 %v419
        %505 = vmatprep.subr.bf16.mxu0 0
        %506 = vmatpush1.bf16.msra.mxu0 %v420
        %507 = vmatprep.subr.bf16.mxu0 0
        %508 = vmatpush1.bf16.msra.mxu0 %v421
        %509 = vmatprep.subr.bf16.mxu0 0
        %510 = vmatpush1.bf16.msra.mxu0 %v422
        %511 = vmatprep.subr.bf16.mxu0 0
        %512 = vmatpush1.bf16.msra.mxu0 0
        %513 = vmatprep.subr.bf16.mxu0 0
        %514 = vmatpush1.bf16.msra.mxu0 0
        %515 = vmatprep.subr.bf16.mxu0 0
        %516 = vmatpush1.bf16.msra.mxu0 0
        %517 = vmatprep.subr.bf16.mxu0 0
        %518 = vmatpush1.bf16.msra.mxu0 0
        %519 = vmatprep.subr.bf16.mxu0 0
        %520 = vmatpush1.bf16.msra.mxu0 0
        %521 = vmatprep.subr.bf16.mxu0 0
        %522 = vmatpush1.bf16.msra.mxu0 0
        %523 = vmatprep.subr.bf16.mxu0 0
        %524 = vmatpush1.bf16.msra.mxu0 0
        %525 = vmatprep.mubr.bf16.mxu0 %v450
        %526 = vmatmul.mubr.bf16.gmra.mrb[0].mxu0 %v293
        %v527 = vpop.f32.mrb[0].mxu0
        %v528 = vadd.f32 %v487, %v527
        %v529 = vpop.f32.mrb[0].mxu0
        %v530 = vpop.f32.mrb[0].mxu0
        %v531 = vadd.f32 %v490, %v530
        %v532 = vpop.f32.mrb[0].mxu0
        %533 = vdwg.mxu0
        %s534 = scalar_lea.vmem %s196, 32 [#allocation2]
        %v535 = vld [vmem:[%s534] sm:$0xff]
        %v536 = vld [vmem:[%s534 + $0x8] sm:$0xff]
        %v537 = vld [vmem:[%s534 + $0x10] sm:$0xff]
        %v538 = vld [vmem:[%s534 + $0x18] sm:$0xff]
        %v543 = vunpack.c.l.b16 %v535
        %v544 = vunpack.c.h.b16 %v535
        %v545 = vunpack.c.l.b16 %v536
        %v546 = vunpack.c.h.b16 %v536
        %v547 = vunpack.c.l.b16 %v537
        %v548 = vunpack.c.h.b16 %v537
        %v549 = vunpack.c.l.b16 %v538
        %v550 = vunpack.c.h.b16 %v538
        %v551 = vpack.c.b16 %v547, %v543
        %v552 = vpack.c.b16 %v548, %v544
        %v553 = vpack.c.b16 %v549, %v545
        %v554 = vpack.c.b16 %v550, %v546
        %v559 = vsel %vm448, %v554, 0
        %561 = vmatprep.subr.bf16.mxu0 0
        %562 = vmatpush1.bf16.msra.mxu0 %v398
        %563 = vmatprep.subr.bf16.mxu0 0
        %564 = vmatpush1.bf16.msra.mxu0 %v399
        %565 = vmatprep.subr.bf16.mxu0 0
        %566 = vmatpush1.bf16.msra.mxu0 %v400
        %567 = vmatprep.subr.bf16.mxu0 0
        %568 = vmatpush1.bf16.msra.mxu0 %v401
        %569 = vmatprep.subr.bf16.mxu0 0
        %570 = vmatpush1.bf16.msra.mxu0 %v402
        %571 = vmatprep.subr.bf16.mxu0 0
        %572 = vmatpush1.bf16.msra.mxu0 %v403
        %573 = vmatprep.subr.bf16.mxu0 0
        %574 = vmatpush1.bf16.msra.mxu0 %v404
        %575 = vmatprep.subr.bf16.mxu0 0
        %576 = vmatpush1.bf16.msra.mxu0 %v405
        %577 = vmatprep.subr.bf16.mxu0 0
        %578 = vmatpush1.bf16.msra.mxu0 %v406
        %579 = vmatprep.subr.bf16.mxu0 0
        %580 = vmatpush1.bf16.msra.mxu0 %v407
        %581 = vmatprep.subr.bf16.mxu0 0
        %582 = vmatpush1.bf16.msra.mxu0 %v408
        %583 = vmatprep.subr.bf16.mxu0 0
        %584 = vmatpush1.bf16.msra.mxu0 %v409
        %585 = vmatprep.subr.bf16.mxu0 0
        %586 = vmatpush1.bf16.msra.mxu0 %v410
        %587 = vmatprep.subr.bf16.mxu0 0
        %588 = vmatpush1.bf16.msra.mxu0 %v411
        %589 = vmatprep.subr.bf16.mxu0 0
        %590 = vmatpush1.bf16.msra.mxu0 %v412
        %591 = vmatprep.subr.bf16.mxu0 0
        %592 = vmatpush1.bf16.msra.mxu0 %v413
        %593 = vmatprep.mubr.bf16.mxu0 %v552
        %594 = vmatmul.mubr.bf16.gmra.mrb[0].mxu0 %v551
        %v595 = vpop.f32.mrb[0].mxu0
        %v596 = vadd.f32 0.0, %v595
        %v597 = vpop.f32.mrb[0].mxu0
        %v598 = vpop.f32.mrb[0].mxu0
        %v599 = vadd.f32 0.0, %v598
        %v600 = vpop.f32.mrb[0].mxu0
        %601 = vdwg.mxu0
        %602 = vmatprep.subr.bf16.mxu0 0
        %603 = vmatpush1.bf16.msra.mxu0 %v414
        %604 = vmatprep.subr.bf16.mxu0 0
        %605 = vmatpush1.bf16.msra.mxu0 %v415
        %606 = vmatprep.subr.bf16.mxu0 0
        %607 = vmatpush1.bf16.msra.mxu0 %v416
        %608 = vmatprep.subr.bf16.mxu0 0
        %609 = vmatpush1.bf16.msra.mxu0 %v417
        %610 = vmatprep.subr.bf16.mxu0 0
        %611 = vmatpush1.bf16.msra.mxu0 %v418
        %612 = vmatprep.subr.bf16.mxu0 0
        %613 = vmatpush1.bf16.msra.mxu0 %v419
        %614 = vmatprep.subr.bf16.mxu0 0
        %615 = vmatpush1.bf16.msra.mxu0 %v420
        %616 = vmatprep.subr.bf16.mxu0 0
        %617 = vmatpush1.bf16.msra.mxu0 %v421
        %618 = vmatprep.subr.bf16.mxu0 0
        %619 = vmatpush1.bf16.msra.mxu0 %v422
        %620 = vmatprep.subr.bf16.mxu0 0
        %621 = vmatpush1.bf16.msra.mxu0 0
        %622 = vmatprep.subr.bf16.mxu0 0
        %623 = vmatpush1.bf16.msra.mxu0 0
        %624 = vmatprep.subr.bf16.mxu0 0
        %625 = vmatpush1.bf16.msra.mxu0 0
        %626 = vmatprep.subr.bf16.mxu0 0
        %627 = vmatpush1.bf16.msra.mxu0 0
        %628 = vmatprep.subr.bf16.mxu0 0
        %629 = vmatpush1.bf16.msra.mxu0 0
        %630 = vmatprep.subr.bf16.mxu0 0
        %631 = vmatpush1.bf16.msra.mxu0 0
        %632 = vmatprep.subr.bf16.mxu0 0
        %633 = vmatpush1.bf16.msra.mxu0 0
        %634 = vmatprep.mubr.bf16.mxu0 %v559
        %635 = vmatmul.mubr.bf16.gmra.mrb[0].mxu0 %v553
        %v636 = vpop.f32.mrb[0].mxu0
        %v637 = vadd.f32 %v596, %v636
        %v638 = vpop.f32.mrb[0].mxu0
        %v639 = vpop.f32.mrb[0].mxu0
        %v640 = vadd.f32 %v599, %v639
        %v641 = vpop.f32.mrb[0].mxu0
        %642 = vdwg.mxu0
        %v643 = vmax.f32 %v528, %v637
        %v644 = vmax.f32 %v531, %v640
        %s645 = scalar_lea.vmem %s196, 64 [#allocation2]
        %v646 = vld [vmem:[%s645] sm:$0xff]
        %v647 = vld [vmem:[%s645 + $0x8] sm:$0xff]
        %v648 = vld [vmem:[%s645 + $0x10] sm:$0xff]
        %v649 = vld [vmem:[%s645 + $0x18] sm:$0xff]
        %v654 = vunpack.c.l.b16 %v646
        %v655 = vunpack.c.h.b16 %v646
        %v656 = vunpack.c.l.b16 %v647
        %v657 = vunpack.c.h.b16 %v647
        %v658 = vunpack.c.l.b16 %v648
        %v659 = vunpack.c.h.b16 %v648
        %v660 = vunpack.c.l.b16 %v649
        %v661 = vunpack.c.h.b16 %v649
        %v662 = vpack.c.b16 %v658, %v654
        %v663 = vpack.c.b16 %v659, %v655
        %v664 = vpack.c.b16 %v660, %v656
        %v665 = vpack.c.b16 %v661, %v657
        %v670 = vsel %vm448, %v665, 0
        %672 = vmatprep.subr.bf16.mxu0 0
        %673 = vmatpush1.bf16.msra.mxu0 %v398
        %674 = vmatprep.subr.bf16.mxu0 0
        %675 = vmatpush1.bf16.msra.mxu0 %v399
        %676 = vmatprep.subr.bf16.mxu0 0
        %677 = vmatpush1.bf16.msra.mxu0 %v400
        %678 = vmatprep.subr.bf16.mxu0 0
        %679 = vmatpush1.bf16.msra.mxu0 %v401
        %680 = vmatprep.subr.bf16.mxu0 0
        %681 = vmatpush1.bf16.msra.mxu0 %v402
        %682 = vmatprep.subr.bf16.mxu0 0
        %683 = vmatpush1.bf16.msra.mxu0 %v403
        %684 = vmatprep.subr.bf16.mxu0 0
        %685 = vmatpush1.bf16.msra.mxu0 %v404
        %686 = vmatprep.subr.bf16.mxu0 0
        %687 = vmatpush1.bf16.msra.mxu0 %v405
        %688 = vmatprep.subr.bf16.mxu0 0
        %689 = vmatpush1.bf16.msra.mxu0 %v406
        %690 = vmatprep.subr.bf16.mxu0 0
        %691 = vmatpush1.bf16.msra.mxu0 %v407
        %692 = vmatprep.subr.bf16.mxu0 0
        %693 = vmatpush1.bf16.msra.mxu0 %v408
        %694 = vmatprep.subr.bf16.mxu0 0
        %695 = vmatpush1.bf16.msra.mxu0 %v409
        %696 = vmatprep.subr.bf16.mxu0 0
        %697 = vmatpush1.bf16.msra.mxu0 %v410
        %698 = vmatprep.subr.bf16.mxu0 0
        %699 = vmatpush1.bf16.msra.mxu0 %v411
        %700 = vmatprep.subr.bf16.mxu0 0
        %701 = vmatpush1.bf16.msra.mxu0 %v412
        %702 = vmatprep.subr.bf16.mxu0 0
        %703 = vmatpush1.bf16.msra.mxu0 %v413
        %704 = vmatprep.mubr.bf16.mxu0 %v663
        %705 = vmatmul.mubr.bf16.gmra.mrb[0].mxu0 %v662
        %v706 = vpop.f32.mrb[0].mxu0
        %v707 = vadd.f32 0.0, %v706
        %v708 = vpop.f32.mrb[0].mxu0
        %v709 = vpop.f32.mrb[0].mxu0
        %v710 = vadd.f32 0.0, %v709
        %v711 = vpop.f32.mrb[0].mxu0
        %712 = vdwg.mxu0
        %713 = vmatprep.subr.bf16.mxu0 0
        %714 = vmatpush1.bf16.msra.mxu0 %v414
        %715 = vmatprep.subr.bf16.mxu0 0
        %716 = vmatpush1.bf16.msra.mxu0 %v415
        %717 = vmatprep.subr.bf16.mxu0 0
        %718 = vmatpush1.bf16.msra.mxu0 %v416
        %719 = vmatprep.subr.bf16.mxu0 0
        %720 = vmatpush1.bf16.msra.mxu0 %v417
        %721 = vmatprep.subr.bf16.mxu0 0
        %722 = vmatpush1.bf16.msra.mxu0 %v418
        %723 = vmatprep.subr.bf16.mxu0 0
        %724 = vmatpush1.bf16.msra.mxu0 %v419
        %725 = vmatprep.subr.bf16.mxu0 0
        %726 = vmatpush1.bf16.msra.mxu0 %v420
        %727 = vmatprep.subr.bf16.mxu0 0
        %728 = vmatpush1.bf16.msra.mxu0 %v421
        %729 = vmatprep.subr.bf16.mxu0 0
        %730 = vmatpush1.bf16.msra.mxu0 %v422
        %731 = vmatprep.subr.bf16.mxu0 0
        %732 = vmatpush1.bf16.msra.mxu0 0
        %733 = vmatprep.subr.bf16.mxu0 0
        %734 = vmatpush1.bf16.msra.mxu0 0
        %735 = vmatprep.subr.bf16.mxu0 0
        %736 = vmatpush1.bf16.msra.mxu0 0
        %737 = vmatprep.subr.bf16.mxu0 0
        %738 = vmatpush1.bf16.msra.mxu0 0
        %739 = vmatprep.subr.bf16.mxu0 0
        %740 = vmatpush1.bf16.msra.mxu0 0
        %741 = vmatprep.subr.bf16.mxu0 0
        %742 = vmatpush1.bf16.msra.mxu0 0
        %743 = vmatprep.subr.bf16.mxu0 0
        %744 = vmatpush1.bf16.msra.mxu0 0
        %745 = vmatprep.mubr.bf16.mxu0 %v670
        %746 = vmatmul.mubr.bf16.gmra.mrb[0].mxu0 %v664
        %v747 = vpop.f32.mrb[0].mxu0
        %v748 = vadd.f32 %v707, %v747
        %v749 = vpop.f32.mrb[0].mxu0
        %v750 = vpop.f32.mrb[0].mxu0
        %v751 = vadd.f32 %v710, %v750
        %v752 = vpop.f32.mrb[0].mxu0
        %753 = vdwg.mxu0
        %s754 = scalar_lea.vmem %s196, 96 [#allocation2]
        %v755 = vld [vmem:[%s754] sm:$0xff]
        %v756 = vld [vmem:[%s754 + $0x8] sm:$0xff]
        %v757 = vld [vmem:[%s754 + $0x10] sm:$0xff]
        %v758 = vld [vmem:[%s754 + $0x18] sm:$0xff]
        %v763 = vunpack.c.l.b16 %v755
        %v764 = vunpack.c.h.b16 %v755
        %v765 = vunpack.c.l.b16 %v756
        %v766 = vunpack.c.h.b16 %v756
        %v767 = vunpack.c.l.b16 %v757
        %v768 = vunpack.c.h.b16 %v757
        %v769 = vunpack.c.l.b16 %v758
        %v770 = vunpack.c.h.b16 %v758
        %v771 = vpack.c.b16 %v767, %v763
        %v772 = vpack.c.b16 %v768, %v764
        %v773 = vpack.c.b16 %v769, %v765
        %v774 = vpack.c.b16 %v770, %v766
        %v779 = vsel %vm448, %v774, 0
        %781 = vmatprep.subr.bf16.mxu0 0
        %782 = vmatpush1.bf16.msra.mxu0 %v398
        %783 = vmatprep.subr.bf16.mxu0 0
        %784 = vmatpush1.bf16.msra.mxu0 %v399
        %785 = vmatprep.subr.bf16.mxu0 0
        %786 = vmatpush1.bf16.msra.mxu0 %v400
        %787 = vmatprep.subr.bf16.mxu0 0
        %788 = vmatpush1.bf16.msra.mxu0 %v401
        %789 = vmatprep.subr.bf16.mxu0 0
        %790 = vmatpush1.bf16.msra.mxu0 %v402
        %791 = vmatprep.subr.bf16.mxu0 0
        %792 = vmatpush1.bf16.msra.mxu0 %v403
        %793 = vmatprep.subr.bf16.mxu0 0
        %794 = vmatpush1.bf16.msra.mxu0 %v404
        %795 = vmatprep.subr.bf16.mxu0 0
        %796 = vmatpush1.bf16.msra.mxu0 %v405
        %797 = vmatprep.subr.bf16.mxu0 0
        %798 = vmatpush1.bf16.msra.mxu0 %v406
        %799 = vmatprep.subr.bf16.mxu0 0
        %800 = vmatpush1.bf16.msra.mxu0 %v407
        %801 = vmatprep.subr.bf16.mxu0 0
        %802 = vmatpush1.bf16.msra.mxu0 %v408
        %803 = vmatprep.subr.bf16.mxu0 0
        %804 = vmatpush1.bf16.msra.mxu0 %v409
        %805 = vmatprep.subr.bf16.mxu0 0
        %806 = vmatpush1.bf16.msra.mxu0 %v410
        %807 = vmatprep.subr.bf16.mxu0 0
        %808 = vmatpush1.bf16.msra.mxu0 %v411
        %809 = vmatprep.subr.bf16.mxu0 0
        %810 = vmatpush1.bf16.msra.mxu0 %v412
        %811 = vmatprep.subr.bf16.mxu0 0
        %812 = vmatpush1.bf16.msra.mxu0 %v413
        %813 = vmatprep.mubr.bf16.mxu0 %v772
        %814 = vmatmul.mubr.bf16.gmra.mrb[0].mxu0 %v771
        %v815 = vpop.f32.mrb[0].mxu0
        %v816 = vadd.f32 0.0, %v815
        %v817 = vpop.f32.mrb[0].mxu0
        %v818 = vpop.f32.mrb[0].mxu0
        %v819 = vadd.f32 0.0, %v818
        %v820 = vpop.f32.mrb[0].mxu0
        %821 = vdwg.mxu0
        %822 = vmatprep.subr.bf16.mxu0 0
        %823 = vmatpush1.bf16.msra.mxu0 %v414
        %824 = vmatprep.subr.bf16.mxu0 0
        %825 = vmatpush1.bf16.msra.mxu0 %v415
        %826 = vmatprep.subr.bf16.mxu0 0
        %827 = vmatpush1.bf16.msra.mxu0 %v416
        %828 = vmatprep.subr.bf16.mxu0 0
        %829 = vmatpush1.bf16.msra.mxu0 %v417
        %830 = vmatprep.subr.bf16.mxu0 0
        %831 = vmatpush1.bf16.msra.mxu0 %v418
        %832 = vmatprep.subr.bf16.mxu0 0
        %833 = vmatpush1.bf16.msra.mxu0 %v419
        %834 = vmatprep.subr.bf16.mxu0 0
        %835 = vmatpush1.bf16.msra.mxu0 %v420
        %836 = vmatprep.subr.bf16.mxu0 0
        %837 = vmatpush1.bf16.msra.mxu0 %v421
        %838 = vmatprep.subr.bf16.mxu0 0
        %839 = vmatpush1.bf16.msra.mxu0 %v422
        %840 = vmatprep.subr.bf16.mxu0 0
        %841 = vmatpush1.bf16.msra.mxu0 0
        %842 = vmatprep.subr.bf16.mxu0 0
        %843 = vmatpush1.bf16.msra.mxu0 0
        %844 = vmatprep.subr.bf16.mxu0 0
        %845 = vmatpush1.bf16.msra.mxu0 0
        %846 = vmatprep.subr.bf16.mxu0 0
        %847 = vmatpush1.bf16.msra.mxu0 0
        %848 = vmatprep.subr.bf16.mxu0 0
        %849 = vmatpush1.bf16.msra.mxu0 0
        %850 = vmatprep.subr.bf16.mxu0 0
        %851 = vmatpush1.bf16.msra.mxu0 0
        %852 = vmatprep.subr.bf16.mxu0 0
        %853 = vmatpush1.bf16.msra.mxu0 0
        %854 = vmatprep.mubr.bf16.mxu0 %v779
        %855 = vmatmul.mubr.bf16.gmra.mrb[0].mxu0 %v773
        %v856 = vpop.f32.mrb[0].mxu0
        %v857 = vadd.f32 %v816, %v856
        %v858 = vpop.f32.mrb[0].mxu0
        %v859 = vpop.f32.mrb[0].mxu0
        %v860 = vadd.f32 %v819, %v859
        %v861 = vpop.f32.mrb[0].mxu0
        %862 = vdwg.mxu0
        %v863 = vmax.f32 %v748, %v857
        %v864 = vmax.f32 %v751, %v860
        %v865 = vmax.f32 %v643, %v863
        %v866 = vmax.f32 %v644, %v864
        %v867 = vld [vmem:[%s2] sm:$0x1]
        %v869 = vlaneseq
        %v870 = vshrl.u32 %v869, 7
        %v871 = vsub.s32 0, %v870
        %v872 = vrot.slane %v867, %v871
        %v874 = vadd.f32 %v865, %v872
        %v875 = vadd.f32 %v866, %v872
        %v876 = vmax.f32 %v874, 0.0
        %v877 = vmax.f32 %v875, 0.0
        %v878 = vpack.c.bf16 %v877, %v876
        %v880 = vunpack.c.l.b16 %v878
        %v881 = vunpack.c.h.b16 %v878
        %v882 = vpack.c.b16 %v880, %v880
        %v883 = vpack.c.b16 %v881, %v881
        %886 = vst [vmem:[%s222] sm:$0xf] %v882
        %887 = vst [vmem:[%s222 + $0x4] sm:$0xf] %v883
        %s888 = smul.u32 2, %s14
        %p889 = scmp.lt.s32.totalorder %s888, 3
        %s890 = scalar_select %p889, %s888, 3
        %s891 = smul.addr %s890, 4
        %s892 = scalar_lea.vmem %s3, %s891
        // Predicated region
        $region56: #{badnet_mnist_forward.4} parent=50 // pred_check
          %p893 = pneg %p100
        $region57: #{badnet_mnist_forward.4} parent=50 // pred_check_branch
          %895 = sbr.rel (%p893) target = $region59
        $region58: #{badnet_mnist_forward.4} parent=50 // pred_region
          %s896 = smul.u32 2, %s14
        $region59: #{badnet_mnist_forward.4} parent=50 // pred_fallthru
          _
      $region51: #{badnet_mnist_forward.4} parent=5 // pred_fallthru
        _
      %p897 = scmp.le.s32.totalorder 2, %s9
      // Predicated region
      $region60: #{badnet_mnist_forward.4} parent=5 // pred_check
        %p898 = pneg %p897
      $region61: #{badnet_mnist_forward.4} parent=5 // pred_check_branch
        %900 = sbr.rel (%p898) target = $region63
      $region62: #{badnet_mnist_forward.4} parent=5 // pred_region
        %s901 = ssub.s32 %s9, 2
        // Predicated region
        $region64: #{badnet_mnist_forward.4} parent=62 // pred_check
          %p902 = pneg %p106
        $region65: #{badnet_mnist_forward.4} parent=62 // pred_check_branch
          %904 = sbr.rel (%p902) target = $region67
        $region66: #{badnet_mnist_forward.4} parent=62 // pred_region
          %s905 = smul.u32 2, %s15
          %p906 = scmp.lt.s32.totalorder %s905, 3
          %s907 = scalar_select %p906, %s905, 3
          %s908 = smul.addr %s907, 4
          %s909 = scalar_lea.vmem %s3, %s908
        $region67: #{badnet_mnist_forward.4} parent=62 // pred_fallthru
          _
      $region63: #{badnet_mnist_forward.4} parent=5 // pred_fallthru
        _
    $region6: #{badnet_mnist_forward.4} parent=1 // loop_footer
      %s13 = sadd.s32 1, %s9
    $region7: #{badnet_mnist_forward.4} parent=1 // loop_footer_branch
      %8 = sbr.rel target = $region3
    $region8: #{badnet_mnist_forward.4} parent=1 // loop_exit
      _

</llo_original>
